<compile_context>
chip_gen: v7x
topology: tpu7x:2x2x1
jax: 0.10.0
libtpu: 0.0.40
codegen_flags: <defaults>
</compile_context>

<pallas_src>
import functools
import math

import jax
import jax.numpy as jnp
from jax.experimental import pallas as pl
from jax.experimental.pallas import tpu as pltpu

DROP_P = 0.31881923790897965


def _attn_kernel(mask_ref, q_ref, kt_ref, v_ref, drop_ref, o_ref, *, scale):
    """One group of G heads per grid step.

    mask_ref : VMEM (Sq, Skv)    f32 additive {0.,1.} mask (shared by all heads)
    q_ref    : VMEM (G, Sq, D)   f32
    kt_ref   : VMEM (G, D, Skv)  f32 (K pre-transposed in the wrapper)
    v_ref    : VMEM (G, Skv, D)  f32
    drop_ref : VMEM (G, Sq, Skv) f32 precomputed dropout scale (keep/(1-p) or 0)
    o_ref    : VMEM (G, Sq*D)    lane-dense output slab
    """
    q = q_ref[...]
    kt = kt_ref[...]
    v = v_ref[...]

    # scores = q @ k^T / sqrt(D)   (batched over the G heads in this step)
    s = jnp.einsum("gqd,gdk->gqk", q, kt,
                   preferred_element_type=jnp.float32) * scale

    # qk = qk + attn_mask  (bool mask promoted to {0.,1.} and added, as in torch)
    s = s + mask_ref[...]

    # softmax over the kv axis
    m = jnp.max(s, axis=-1, keepdims=True)
    e = jnp.exp(s - m)
    denom = jnp.sum(e, axis=-1, keepdims=True)
    p = e / denom

    # dropout(p, train=True): multiply by precomputed {0, 1/(1-p)} scale mask
    p = p * drop_ref[...]

    # output = attn_weight @ v ; store as a lane-dense (G, Sq*D) slab
    out = jnp.einsum("gqk,gkd->gqd", p, v, preferred_element_type=jnp.float32)
    g, sq, d = out.shape
    o_ref[...] = out.reshape(g, sq * d).astype(o_ref.dtype)


def sdpa_pallas(query, key, value, attn_mask, dropout_key, drop_p=DROP_P):
    """query: (B,H,Sq,D)  key/value: (B,H,Skv,D)  attn_mask: (Sq,Skv) bool."""
    B, H, Sq, D = query.shape
    Skv = key.shape[2]
    BH = B * H

    # 2 grid steps when possible so both v7x TensorCores get work; 1 otherwise.
    n_steps = 2 if (BH % 2 == 0 and BH >= 2) else 1
    G = BH // n_steps

    qf = query.reshape(BH, Sq, D)
    ktf = jnp.swapaxes(key.reshape(BH, Skv, D), 1, 2)   # (BH, D, Skv), lane-dense K
    vf = value.reshape(BH, Skv, D)
    mask_f = attn_mask.astype(jnp.float32)              # bool -> {0., 1.} additive

    # Dropout keep mask generated outside the kernel (TPU PRNG has no interpret
    # lowering); kernel just multiplies by keep/(1-p).
    keep = jax.random.bernoulli(dropout_key, p=1.0 - drop_p, shape=(BH, Sq, Skv))
    drop_scale = keep.astype(jnp.float32) * (1.0 / (1.0 - drop_p))

    kernel = functools.partial(_attn_kernel, scale=1.0 / math.sqrt(D))

    out = pl.pallas_call(
        kernel,
        out_shape=jax.ShapeDtypeStruct((BH, Sq * D), query.dtype),
        grid=(n_steps,),
        in_specs=[
            pl.BlockSpec((Sq, Skv), lambda g: (0, 0)),        # mask (shared)
            pl.BlockSpec((G, Sq, D), lambda g: (g, 0, 0)),    # q
            pl.BlockSpec((G, D, Skv), lambda g: (g, 0, 0)),   # k^T
            pl.BlockSpec((G, Skv, D), lambda g: (g, 0, 0)),   # v
            pl.BlockSpec((G, Sq, Skv), lambda g: (g, 0, 0)),  # dropout scale
        ],
        out_specs=pl.BlockSpec((G, Sq * D), lambda g: (g, 0)),
        compiler_params=pltpu.CompilerParams(dimension_semantics=("parallel",)),
    )(mask_f, qf, ktf, vf, drop_scale)

    return out.reshape(B, H, Sq, D)


if __name__ == "__main__":
    # Small shapes consistent with the module (heads=16; tiny seq/head_dim).
    B, H, Sq, D = 1, 16, 64, 16
    Skv = 2 * Sq

    root = jax.random.PRNGKey(0)
    kq, kk, kv, kd = jax.random.split(root, 4)
    q = jax.random.normal(kq, (B, H, Sq, D), dtype=jnp.float32)
    k = jax.random.normal(kk, (B, H, Skv, D), dtype=jnp.float32)
    v = jax.random.normal(kv, (B, H, Skv, D), dtype=jnp.float32)

    # attn_mask = cat([triu(ones(S,S), 1), tril(ones(S,S))], dim=-1) -> (Sq, 2*Sq)
    ones = jnp.ones((Sq, Sq), dtype=bool)
    attn_mask = jnp.concatenate([jnp.triu(ones, 1), jnp.tril(ones)], axis=-1)

    out = sdpa_pallas(q, k, v, attn_mask, dropout_key=kd)
    jax.block_until_ready(out)
    assert out.shape == (B, H, Sq, D) and bool(jnp.all(jnp.isfinite(out)))
    print("KERNEL_OK")
</pallas_src>

<mosaic_0001>
module attributes {stable_mosaic.version = 11 : i64} {
  func.func @_attn_kernel(%arg0: i32, %arg1: memref<64x128xf32, #tpu.memory_space<vmem>>, %arg2: memref<8x64x16xf32, #tpu.memory_space<vmem>>, %arg3: memref<8x16x128xf32, #tpu.memory_space<vmem>>, %arg4: memref<8x128x16xf32, #tpu.memory_space<vmem>>, %arg5: memref<8x64x128xf32, #tpu.memory_space<vmem>>, %arg6: memref<8x1024xf32, #tpu.memory_space<vmem>>) attributes {dimension_semantics = [#tpu.dimension_semantics<parallel>], iteration_bounds = array<i64: 2>, scalar_prefetch = 0 : i64, scratch_operands = 0 : i64, tpu.core_type = #tpu.core_type<tc>, window_params = [{pipeline_mode = #tpu.pipeline_mode<synchronous>, transform_indices = @transform_0, window_bounds = array<i64: 64, 128>}, {transform_indices = @transform_1, window_bounds = array<i64: 8, 64, 16>}, {transform_indices = @transform_2, window_bounds = array<i64: 8, 16, 128>}, {transform_indices = @transform_3, window_bounds = array<i64: 8, 128, 16>}, {transform_indices = @transform_4, window_bounds = array<i64: 8, 64, 128>}, {transform_indices = @transform_5, window_bounds = array<i64: 8, 1024>}]} {
    %c0 = arith.constant 0 : index
    %c0_0 = arith.constant 0 : index
    %c0_1 = arith.constant 0 : index
    %0 = vector.load %arg2[%c0, %c0_0, %c0_1] : memref<8x64x16xf32, #tpu.memory_space<vmem>>, vector<8x64x16xf32>
    %c0_2 = arith.constant 0 : index
    %c0_3 = arith.constant 0 : index
    %c0_4 = arith.constant 0 : index
    %1 = vector.load %arg3[%c0_2, %c0_3, %c0_4] : memref<8x16x128xf32, #tpu.memory_space<vmem>>, vector<8x16x128xf32>
    %c0_5 = arith.constant 0 : index
    %c0_6 = arith.constant 0 : index
    %c0_7 = arith.constant 0 : index
    %2 = vector.load %arg4[%c0_5, %c0_6, %c0_7] : memref<8x128x16xf32, #tpu.memory_space<vmem>>, vector<8x128x16xf32>
    "tpu.trace_start"() <{level = 10 : i32, message = "gqd,gdk->gqk"}> : () -> ()
    %cst = arith.constant dense<0.000000e+00> : vector<8x64x128xf32>
    %3 = tpu.matmul %0, %1, %cst {dimension_numbers = #tpu.dot_dimension_numbers<[2], [1], [1], [2], [0, 0, 0, 1, 1, 2], [0], [0]>} : vector<8x64x16xf32>, vector<8x16x128xf32>, vector<8x64x128xf32> -> vector<8x64x128xf32>
    "tpu.trace_stop"() : () -> ()
    %cst_8 = arith.constant 2.500000e-01 : f32
    %4 = vector.broadcast %cst_8 : f32 to vector<8x64x128xf32>
    %5 = arith.mulf %3, %4 : vector<8x64x128xf32>
    %c0_9 = arith.constant 0 : index
    %c0_10 = arith.constant 0 : index
    %6 = vector.load %arg1[%c0_9, %c0_10] : memref<64x128xf32, #tpu.memory_space<vmem>>, vector<64x128xf32>
    %7 = vector.shape_cast %6 : vector<64x128xf32> to vector<1x64x128xf32>
    %8 = vector.broadcast %7 : vector<1x64x128xf32> to vector<8x64x128xf32>
    %9 = arith.addf %5, %8 : vector<8x64x128xf32>
    %cst_11 = arith.constant dense<0xFF800000> : vector<8x64xf32>
    %10 = vector.multi_reduction <maximumf>, %9, %cst_11 [2] : vector<8x64x128xf32> to vector<8x64xf32>
    %11 = vector.shape_cast %10 : vector<8x64xf32> to vector<8x64x1xf32>
    %12 = vector.broadcast %11 : vector<8x64x1xf32> to vector<8x64x128xf32>
    %13 = arith.subf %9, %12 : vector<8x64x128xf32>
    %14 = math.exp %13 : vector<8x64x128xf32>
    %cst_12 = arith.constant dense<0.000000e+00> : vector<8x64xf32>
    %15 = vector.multi_reduction <add>, %14, %cst_12 [2] : vector<8x64x128xf32> to vector<8x64xf32>
    %16 = vector.shape_cast %15 : vector<8x64xf32> to vector<8x64x1xf32>
    %17 = vector.broadcast %16 : vector<8x64x1xf32> to vector<8x64x128xf32>
    %18 = arith.divf %14, %17 : vector<8x64x128xf32>
    %c0_13 = arith.constant 0 : index
    %c0_14 = arith.constant 0 : index
    %c0_15 = arith.constant 0 : index
    %19 = vector.load %arg5[%c0_13, %c0_14, %c0_15] : memref<8x64x128xf32, #tpu.memory_space<vmem>>, vector<8x64x128xf32>
    %20 = arith.mulf %18, %19 : vector<8x64x128xf32>
    "tpu.trace_start"() <{level = 10 : i32, message = "gqk,gkd->gqd"}> : () -> ()
    %cst_16 = arith.constant dense<0.000000e+00> : vector<8x64x16xf32>
    %21 = tpu.matmul %20, %2, %cst_16 {dimension_numbers = #tpu.dot_dimension_numbers<[2], [1], [1], [2], [0, 0, 0, 1, 1, 2], [0], [0]>} : vector<8x64x128xf32>, vector<8x128x16xf32>, vector<8x64x16xf32> -> vector<8x64x16xf32>
    "tpu.trace_stop"() : () -> ()
    %22 = vector.shape_cast %21 : vector<8x64x16xf32> to vector<8x1024xf32>
    %c0_17 = arith.constant 0 : index
    %c0_18 = arith.constant 0 : index
    %23 = vector.load %arg6[%c0_17, %c0_18] : memref<8x1024xf32, #tpu.memory_space<vmem>>, vector<8x1024xf32>
    tpu.vector_store %arg6[%c0_17, %c0_18], %22 {strides = array<i32>} : memref<8x1024xf32, #tpu.memory_space<vmem>>, vector<8x1024xf32>,
    return
  }
  func.func @transform_0(%arg0: i32) -> (i32, i32) {
    %c0_i32 = arith.constant 0 : i32
    %c0_i32_0 = arith.constant 0 : i32
    %c0_i32_1 = arith.constant 0 : i32
    return %c0_i32, %c0_i32_0 : i32, i32
  }
  func.func @transform_1(%arg0: i32) -> (i32, i32, i32) {
    %c0_i32 = arith.constant 0 : i32
    %c0_i32_0 = arith.constant 0 : i32
    %c0_i32_1 = arith.constant 0 : i32
    return %arg0, %c0_i32, %c0_i32_0 : i32, i32, i32
  }
  func.func @transform_2(%arg0: i32) -> (i32, i32, i32) {
    %c0_i32 = arith.constant 0 : i32
    %c0_i32_0 = arith.constant 0 : i32
    %c0_i32_1 = arith.constant 0 : i32
    return %arg0, %c0_i32, %c0_i32_0 : i32, i32, i32
  }
  func.func @transform_3(%arg0: i32) -> (i32, i32, i32) {
    %c0_i32 = arith.constant 0 : i32
    %c0_i32_0 = arith.constant 0 : i32
    %c0_i32_1 = arith.constant 0 : i32
    return %arg0, %c0_i32, %c0_i32_0 : i32, i32, i32
  }
  func.func @transform_4(%arg0: i32) -> (i32, i32, i32) {
    %c0_i32 = arith.constant 0 : i32
    %c0_i32_0 = arith.constant 0 : i32
    %c0_i32_1 = arith.constant 0 : i32
    return %arg0, %c0_i32, %c0_i32_0 : i32, i32, i32
  }
  func.func @transform_5(%arg0: i32) -> (i32, i32) {
    %c0_i32 = arith.constant 0 : i32
    %c0_i32_0 = arith.constant 0 : i32
    return %arg0, %c0_i32 : i32, i32
  }
}

</mosaic_0001>

<llo_original>
// kernel: tpu_custom_call.1
$region0: #{tpu_custom_call.1}
  #allocation0 [shape = 'u32[]', space=smem, size = 0x4, offset = 0x4, fixed_abs, tag = 'smem constant byte address 0x4 - core index']
  #allocation1 [shape = 'u32[144,128]{1,0:T(1,128)}', space=vmem, size = 0x12000, scoped, tag = 'internal scratch']
  %s0 = inlined_call_operand.vmem [shape: f32[64,128], index: 0, kind: input, shape index: {}]
  %s1 = inlined_call_operand.vmem [shape: f32[16,64,16], index: 1, kind: input, shape index: {}]
  %s2 = inlined_call_operand.vmem [shape: f32[16,16,128], index: 2, kind: input, shape index: {}]
  %s3 = inlined_call_operand.vmem [shape: f32[16,128,16], index: 3, kind: input, shape index: {}]
  %s4 = inlined_call_operand.vmem [shape: f32[16,64,128], index: 4, kind: input, shape index: {}]
  %s5 = inlined_call_operand.hbm [shape: f32[16,1024], index: 5, kind: output, shape index: {}]
  %s6 = sld [smem:[#allocation0]]
  $region53: #{tpu_custom_call.1} parent=0
    _
  %s8 = ssub.s32 1, %s6
  %s9 = scalar_select 0, %s8, %s6
  $region1: #{tpu_custom_call.1} parent=0
    #allocation2 [shape = 'u8[65536]{0}', space=vmem, size = 0x10000, scoped, tag = 'output window, operand 0']
    #allocation3 [shape = 's32[2]{0}', space=sflag, size = 0x8, scoped, tag = 'scoped memory for tpu_custom_call.1']
    %10 = vsyncpa [#allocation3], 0
    %s11 = scalar_lea.sflag [#allocation3], 1
    %12 = vsyncpa %s11, 0
    loop: start=0, step=1, limit=4
    $region2: #{tpu_custom_call.1} parent=1 // loop_pre_header
      _
    $region3: #{tpu_custom_call.1} parent=1 // loop_header
      %s14 = sphi 0, %s18
      %p15 = scmp.ge.s32.totalorder %s14, 4
      %s22 = sphi 0, %s22
      %s24 = sphi 0, %s22
      %s25 = sphi 0, %s24
      %s39 = sphi 0, %s25
      %s45 = sphi 0, %s47
      %s48 = sphi 0, %s45
      %s49 = sphi 0, %s48
      %s65 = sphi 0, %s49
      %s71 = sphi 0, %s73
      %s74 = sphi 0, %s71
      %s75 = sphi 0, %s74
      %s91 = sphi 0, %s75
      %s97 = sphi 0, %s99
      %s100 = sphi 0, %s97
      %s101 = sphi 0, %s100
      %s117 = sphi 0, %s101
      %s123 = sphi 0, %s125
      %s126 = sphi 0, %s123
      %s127 = sphi 0, %s126
      %s143 = sphi 0, %s127
      %s149 = sphi 0, %s151
      %s152 = sphi 0, %s149
      %s153 = sphi 0, %s152
      %s169 = sphi 0, %s153
    $region4: #{tpu_custom_call.1} parent=1 // loop_header_branch
      %17 = sbr.rel (%p15) target = $region8
    $region5: #{tpu_custom_call.1} parent=1 // loop_body
      %s19 = ssub.s32 %s14, 1
      %s20 = ssub.s32 %s14, 2
      %s21 = sadd.s32 %s14, 1
      %s23 = sadd.s32 %s22, 1
      %p26 = scmp.eq.s32.totalorder %s14, 1
      %p27 = scmp.ne.s32.totalorder %s22, %s24
      %p28 = scmp.eq.s32.totalorder %s14, 0
      %p29 = por %p27, %p28
      %p30 = scmp.ne.s32.totalorder %s22, %s24
      %p31 = scmp.eq.s32.totalorder %s19, 1
      %p32 = por %p30, %p31
      %p33 = scmp.ne.s32.totalorder %s24, %s25
      %p34 = scmp.eq.s32.totalorder %s19, 0
      %p35 = por %p33, %p34
      %p36 = scmp.ne.s32.totalorder %s24, %s25
      %p37 = scmp.eq.s32.totalorder %s20, 1
      %p38 = por %p36, %p37
      %p40 = scmp.ne.s32.totalorder %s25, %s39
      %p41 = scmp.eq.s32.totalorder %s20, 0
      %p42 = por %p40, %p41
      %s43 = ssub.s32 %s14, %s21
      %p44 = scmp.eq.s32.totalorder %s43, 0
      %s46 = sadd.s32 %s45, 1
      %s47 = scalar_select %p44, %s45, %s46
      %p50 = pneg %p44
      %p51 = scmp.eq.s32.totalorder %s14, 1
      %p52 = por %p50, %p51
      %p53 = scmp.ne.s32.totalorder %s45, %s48
      %p54 = scmp.eq.s32.totalorder %s14, 0
      %p55 = por %p53, %p54
      %p56 = scmp.ne.s32.totalorder %s45, %s48
      %p57 = scmp.eq.s32.totalorder %s19, 1
      %p58 = por %p56, %p57
      %p59 = scmp.ne.s32.totalorder %s48, %s49
      %p60 = scmp.eq.s32.totalorder %s19, 0
      %p61 = por %p59, %p60
      %p62 = scmp.ne.s32.totalorder %s48, %s49
      %p63 = scmp.eq.s32.totalorder %s20, 1
      %p64 = por %p62, %p63
      %p66 = scmp.ne.s32.totalorder %s49, %s65
      %p67 = scmp.eq.s32.totalorder %s20, 0
      %p68 = por %p66, %p67
      %s69 = ssub.s32 %s14, %s21
      %p70 = scmp.eq.s32.totalorder %s69, 0
      %s72 = sadd.s32 %s71, 1
      %s73 = scalar_select %p70, %s71, %s72
      %p76 = pneg %p70
      %p77 = scmp.eq.s32.totalorder %s14, 1
      %p78 = por %p76, %p77
      %p79 = scmp.ne.s32.totalorder %s71, %s74
      %p80 = scmp.eq.s32.totalorder %s14, 0
      %p81 = por %p79, %p80
      %p82 = scmp.ne.s32.totalorder %s71, %s74
      %p83 = scmp.eq.s32.totalorder %s19, 1
      %p84 = por %p82, %p83
      %p85 = scmp.ne.s32.totalorder %s74, %s75
      %p86 = scmp.eq.s32.totalorder %s19, 0
      %p87 = por %p85, %p86
      %p88 = scmp.ne.s32.totalorder %s74, %s75
      %p89 = scmp.eq.s32.totalorder %s20, 1
      %p90 = por %p88, %p89
      %p92 = scmp.ne.s32.totalorder %s75, %s91
      %p93 = scmp.eq.s32.totalorder %s20, 0
      %p94 = por %p92, %p93
      %s95 = ssub.s32 %s14, %s21
      %p96 = scmp.eq.s32.totalorder %s95, 0
      %s98 = sadd.s32 %s97, 1
      %s99 = scalar_select %p96, %s97, %s98
      %p102 = pneg %p96
      %p103 = scmp.eq.s32.totalorder %s14, 1
      %p104 = por %p102, %p103
      %p105 = scmp.ne.s32.totalorder %s97, %s100
      %p106 = scmp.eq.s32.totalorder %s14, 0
      %p107 = por %p105, %p106
      %p108 = scmp.ne.s32.totalorder %s97, %s100
      %p109 = scmp.eq.s32.totalorder %s19, 1
      %p110 = por %p108, %p109
      %p111 = scmp.ne.s32.totalorder %s100, %s101
      %p112 = scmp.eq.s32.totalorder %s19, 0
      %p113 = por %p111, %p112
      %p114 = scmp.ne.s32.totalorder %s100, %s101
      %p115 = scmp.eq.s32.totalorder %s20, 1
      %p116 = por %p114, %p115
      %p118 = scmp.ne.s32.totalorder %s101, %s117
      %p119 = scmp.eq.s32.totalorder %s20, 0
      %p120 = por %p118, %p119
      %s121 = ssub.s32 %s14, %s21
      %p122 = scmp.eq.s32.totalorder %s121, 0
      %s124 = sadd.s32 %s123, 1
      %s125 = scalar_select %p122, %s123, %s124
      %p128 = pneg %p122
      %p129 = scmp.eq.s32.totalorder %s14, 1
      %p130 = por %p128, %p129
      %p131 = scmp.ne.s32.totalorder %s123, %s126
      %p132 = scmp.eq.s32.totalorder %s14, 0
      %p133 = por %p131, %p132
      %p134 = scmp.ne.s32.totalorder %s123, %s126
      %p135 = scmp.eq.s32.totalorder %s19, 1
      %p136 = por %p134, %p135
      %p137 = scmp.ne.s32.totalorder %s126, %s127
      %p138 = scmp.eq.s32.totalorder %s19, 0
      %p139 = por %p137, %p138
      %p140 = scmp.ne.s32.totalorder %s126, %s127
      %p141 = scmp.eq.s32.totalorder %s20, 1
      %p142 = por %p140, %p141
      %p144 = scmp.ne.s32.totalorder %s127, %s143
      %p145 = scmp.eq.s32.totalorder %s20, 0
      %p146 = por %p144, %p145
      %s147 = ssub.s32 %s14, %s21
      %p148 = scmp.eq.s32.totalorder %s147, 0
      %s150 = sadd.s32 %s149, 1
      %s151 = scalar_select %p148, %s149, %s150
      %p154 = pneg %p148
      %p155 = scmp.eq.s32.totalorder %s14, 1
      %p156 = por %p154, %p155
      %p157 = scmp.ne.s32.totalorder %s149, %s152
      %p158 = scmp.eq.s32.totalorder %s14, 0
      %p159 = por %p157, %p158
      %p160 = scmp.ne.s32.totalorder %s149, %s152
      %p161 = scmp.eq.s32.totalorder %s19, 1
      %p162 = por %p160, %p161
      %p163 = scmp.ne.s32.totalorder %s152, %s153
      %p164 = scmp.eq.s32.totalorder %s19, 0
      %p165 = por %p163, %p164
      %p166 = scmp.ne.s32.totalorder %s152, %s153
      %p167 = scmp.eq.s32.totalorder %s20, 1
      %p168 = por %p166, %p167
      %p170 = scmp.ne.s32.totalorder %s153, %s169
      %p171 = scmp.eq.s32.totalorder %s20, 0
      %p172 = por %p170, %p171
      %p173 = scmp.le.s32.totalorder 1, %s14
      %p174 = scmp.lt.s32.totalorder %s14, 3
      %p175 = pnand %p173, %p174
      %p176 = pneg %p175
      // Predicated region
      $region9: #{tpu_custom_call.1} parent=5 // pred_check
        _
      $region10: #{tpu_custom_call.1} parent=5 // pred_check_branch
        %178 = sbr.rel (%p175) target = $region12
      $region11: #{tpu_custom_call.1} parent=5 // pred_region
        %s179 = ssub.s32 %s14, 1
        // Predicated region
        $region13: #{tpu_custom_call.1} parent=11 // pred_check
          %p180 = pneg %p35
        $region14: #{tpu_custom_call.1} parent=11 // pred_check_branch
          %182 = sbr.rel (%p180) target = $region16
        $region15: #{tpu_custom_call.1} parent=11 // pred_region
          _
        $region16: #{tpu_custom_call.1} parent=11 // pred_fallthru
          _
      $region12: #{tpu_custom_call.1} parent=5 // pred_fallthru
        _
      %p183 = scmp.lt.s32.totalorder %s14, 2
      // Predicated region
      $region17: #{tpu_custom_call.1} parent=5 // pred_check
        %p184 = pneg %p183
      $region18: #{tpu_custom_call.1} parent=5 // pred_check_branch
        %186 = sbr.rel (%p184) target = $region20
      $region19: #{tpu_custom_call.1} parent=5 // pred_region
        // Predicated region
        $region21: #{tpu_custom_call.1} parent=19 // pred_check
          %p187 = pneg %p55
        $region22: #{tpu_custom_call.1} parent=19 // pred_check_branch
          %189 = sbr.rel (%p187) target = $region24
        $region23: #{tpu_custom_call.1} parent=19 // pred_region
          %s190 = smul.u32 8, %s14
          %p191 = scmp.lt.s32.totalorder %s190, 15
          %s192 = scalar_select %p191, %s190, 15
          %s193 = smul.addr %s192, 8
          %s194 = smul.addr %s193, 8
          %s195 = scalar_lea.vmem %s1, %s194
          %s196 = smul.u32 8, %s14
        $region24: #{tpu_custom_call.1} parent=19 // pred_fallthru
          _
        // Predicated region
        $region25: #{tpu_custom_call.1} parent=19 // pred_check
          %p197 = pneg %p81
        $region26: #{tpu_custom_call.1} parent=19 // pred_check_branch
          %199 = sbr.rel (%p197) target = $region28
        $region27: #{tpu_custom_call.1} parent=19 // pred_region
          %s200 = smul.u32 8, %s14
          %p201 = scmp.lt.s32.totalorder %s200, 15
          %s202 = scalar_select %p201, %s200, 15
          %s203 = smul.addr %s202, 2
          %s204 = smul.addr %s203, 8
          %s205 = scalar_lea.vmem %s2, %s204
          %s206 = smul.u32 8, %s14
        $region28: #{tpu_custom_call.1} parent=19 // pred_fallthru
          _
        // Predicated region
        $region29: #{tpu_custom_call.1} parent=19 // pred_check
          %p207 = pneg %p107
        $region30: #{tpu_custom_call.1} parent=19 // pred_check_branch
          %209 = sbr.rel (%p207) target = $region32
        $region31: #{tpu_custom_call.1} parent=19 // pred_region
          %s210 = smul.u32 8, %s14
          %p211 = scmp.lt.s32.totalorder %s210, 15
          %s212 = scalar_select %p211, %s210, 15
          %s213 = smul.addr %s212, 16
          %s214 = smul.addr %s213, 8
          %s215 = scalar_lea.vmem %s3, %s214
          %s216 = smul.u32 8, %s14
        $region32: #{tpu_custom_call.1} parent=19 // pred_fallthru
          _
        // Predicated region
        $region33: #{tpu_custom_call.1} parent=19 // pred_check
          %p217 = pneg %p133
        $region34: #{tpu_custom_call.1} parent=19 // pred_check_branch
          %219 = sbr.rel (%p217) target = $region36
        $region35: #{tpu_custom_call.1} parent=19 // pred_region
          %s220 = smul.u32 8, %s14
          %p221 = scmp.lt.s32.totalorder %s220, 15
          %s222 = scalar_select %p221, %s220, 15
          %s223 = smul.addr %s222, 8
          %s224 = smul.addr %s223, 8
          %s225 = scalar_lea.vmem %s4, %s224
          %s226 = smul.u32 8, %s14
        $region36: #{tpu_custom_call.1} parent=19 // pred_fallthru
          _
      $region20: #{tpu_custom_call.1} parent=5 // pred_fallthru
        _
      %p227 = scmp.le.s32.totalorder 1, %s14
      %p228 = scmp.lt.s32.totalorder %s14, 3
      %p229 = pnand %p227, %p228
      %p230 = pneg %p229
      // Predicated region
      $region37: #{tpu_custom_call.1} parent=5 // pred_check
        _
      $region38: #{tpu_custom_call.1} parent=5 // pred_check_branch
        %232 = sbr.rel (%p229) target = $region40
      $region39: #{tpu_custom_call.1} parent=5 // pred_region
        %s233 = ssub.s32 %s14, 1
        %p234 = pneg %p35
        %p235 = pneg %p32
        %s236 = smul.u32 8, %s19
        %p237 = scmp.lt.s32.totalorder %s236, 15
        %s238 = scalar_select %p237, %s236, 15
        %s239 = smul.addr %s238, 8
        %s240 = smul.addr %s239, 8
        %s241 = scalar_lea.vmem %s1, %s240
        %p242 = pneg %p61
        %p243 = pneg %p58
        %s244 = smul.u32 8, %s19
        %p245 = scmp.lt.s32.totalorder %s244, 15
        %s246 = scalar_select %p245, %s244, 15
        %s247 = smul.addr %s246, 2
        %s248 = smul.addr %s247, 8
        %s249 = scalar_lea.vmem %s2, %s248
        %p250 = pneg %p87
        %p251 = pneg %p84
        %s252 = smul.u32 8, %s19
        %p253 = scmp.lt.s32.totalorder %s252, 15
        %s254 = scalar_select %p253, %s252, 15
        %s255 = smul.addr %s254, 16
        %s256 = smul.addr %s255, 8
        %s257 = scalar_lea.vmem %s3, %s256
        %p258 = pneg %p113
        %p259 = pneg %p110
        %s260 = smul.u32 8, %s19
        %p261 = scmp.lt.s32.totalorder %s260, 15
        %s262 = scalar_select %p261, %s260, 15
        %s263 = smul.addr %s262, 8
        %s264 = smul.addr %s263, 8
        %s265 = scalar_lea.vmem %s4, %s264
        %p266 = pneg %p139
        %p267 = pneg %p136
        %p268 = pneg %p165
        %p269 = pneg %p162
        %s270 = sand.u32 %s152, 1
        %s271 = scalar_lea.sflag [#allocation3], %s270
        %s272 = sand.u32 %s152, 1
        %s273 = smul.addr %s272, 64
        %s274 = scalar_lea.vmem [#allocation2], %s273
        %s275 = smul.u32 8, %s19
        %p276 = scmp.lt.s32.totalorder %s275, 15
        %s277 = scalar_select %p276, %s275, 15
        %s278 = smul.addr %s277, 8
        %s279 = smul.addr %s278, 8
        %s280 = scalar_lea.vmem %s1, %s279
        %s281 = smul.u32 8, %s19
        %s282 = smul.u32 8, %s19
        %p283 = scmp.lt.s32.totalorder %s282, 15
        %s284 = scalar_select %p283, %s282, 15
        %s285 = smul.addr %s284, 2
        %s286 = smul.addr %s285, 8
        %s287 = scalar_lea.vmem %s2, %s286
        %s288 = smul.u32 8, %s19
        %s289 = smul.u32 8, %s19
        %p290 = scmp.lt.s32.totalorder %s289, 15
        %s291 = scalar_select %p290, %s289, 15
        %s292 = smul.addr %s291, 16
        %s293 = smul.addr %s292, 8
        %s294 = scalar_lea.vmem %s3, %s293
        %s295 = smul.u32 8, %s19
        %s296 = smul.u32 8, %s19
        %p297 = scmp.lt.s32.totalorder %s296, 15
        %s298 = scalar_select %p297, %s296, 15
        %s299 = smul.addr %s298, 8
        %s300 = smul.addr %s299, 8
        %s301 = scalar_lea.vmem %s4, %s300
        %s302 = smul.u32 8, %s19
        %v303 = vld [vmem:[%s280] sm:$0xff]
        %v304 = vld [vmem:[%s280 + $0x8] sm:$0xff]
        %v305 = vld [vmem:[%s280 + $0x10] sm:$0xff]
        %v306 = vld [vmem:[%s280 + $0x18] sm:$0xff]
        %v307 = vld [vmem:[%s280 + $0x20] sm:$0xff]
        %v308 = vld [vmem:[%s280 + $0x28] sm:$0xff]
        %v309 = vld [vmem:[%s280 + $0x30] sm:$0xff]
        %v310 = vld [vmem:[%s280 + $0x38] sm:$0xff]
        %v311 = vld [vmem:[%s280 + $0x40] sm:$0xff]
        %v312 = vld [vmem:[%s280 + $0x48] sm:$0xff]
        %v313 = vld [vmem:[%s280 + $0x50] sm:$0xff]
        %v314 = vld [vmem:[%s280 + $0x58] sm:$0xff]
        %v315 = vld [vmem:[%s280 + $0x60] sm:$0xff]
        %v316 = vld [vmem:[%s280 + $0x68] sm:$0xff]
        %v317 = vld [vmem:[%s280 + $0x70] sm:$0xff]
        %v318 = vld [vmem:[%s280 + $0x78] sm:$0xff]
        %v319 = vld [vmem:[%s280 + $0x80] sm:$0xff]
        %v320 = vld [vmem:[%s280 + $0x88] sm:$0xff]
        %v321 = vld [vmem:[%s280 + $0x90] sm:$0xff]
        %v322 = vld [vmem:[%s280 + $0x98] sm:$0xff]
        %v323 = vld [vmem:[%s280 + $0xa0] sm:$0xff]
        %v324 = vld [vmem:[%s280 + $0xa8] sm:$0xff]
        %v325 = vld [vmem:[%s280 + $0xb0] sm:$0xff]
        %v326 = vld [vmem:[%s280 + $0xb8] sm:$0xff]
        %v327 = vld [vmem:[%s280 + $0xc0] sm:$0xff]
        %v328 = vld [vmem:[%s280 + $0xc8] sm:$0xff]
        %v329 = vld [vmem:[%s280 + $0xd0] sm:$0xff]
        %v330 = vld [vmem:[%s280 + $0xd8] sm:$0xff]
        %v331 = vld [vmem:[%s280 + $0xe0] sm:$0xff]
        %v332 = vld [vmem:[%s280 + $0xe8] sm:$0xff]
        %v333 = vld [vmem:[%s280 + $0xf0] sm:$0xff]
        %v334 = vld [vmem:[%s280 + $0xf8] sm:$0xff]
        %v335 = vld [vmem:[%s280 + $0x100] sm:$0xff]
        %v336 = vld [vmem:[%s280 + $0x108] sm:$0xff]
        %v337 = vld [vmem:[%s280 + $0x110] sm:$0xff]
        %v338 = vld [vmem:[%s280 + $0x118] sm:$0xff]
        %v339 = vld [vmem:[%s280 + $0x120] sm:$0xff]
        %v340 = vld [vmem:[%s280 + $0x128] sm:$0xff]
        %v341 = vld [vmem:[%s280 + $0x130] sm:$0xff]
        %v342 = vld [vmem:[%s280 + $0x138] sm:$0xff]
        %v343 = vld [vmem:[%s280 + $0x140] sm:$0xff]
        %v344 = vld [vmem:[%s280 + $0x148] sm:$0xff]
        %v345 = vld [vmem:[%s280 + $0x150] sm:$0xff]
        %v346 = vld [vmem:[%s280 + $0x158] sm:$0xff]
        %v347 = vld [vmem:[%s280 + $0x160] sm:$0xff]
        %v348 = vld [vmem:[%s280 + $0x168] sm:$0xff]
        %v349 = vld [vmem:[%s280 + $0x170] sm:$0xff]
        %v350 = vld [vmem:[%s280 + $0x178] sm:$0xff]
        %v351 = vld [vmem:[%s280 + $0x180] sm:$0xff]
        %v352 = vld [vmem:[%s280 + $0x188] sm:$0xff]
        %v353 = vld [vmem:[%s280 + $0x190] sm:$0xff]
        %v354 = vld [vmem:[%s280 + $0x198] sm:$0xff]
        %v355 = vld [vmem:[%s280 + $0x1a0] sm:$0xff]
        %v356 = vld [vmem:[%s280 + $0x1a8] sm:$0xff]
        %v357 = vld [vmem:[%s280 + $0x1b0] sm:$0xff]
        %v358 = vld [vmem:[%s280 + $0x1b8] sm:$0xff]
        %v359 = vld [vmem:[%s280 + $0x1c0] sm:$0xff]
        %v360 = vld [vmem:[%s280 + $0x1c8] sm:$0xff]
        %v361 = vld [vmem:[%s280 + $0x1d0] sm:$0xff]
        %v362 = vld [vmem:[%s280 + $0x1d8] sm:$0xff]
        %v363 = vld [vmem:[%s280 + $0x1e0] sm:$0xff]
        %v364 = vld [vmem:[%s280 + $0x1e8] sm:$0xff]
        %v365 = vld [vmem:[%s280 + $0x1f0] sm:$0xff]
        %v366 = vld [vmem:[%s280 + $0x1f8] sm:$0xff]
        %v367 = vld [vmem:[%s287] sm:$0xff]
        %v368 = vld [vmem:[%s287 + $0x8] sm:$0xff]
        %v369 = vld [vmem:[%s287 + $0x10] sm:$0xff]
        %v370 = vld [vmem:[%s287 + $0x18] sm:$0xff]
        %v371 = vld [vmem:[%s287 + $0x20] sm:$0xff]
        %v372 = vld [vmem:[%s287 + $0x28] sm:$0xff]
        %v373 = vld [vmem:[%s287 + $0x30] sm:$0xff]
        %v374 = vld [vmem:[%s287 + $0x38] sm:$0xff]
        %v375 = vld [vmem:[%s287 + $0x40] sm:$0xff]
        %v376 = vld [vmem:[%s287 + $0x48] sm:$0xff]
        %v377 = vld [vmem:[%s287 + $0x50] sm:$0xff]
        %v378 = vld [vmem:[%s287 + $0x58] sm:$0xff]
        %v379 = vld [vmem:[%s287 + $0x60] sm:$0xff]
        %v380 = vld [vmem:[%s287 + $0x68] sm:$0xff]
        %v381 = vld [vmem:[%s287 + $0x70] sm:$0xff]
        %v382 = vld [vmem:[%s287 + $0x78] sm:$0xff]
        %v383 = vld [vmem:[%s294] sm:$0xff]
        %v384 = vld [vmem:[%s294 + $0x8] sm:$0xff]
        %v385 = vld [vmem:[%s294 + $0x10] sm:$0xff]
        %v386 = vld [vmem:[%s294 + $0x18] sm:$0xff]
        %v387 = vld [vmem:[%s294 + $0x20] sm:$0xff]
        %v388 = vld [vmem:[%s294 + $0x28] sm:$0xff]
        %v389 = vld [vmem:[%s294 + $0x30] sm:$0xff]
        %v390 = vld [vmem:[%s294 + $0x38] sm:$0xff]
        %v391 = vld [vmem:[%s294 + $0x40] sm:$0xff]
        %v392 = vld [vmem:[%s294 + $0x48] sm:$0xff]
        %v393 = vld [vmem:[%s294 + $0x50] sm:$0xff]
        %v394 = vld [vmem:[%s294 + $0x58] sm:$0xff]
        %v395 = vld [vmem:[%s294 + $0x60] sm:$0xff]
        %v396 = vld [vmem:[%s294 + $0x68] sm:$0xff]
        %v397 = vld [vmem:[%s294 + $0x70] sm:$0xff]
        %v398 = vld [vmem:[%s294 + $0x78] sm:$0xff]
        %v399 = vld [vmem:[%s294 + $0x80] sm:$0xff]
        %v400 = vld [vmem:[%s294 + $0x88] sm:$0xff]
        %v401 = vld [vmem:[%s294 + $0x90] sm:$0xff]
        %v402 = vld [vmem:[%s294 + $0x98] sm:$0xff]
        %v403 = vld [vmem:[%s294 + $0xa0] sm:$0xff]
        %v404 = vld [vmem:[%s294 + $0xa8] sm:$0xff]
        %v405 = vld [vmem:[%s294 + $0xb0] sm:$0xff]
        %v406 = vld [vmem:[%s294 + $0xb8] sm:$0xff]
        %v407 = vld [vmem:[%s294 + $0xc0] sm:$0xff]
        %v408 = vld [vmem:[%s294 + $0xc8] sm:$0xff]
        %v409 = vld [vmem:[%s294 + $0xd0] sm:$0xff]
        %v410 = vld [vmem:[%s294 + $0xd8] sm:$0xff]
        %v411 = vld [vmem:[%s294 + $0xe0] sm:$0xff]
        %v412 = vld [vmem:[%s294 + $0xe8] sm:$0xff]
        %v413 = vld [vmem:[%s294 + $0xf0] sm:$0xff]
        %v414 = vld [vmem:[%s294 + $0xf8] sm:$0xff]
        %v415 = vld [vmem:[%s294 + $0x100] sm:$0xff]
        %v416 = vld [vmem:[%s294 + $0x108] sm:$0xff]
        %v417 = vld [vmem:[%s294 + $0x110] sm:$0xff]
        %v418 = vld [vmem:[%s294 + $0x118] sm:$0xff]
        %v419 = vld [vmem:[%s294 + $0x120] sm:$0xff]
        %v420 = vld [vmem:[%s294 + $0x128] sm:$0xff]
        %v421 = vld [vmem:[%s294 + $0x130] sm:$0xff]
        %v422 = vld [vmem:[%s294 + $0x138] sm:$0xff]
        %v423 = vld [vmem:[%s294 + $0x140] sm:$0xff]
        %v424 = vld [vmem:[%s294 + $0x148] sm:$0xff]
        %v425 = vld [vmem:[%s294 + $0x150] sm:$0xff]
        %v426 = vld [vmem:[%s294 + $0x158] sm:$0xff]
        %v427 = vld [vmem:[%s294 + $0x160] sm:$0xff]
        %v428 = vld [vmem:[%s294 + $0x168] sm:$0xff]
        %v429 = vld [vmem:[%s294 + $0x170] sm:$0xff]
        %v430 = vld [vmem:[%s294 + $0x178] sm:$0xff]
        %v431 = vld [vmem:[%s294 + $0x180] sm:$0xff]
        %v432 = vld [vmem:[%s294 + $0x188] sm:$0xff]
        %v433 = vld [vmem:[%s294 + $0x190] sm:$0xff]
        %v434 = vld [vmem:[%s294 + $0x198] sm:$0xff]
        %v435 = vld [vmem:[%s294 + $0x1a0] sm:$0xff]
        %v436 = vld [vmem:[%s294 + $0x1a8] sm:$0xff]
        %v437 = vld [vmem:[%s294 + $0x1b0] sm:$0xff]
        %v438 = vld [vmem:[%s294 + $0x1b8] sm:$0xff]
        %v439 = vld [vmem:[%s294 + $0x1c0] sm:$0xff]
        %v440 = vld [vmem:[%s294 + $0x1c8] sm:$0xff]
        %v441 = vld [vmem:[%s294 + $0x1d0] sm:$0xff]
        %v442 = vld [vmem:[%s294 + $0x1d8] sm:$0xff]
        %v443 = vld [vmem:[%s294 + $0x1e0] sm:$0xff]
        %v444 = vld [vmem:[%s294 + $0x1e8] sm:$0xff]
        %v445 = vld [vmem:[%s294 + $0x1f0] sm:$0xff]
        %v446 = vld [vmem:[%s294 + $0x1f8] sm:$0xff]
        %v447 = vld [vmem:[%s294 + $0x200] sm:$0xff]
        %v448 = vld [vmem:[%s294 + $0x208] sm:$0xff]
        %v449 = vld [vmem:[%s294 + $0x210] sm:$0xff]
        %v450 = vld [vmem:[%s294 + $0x218] sm:$0xff]
        %v451 = vld [vmem:[%s294 + $0x220] sm:$0xff]
        %v452 = vld [vmem:[%s294 + $0x228] sm:$0xff]
        %v453 = vld [vmem:[%s294 + $0x230] sm:$0xff]
        %v454 = vld [vmem:[%s294 + $0x238] sm:$0xff]
        %v455 = vld [vmem:[%s294 + $0x240] sm:$0xff]
        %v456 = vld [vmem:[%s294 + $0x248] sm:$0xff]
        %v457 = vld [vmem:[%s294 + $0x250] sm:$0xff]
        %v458 = vld [vmem:[%s294 + $0x258] sm:$0xff]
        %v459 = vld [vmem:[%s294 + $0x260] sm:$0xff]
        %v460 = vld [vmem:[%s294 + $0x268] sm:$0xff]
        %v461 = vld [vmem:[%s294 + $0x270] sm:$0xff]
        %v462 = vld [vmem:[%s294 + $0x278] sm:$0xff]
        %v463 = vld [vmem:[%s294 + $0x280] sm:$0xff]
        %v464 = vld [vmem:[%s294 + $0x288] sm:$0xff]
        %v465 = vld [vmem:[%s294 + $0x290] sm:$0xff]
        %v466 = vld [vmem:[%s294 + $0x298] sm:$0xff]
        %v467 = vld [vmem:[%s294 + $0x2a0] sm:$0xff]
        %v468 = vld [vmem:[%s294 + $0x2a8] sm:$0xff]
        %v469 = vld [vmem:[%s294 + $0x2b0] sm:$0xff]
        %v470 = vld [vmem:[%s294 + $0x2b8] sm:$0xff]
        %v471 = vld [vmem:[%s294 + $0x2c0] sm:$0xff]
        %v472 = vld [vmem:[%s294 + $0x2c8] sm:$0xff]
        %v473 = vld [vmem:[%s294 + $0x2d0] sm:$0xff]
        %v474 = vld [vmem:[%s294 + $0x2d8] sm:$0xff]
        %v475 = vld [vmem:[%s294 + $0x2e0] sm:$0xff]
        %v476 = vld [vmem:[%s294 + $0x2e8] sm:$0xff]
        %v477 = vld [vmem:[%s294 + $0x2f0] sm:$0xff]
        %v478 = vld [vmem:[%s294 + $0x2f8] sm:$0xff]
        %v479 = vld [vmem:[%s294 + $0x300] sm:$0xff]
        %v480 = vld [vmem:[%s294 + $0x308] sm:$0xff]
        %v481 = vld [vmem:[%s294 + $0x310] sm:$0xff]
        %v482 = vld [vmem:[%s294 + $0x318] sm:$0xff]
        %v483 = vld [vmem:[%s294 + $0x320] sm:$0xff]
        %v484 = vld [vmem:[%s294 + $0x328] sm:$0xff]
        %v485 = vld [vmem:[%s294 + $0x330] sm:$0xff]
        %v486 = vld [vmem:[%s294 + $0x338] sm:$0xff]
        %v487 = vld [vmem:[%s294 + $0x340] sm:$0xff]
        %v488 = vld [vmem:[%s294 + $0x348] sm:$0xff]
        %v489 = vld [vmem:[%s294 + $0x350] sm:$0xff]
        %v490 = vld [vmem:[%s294 + $0x358] sm:$0xff]
        %v491 = vld [vmem:[%s294 + $0x360] sm:$0xff]
        %v492 = vld [vmem:[%s294 + $0x368] sm:$0xff]
        %v493 = vld [vmem:[%s294 + $0x370] sm:$0xff]
        %v494 = vld [vmem:[%s294 + $0x378] sm:$0xff]
        %v495 = vld [vmem:[%s294 + $0x380] sm:$0xff]
        %v496 = vld [vmem:[%s294 + $0x388] sm:$0xff]
        %v497 = vld [vmem:[%s294 + $0x390] sm:$0xff]
        %v498 = vld [vmem:[%s294 + $0x398] sm:$0xff]
        %v499 = vld [vmem:[%s294 + $0x3a0] sm:$0xff]
        %v500 = vld [vmem:[%s294 + $0x3a8] sm:$0xff]
        %v501 = vld [vmem:[%s294 + $0x3b0] sm:$0xff]
        %v502 = vld [vmem:[%s294 + $0x3b8] sm:$0xff]
        %v503 = vld [vmem:[%s294 + $0x3c0] sm:$0xff]
        %v504 = vld [vmem:[%s294 + $0x3c8] sm:$0xff]
        %v505 = vld [vmem:[%s294 + $0x3d0] sm:$0xff]
        %v506 = vld [vmem:[%s294 + $0x3d8] sm:$0xff]
        %v507 = vld [vmem:[%s294 + $0x3e0] sm:$0xff]
        %v508 = vld [vmem:[%s294 + $0x3e8] sm:$0xff]
        %v509 = vld [vmem:[%s294 + $0x3f0] sm:$0xff]
        %v510 = vld [vmem:[%s294 + $0x3f8] sm:$0xff]
        %vm511 = vcmask 130048
        %v513 = vsel %vm511, %v303, 0
        %v516 = vsel %vm511, %v304, 0
        %v519 = vsel %vm511, %v305, 0
        %v522 = vsel %vm511, %v306, 0
        %v525 = vsel %vm511, %v307, 0
        %v528 = vsel %vm511, %v308, 0
        %v531 = vsel %vm511, %v309, 0
        %v534 = vsel %vm511, %v310, 0
        %536 = vmatprep.subr.mxu0 0.0
        %537 = vmatpush1.msra.mxu0 %v367
        %538 = vmatprep.subr.mxu0 0.0
        %539 = vmatpush1.msra.mxu0 %v368
        %540 = vmatprep.subr.mxu0 0.0
        %541 = vmatpush1.msra.mxu0 0.0
        %542 = vmatprep.subr.mxu0 0.0
        %543 = vmatpush1.msra.mxu0 0.0
        %544 = vmatprep.subr.mxu0 0.0
        %545 = vmatpush1.msra.mxu0 0.0
        %546 = vmatprep.subr.mxu0 0.0
        %547 = vmatpush1.msra.mxu0 0.0
        %548 = vmatprep.subr.mxu0 0.0
        %549 = vmatpush1.msra.mxu0 0.0
        %550 = vmatprep.subr.mxu0 0.0
        %551 = vmatpush1.msra.mxu0 0.0
        %552 = vmatprep.subr.mxu0 0.0
        %553 = vmatpush1.msra.mxu0 0.0
        %554 = vmatprep.subr.mxu0 0.0
        %555 = vmatpush1.msra.mxu0 0.0
        %556 = vmatprep.subr.mxu0 0.0
        %557 = vmatpush1.msra.mxu0 0.0
        %558 = vmatprep.subr.mxu0 0.0
        %559 = vmatpush1.msra.mxu0 0.0
        %560 = vmatprep.subr.mxu0 0.0
        %561 = vmatpush1.msra.mxu0 0.0
        %562 = vmatprep.subr.mxu0 0.0
        %563 = vmatpush1.msra.mxu0 0.0
        %564 = vmatprep.subr.mxu0 0.0
        %565 = vmatpush1.msra.mxu0 0.0
        %566 = vmatprep.subr.mxu0 0.0
        %567 = vmatpush1.msra.mxu0 0.0
        %568 = vmatprep.subr.mxu0 0.0
        %569 = vmatpush1.msra.mxu0 0.0
        %570 = vmatprep.subr.mxu0 0.0
        %571 = vmatpush1.msra.mxu0 0.0
        %572 = vmatprep.subr.mxu0 0.0
        %573 = vmatpush1.msra.mxu0 0.0
        %574 = vmatprep.subr.mxu0 0.0
        %575 = vmatpush1.msra.mxu0 0.0
        %576 = vmatprep.subr.mxu0 0.0
        %577 = vmatpush1.msra.mxu0 0.0
        %578 = vmatprep.subr.mxu0 0.0
        %579 = vmatpush1.msra.mxu0 0.0
        %580 = vmatprep.subr.mxu0 0.0
        %581 = vmatpush1.msra.mxu0 0.0
        %582 = vmatprep.subr.mxu0 0.0
        %583 = vmatpush1.msra.mxu0 0.0
        %584 = vmatprep.subr.mxu0 0.0
        %585 = vmatpush1.msra.mxu0 0.0
        %586 = vmatprep.subr.mxu0 0.0
        %587 = vmatpush1.msra.mxu0 0.0
        %588 = vmatprep.subr.mxu0 0.0
        %589 = vmatpush1.msra.mxu0 0.0
        %590 = vmatprep.subr.mxu0 0.0
        %591 = vmatpush1.msra.mxu0 0.0
        %592 = vmatprep.subr.mxu0 0.0
        %593 = vmatpush1.msra.mxu0 0.0
        %594 = vmatprep.subr.mxu0 0.0
        %595 = vmatpush1.msra.mxu0 0.0
        %596 = vmatprep.subr.mxu0 0.0
        %597 = vmatpush1.msra.mxu0 0.0
        %598 = vmatprep.subr.mxu0 0.0
        %599 = vmatpush1.msra.mxu0 0.0
        %600 = vmatprep.mubr.f32.mxu0 0.0
        %601 = vmatmul.mubr.f32.gmra.mrb[0].mxu0 %v513
        %v602 = vpop.f32.mrb[0].mxu0
        %v603 = vadd.f32 0.0, %v602
        %v604 = vpop.f32.mrb[0].mxu0
        %605 = vmatprep.mubr.f32.mxu0 0.0
        %606 = vmatmul.mubr.f32.gmra.mrb[0].mxu0 %v516
        %v607 = vpop.f32.mrb[0].mxu0
        %v608 = vadd.f32 0.0, %v607
        %v609 = vpop.f32.mrb[0].mxu0
        %610 = vmatprep.mubr.f32.mxu0 0.0
        %611 = vmatmul.mubr.f32.gmra.mrb[0].mxu0 %v519
        %v612 = vpop.f32.mrb[0].mxu0
        %v613 = vadd.f32 0.0, %v612
        %v614 = vpop.f32.mrb[0].mxu0
        %615 = vmatprep.mubr.f32.mxu0 0.0
        %616 = vmatmul.mubr.f32.gmra.mrb[0].mxu0 %v522
        %v617 = vpop.f32.mrb[0].mxu0
        %v618 = vadd.f32 0.0, %v617
        %v619 = vpop.f32.mrb[0].mxu0
        %620 = vmatprep.mubr.f32.mxu0 0.0
        %621 = vmatmul.mubr.f32.gmra.mrb[0].mxu0 %v525
        %v622 = vpop.f32.mrb[0].mxu0
        %v623 = vadd.f32 0.0, %v622
        %v624 = vpop.f32.mrb[0].mxu0
        %625 = vmatprep.mubr.f32.mxu0 0.0
        %626 = vmatmul.mubr.f32.gmra.mrb[0].mxu0 %v528
        %v627 = vpop.f32.mrb[0].mxu0
        %v628 = vadd.f32 0.0, %v627
        %v629 = vpop.f32.mrb[0].mxu0
        %630 = vmatprep.mubr.f32.mxu0 0.0
        %631 = vmatmul.mubr.f32.gmra.mrb[0].mxu0 %v531
        %v632 = vpop.f32.mrb[0].mxu0
        %v633 = vadd.f32 0.0, %v632
        %v634 = vpop.f32.mrb[0].mxu0
        %635 = vmatprep.mubr.f32.mxu0 0.0
        %636 = vmatmul.mubr.f32.gmra.mrb[0].mxu0 %v534
        %v637 = vpop.f32.mrb[0].mxu0
        %v638 = vadd.f32 0.0, %v637
        %v639 = vpop.f32.mrb[0].mxu0
        %640 = vdwg.mxu0
        %v642 = vsel %vm511, %v311, 0
        %v645 = vsel %vm511, %v312, 0
        %v648 = vsel %vm511, %v313, 0
        %v651 = vsel %vm511, %v314, 0
        %v654 = vsel %vm511, %v315, 0
        %v657 = vsel %vm511, %v316, 0
        %v660 = vsel %vm511, %v317, 0
        %v663 = vsel %vm511, %v318, 0
        %665 = vmatprep.subr.mxu0 0.0
        %666 = vmatpush1.msra.mxu0 %v369
        %667 = vmatprep.subr.mxu0 0.0
        %668 = vmatpush1.msra.mxu0 %v370
        %669 = vmatprep.subr.mxu0 0.0
        %670 = vmatpush1.msra.mxu0 0.0
        %671 = vmatprep.subr.mxu0 0.0
        %672 = vmatpush1.msra.mxu0 0.0
        %673 = vmatprep.subr.mxu0 0.0
        %674 = vmatpush1.msra.mxu0 0.0
        %675 = vmatprep.subr.mxu0 0.0
        %676 = vmatpush1.msra.mxu0 0.0
        %677 = vmatprep.subr.mxu0 0.0
        %678 = vmatpush1.msra.mxu0 0.0
        %679 = vmatprep.subr.mxu0 0.0
        %680 = vmatpush1.msra.mxu0 0.0
        %681 = vmatprep.subr.mxu0 0.0
        %682 = vmatpush1.msra.mxu0 0.0
        %683 = vmatprep.subr.mxu0 0.0
        %684 = vmatpush1.msra.mxu0 0.0
        %685 = vmatprep.subr.mxu0 0.0
        %686 = vmatpush1.msra.mxu0 0.0
        %687 = vmatprep.subr.mxu0 0.0
        %688 = vmatpush1.msra.mxu0 0.0
        %689 = vmatprep.subr.mxu0 0.0
        %690 = vmatpush1.msra.mxu0 0.0
        %691 = vmatprep.subr.mxu0 0.0
        %692 = vmatpush1.msra.mxu0 0.0
        %693 = vmatprep.subr.mxu0 0.0
        %694 = vmatpush1.msra.mxu0 0.0
        %695 = vmatprep.subr.mxu0 0.0
        %696 = vmatpush1.msra.mxu0 0.0
        %697 = vmatprep.subr.mxu0 0.0
        %698 = vmatpush1.msra.mxu0 0.0
        %699 = vmatprep.subr.mxu0 0.0
        %700 = vmatpush1.msra.mxu0 0.0
        %701 = vmatprep.subr.mxu0 0.0
        %702 = vmatpush1.msra.mxu0 0.0
        %703 = vmatprep.subr.mxu0 0.0
        %704 = vmatpush1.msra.mxu0 0.0
        %705 = vmatprep.subr.mxu0 0.0
        %706 = vmatpush1.msra.mxu0 0.0
        %707 = vmatprep.subr.mxu0 0.0
        %708 = vmatpush1.msra.mxu0 0.0
        %709 = vmatprep.subr.mxu0 0.0
        %710 = vmatpush1.msra.mxu0 0.0
        %711 = vmatprep.subr.mxu0 0.0
        %712 = vmatpush1.msra.mxu0 0.0
        %713 = vmatprep.subr.mxu0 0.0
        %714 = vmatpush1.msra.mxu0 0.0
        %715 = vmatprep.subr.mxu0 0.0
        %716 = vmatpush1.msra.mxu0 0.0
        %717 = vmatprep.subr.mxu0 0.0
        %718 = vmatpush1.msra.mxu0 0.0
        %719 = vmatprep.subr.mxu0 0.0
        %720 = vmatpush1.msra.mxu0 0.0
        %721 = vmatprep.subr.mxu0 0.0
        %722 = vmatpush1.msra.mxu0 0.0
        %723 = vmatprep.subr.mxu0 0.0
        %724 = vmatpush1.msra.mxu0 0.0
        %725 = vmatprep.subr.mxu0 0.0
        %726 = vmatpush1.msra.mxu0 0.0
        %727 = vmatprep.subr.mxu0 0.0
        %728 = vmatpush1.msra.mxu0 0.0
        %729 = vmatprep.mubr.f32.mxu0 0.0
        %730 = vmatmul.mubr.f32.gmra.mrb[0].mxu0 %v642
        %v731 = vpop.f32.mrb[0].mxu0
        %v732 = vadd.f32 0.0, %v731
        %v733 = vpop.f32.mrb[0].mxu0
        %734 = vmatprep.mubr.f32.mxu0 0.0
        %735 = vmatmul.mubr.f32.gmra.mrb[0].mxu0 %v645
        %v736 = vpop.f32.mrb[0].mxu0
        %v737 = vadd.f32 0.0, %v736
        %v738 = vpop.f32.mrb[0].mxu0
        %739 = vmatprep.mubr.f32.mxu0 0.0
        %740 = vmatmul.mubr.f32.gmra.mrb[0].mxu0 %v648
        %v741 = vpop.f32.mrb[0].mxu0
        %v742 = vadd.f32 0.0, %v741
        %v743 = vpop.f32.mrb[0].mxu0
        %744 = vmatprep.mubr.f32.mxu0 0.0
        %745 = vmatmul.mubr.f32.gmra.mrb[0].mxu0 %v651
        %v746 = vpop.f32.mrb[0].mxu0
        %v747 = vadd.f32 0.0, %v746
        %v748 = vpop.f32.mrb[0].mxu0
        %749 = vmatprep.mubr.f32.mxu0 0.0
        %750 = vmatmul.mubr.f32.gmra.mrb[0].mxu0 %v654
        %v751 = vpop.f32.mrb[0].mxu0
        %v752 = vadd.f32 0.0, %v751
        %v753 = vpop.f32.mrb[0].mxu0
        %754 = vmatprep.mubr.f32.mxu0 0.0
        %755 = vmatmul.mubr.f32.gmra.mrb[0].mxu0 %v657
        %v756 = vpop.f32.mrb[0].mxu0
        %v757 = vadd.f32 0.0, %v756
        %v758 = vpop.f32.mrb[0].mxu0
        %759 = vmatprep.mubr.f32.mxu0 0.0
        %760 = vmatmul.mubr.f32.gmra.mrb[0].mxu0 %v660
        %v761 = vpop.f32.mrb[0].mxu0
        %v762 = vadd.f32 0.0, %v761
        %v763 = vpop.f32.mrb[0].mxu0
        %764 = vmatprep.mubr.f32.mxu0 0.0
        %765 = vmatmul.mubr.f32.gmra.mrb[0].mxu0 %v663
        %v766 = vpop.f32.mrb[0].mxu0
        %v767 = vadd.f32 0.0, %v766
        %v768 = vpop.f32.mrb[0].mxu0
        %769 = vdwg.mxu0
        %v771 = vsel %vm511, %v319, 0
        %v774 = vsel %vm511, %v320, 0
        %v777 = vsel %vm511, %v321, 0
        %v780 = vsel %vm511, %v322, 0
        %v783 = vsel %vm511, %v323, 0
        %v786 = vsel %vm511, %v324, 0
        %v789 = vsel %vm511, %v325, 0
        %v792 = vsel %vm511, %v326, 0
        %794 = vmatprep.subr.mxu0 0.0
        %795 = vmatpush1.msra.mxu0 %v371
        %796 = vmatprep.subr.mxu0 0.0
        %797 = vmatpush1.msra.mxu0 %v372
        %798 = vmatprep.subr.mxu0 0.0
        %799 = vmatpush1.msra.mxu0 0.0
        %800 = vmatprep.subr.mxu0 0.0
        %801 = vmatpush1.msra.mxu0 0.0
        %802 = vmatprep.subr.mxu0 0.0
        %803 = vmatpush1.msra.mxu0 0.0
        %804 = vmatprep.subr.mxu0 0.0
        %805 = vmatpush1.msra.mxu0 0.0
        %806 = vmatprep.subr.mxu0 0.0
        %807 = vmatpush1.msra.mxu0 0.0
        %808 = vmatprep.subr.mxu0 0.0
        %809 = vmatpush1.msra.mxu0 0.0
        %810 = vmatprep.subr.mxu0 0.0
        %811 = vmatpush1.msra.mxu0 0.0
        %812 = vmatprep.subr.mxu0 0.0
        %813 = vmatpush1.msra.mxu0 0.0
        %814 = vmatprep.subr.mxu0 0.0
        %815 = vmatpush1.msra.mxu0 0.0
        %816 = vmatprep.subr.mxu0 0.0
        %817 = vmatpush1.msra.mxu0 0.0
        %818 = vmatprep.subr.mxu0 0.0
        %819 = vmatpush1.msra.mxu0 0.0
        %820 = vmatprep.subr.mxu0 0.0
        %821 = vmatpush1.msra.mxu0 0.0
        %822 = vmatprep.subr.mxu0 0.0
        %823 = vmatpush1.msra.mxu0 0.0
        %824 = vmatprep.subr.mxu0 0.0
        %825 = vmatpush1.msra.mxu0 0.0
        %826 = vmatprep.subr.mxu0 0.0
        %827 = vmatpush1.msra.mxu0 0.0
        %828 = vmatprep.subr.mxu0 0.0
        %829 = vmatpush1.msra.mxu0 0.0
        %830 = vmatprep.subr.mxu0 0.0
        %831 = vmatpush1.msra.mxu0 0.0
        %832 = vmatprep.subr.mxu0 0.0
        %833 = vmatpush1.msra.mxu0 0.0
        %834 = vmatprep.subr.mxu0 0.0
        %835 = vmatpush1.msra.mxu0 0.0
        %836 = vmatprep.subr.mxu0 0.0
        %837 = vmatpush1.msra.mxu0 0.0
        %838 = vmatprep.subr.mxu0 0.0
        %839 = vmatpush1.msra.mxu0 0.0
        %840 = vmatprep.subr.mxu0 0.0
        %841 = vmatpush1.msra.mxu0 0.0
        %842 = vmatprep.subr.mxu0 0.0
        %843 = vmatpush1.msra.mxu0 0.0
        %844 = vmatprep.subr.mxu0 0.0
        %845 = vmatpush1.msra.mxu0 0.0
        %846 = vmatprep.subr.mxu0 0.0
        %847 = vmatpush1.msra.mxu0 0.0
        %848 = vmatprep.subr.mxu0 0.0
        %849 = vmatpush1.msra.mxu0 0.0
        %850 = vmatprep.subr.mxu0 0.0
        %851 = vmatpush1.msra.mxu0 0.0
        %852 = vmatprep.subr.mxu0 0.0
        %853 = vmatpush1.msra.mxu0 0.0
        %854 = vmatprep.subr.mxu0 0.0
        %855 = vmatpush1.msra.mxu0 0.0
        %856 = vmatprep.subr.mxu0 0.0
        %857 = vmatpush1.msra.mxu0 0.0
        %858 = vmatprep.mubr.f32.mxu0 0.0
        %859 = vmatmul.mubr.f32.gmra.mrb[0].mxu0 %v771
        %v860 = vpop.f32.mrb[0].mxu0
        %v861 = vadd.f32 0.0, %v860
        %v862 = vpop.f32.mrb[0].mxu0
        %863 = vmatprep.mubr.f32.mxu0 0.0
        %864 = vmatmul.mubr.f32.gmra.mrb[0].mxu0 %v774
        %v865 = vpop.f32.mrb[0].mxu0
        %v866 = vadd.f32 0.0, %v865
        %v867 = vpop.f32.mrb[0].mxu0
        %868 = vmatprep.mubr.f32.mxu0 0.0
        %869 = vmatmul.mubr.f32.gmra.mrb[0].mxu0 %v777
        %v870 = vpop.f32.mrb[0].mxu0
        %v871 = vadd.f32 0.0, %v870
        %v872 = vpop.f32.mrb[0].mxu0
        %873 = vmatprep.mubr.f32.mxu0 0.0
        %874 = vmatmul.mubr.f32.gmra.mrb[0].mxu0 %v780
        %v875 = vpop.f32.mrb[0].mxu0
        %v876 = vadd.f32 0.0, %v875
        %v877 = vpop.f32.mrb[0].mxu0
        %878 = vmatprep.mubr.f32.mxu0 0.0
        %879 = vmatmul.mubr.f32.gmra.mrb[0].mxu0 %v783
        %v880 = vpop.f32.mrb[0].mxu0
        %v881 = vadd.f32 0.0, %v880
        %v882 = vpop.f32.mrb[0].mxu0
        %883 = vmatprep.mubr.f32.mxu0 0.0
        %884 = vmatmul.mubr.f32.gmra.mrb[0].mxu0 %v786
        %v885 = vpop.f32.mrb[0].mxu0
        %v886 = vadd.f32 0.0, %v885
        %v887 = vpop.f32.mrb[0].mxu0
        %888 = vmatprep.mubr.f32.mxu0 0.0
        %889 = vmatmul.mubr.f32.gmra.mrb[0].mxu0 %v789
        %v890 = vpop.f32.mrb[0].mxu0
        %v891 = vadd.f32 0.0, %v890
        %v892 = vpop.f32.mrb[0].mxu0
        %893 = vmatprep.mubr.f32.mxu0 0.0
        %894 = vmatmul.mubr.f32.gmra.mrb[0].mxu0 %v792
        %v895 = vpop.f32.mrb[0].mxu0
        %v896 = vadd.f32 0.0, %v895
        %v897 = vpop.f32.mrb[0].mxu0
        %898 = vdwg.mxu0
        %v900 = vsel %vm511, %v327, 0
        %v903 = vsel %vm511, %v328, 0
        %v906 = vsel %vm511, %v329, 0
        %v909 = vsel %vm511, %v330, 0
        %v912 = vsel %vm511, %v331, 0
        %v915 = vsel %vm511, %v332, 0
        %v918 = vsel %vm511, %v333, 0
        %v921 = vsel %vm511, %v334, 0
        %923 = vmatprep.subr.mxu0 0.0
        %924 = vmatpush1.msra.mxu0 %v373
        %925 = vmatprep.subr.mxu0 0.0
        %926 = vmatpush1.msra.mxu0 %v374
        %927 = vmatprep.subr.mxu0 0.0
        %928 = vmatpush1.msra.mxu0 0.0
        %929 = vmatprep.subr.mxu0 0.0
        %930 = vmatpush1.msra.mxu0 0.0
        %931 = vmatprep.subr.mxu0 0.0
        %932 = vmatpush1.msra.mxu0 0.0
        %933 = vmatprep.subr.mxu0 0.0
        %934 = vmatpush1.msra.mxu0 0.0
        %935 = vmatprep.subr.mxu0 0.0
        %936 = vmatpush1.msra.mxu0 0.0
        %937 = vmatprep.subr.mxu0 0.0
        %938 = vmatpush1.msra.mxu0 0.0
        %939 = vmatprep.subr.mxu0 0.0
        %940 = vmatpush1.msra.mxu0 0.0
        %941 = vmatprep.subr.mxu0 0.0
        %942 = vmatpush1.msra.mxu0 0.0
        %943 = vmatprep.subr.mxu0 0.0
        %944 = vmatpush1.msra.mxu0 0.0
        %945 = vmatprep.subr.mxu0 0.0
        %946 = vmatpush1.msra.mxu0 0.0
        %947 = vmatprep.subr.mxu0 0.0
        %948 = vmatpush1.msra.mxu0 0.0
        %949 = vmatprep.subr.mxu0 0.0
        %950 = vmatpush1.msra.mxu0 0.0
        %951 = vmatprep.subr.mxu0 0.0
        %952 = vmatpush1.msra.mxu0 0.0
        %953 = vmatprep.subr.mxu0 0.0
        %954 = vmatpush1.msra.mxu0 0.0
        %955 = vmatprep.subr.mxu0 0.0
        %956 = vmatpush1.msra.mxu0 0.0
        %957 = vmatprep.subr.mxu0 0.0
        %958 = vmatpush1.msra.mxu0 0.0
        %959 = vmatprep.subr.mxu0 0.0
        %960 = vmatpush1.msra.mxu0 0.0
        %961 = vmatprep.subr.mxu0 0.0
        %962 = vmatpush1.msra.mxu0 0.0
        %963 = vmatprep.subr.mxu0 0.0
        %964 = vmatpush1.msra.mxu0 0.0
        %965 = vmatprep.subr.mxu0 0.0
        %966 = vmatpush1.msra.mxu0 0.0
        %967 = vmatprep.subr.mxu0 0.0
        %968 = vmatpush1.msra.mxu0 0.0
        %969 = vmatprep.subr.mxu0 0.0
        %970 = vmatpush1.msra.mxu0 0.0
        %971 = vmatprep.subr.mxu0 0.0
        %972 = vmatpush1.msra.mxu0 0.0
        %973 = vmatprep.subr.mxu0 0.0
        %974 = vmatpush1.msra.mxu0 0.0
        %975 = vmatprep.subr.mxu0 0.0
        %976 = vmatpush1.msra.mxu0 0.0
        %977 = vmatprep.subr.mxu0 0.0
        %978 = vmatpush1.msra.mxu0 0.0
        %979 = vmatprep.subr.mxu0 0.0
        %980 = vmatpush1.msra.mxu0 0.0
        %981 = vmatprep.subr.mxu0 0.0
        %982 = vmatpush1.msra.mxu0 0.0
        %983 = vmatprep.subr.mxu0 0.0
        %984 = vmatpush1.msra.mxu0 0.0
        %985 = vmatprep.subr.mxu0 0.0
        %986 = vmatpush1.msra.mxu0 0.0
        %987 = vmatprep.mubr.f32.mxu0 0.0
        %988 = vmatmul.mubr.f32.gmra.mrb[0].mxu0 %v900
        %v989 = vpop.f32.mrb[0].mxu0
        %v990 = vadd.f32 0.0, %v989
        %v991 = vpop.f32.mrb[0].mxu0
        %992 = vmatprep.mubr.f32.mxu0 0.0
        %993 = vmatmul.mubr.f32.gmra.mrb[0].mxu0 %v903
        %v994 = vpop.f32.mrb[0].mxu0
        %v995 = vadd.f32 0.0, %v994
        %v996 = vpop.f32.mrb[0].mxu0
        %997 = vmatprep.mubr.f32.mxu0 0.0
        %998 = vmatmul.mubr.f32.gmra.mrb[0].mxu0 %v906
        %v999 = vpop.f32.mrb[0].mxu0
        %v1000 = vadd.f32 0.0, %v999
        %v1001 = vpop.f32.mrb[0].mxu0
        %1002 = vmatprep.mubr.f32.mxu0 0.0
        %1003 = vmatmul.mubr.f32.gmra.mrb[0].mxu0 %v909
        %v1004 = vpop.f32.mrb[0].mxu0
        %v1005 = vadd.f32 0.0, %v1004
        %v1006 = vpop.f32.mrb[0].mxu0
        %1007 = vmatprep.mubr.f32.mxu0 0.0
        %1008 = vmatmul.mubr.f32.gmra.mrb[0].mxu0 %v912
        %v1009 = vpop.f32.mrb[0].mxu0
        %v1010 = vadd.f32 0.0, %v1009
        %v1011 = vpop.f32.mrb[0].mxu0
        %1012 = vmatprep.mubr.f32.mxu0 0.0
        %1013 = vmatmul.mubr.f32.gmra.mrb[0].mxu0 %v915
        %v1014 = vpop.f32.mrb[0].mxu0
        %v1015 = vadd.f32 0.0, %v1014
        %v1016 = vpop.f32.mrb[0].mxu0
        %1017 = vmatprep.mubr.f32.mxu0 0.0
        %1018 = vmatmul.mubr.f32.gmra.mrb[0].mxu0 %v918
        %v1019 = vpop.f32.mrb[0].mxu0
        %v1020 = vadd.f32 0.0, %v1019
        %v1021 = vpop.f32.mrb[0].mxu0
        %1022 = vmatprep.mubr.f32.mxu0 0.0
        %1023 = vmatmul.mubr.f32.gmra.mrb[0].mxu0 %v921
        %v1024 = vpop.f32.mrb[0].mxu0
        %v1025 = vadd.f32 0.0, %v1024
        %v1026 = vpop.f32.mrb[0].mxu0
        %1027 = vdwg.mxu0
        %v1029 = vsel %vm511, %v335, 0
        %v1032 = vsel %vm511, %v336, 0
        %v1035 = vsel %vm511, %v337, 0
        %v1038 = vsel %vm511, %v338, 0
        %v1041 = vsel %vm511, %v339, 0
        %v1044 = vsel %vm511, %v340, 0
        %v1047 = vsel %vm511, %v341, 0
        %v1050 = vsel %vm511, %v342, 0
        %1052 = vmatprep.subr.mxu0 0.0
        %1053 = vmatpush1.msra.mxu0 %v375
        %1054 = vmatprep.subr.mxu0 0.0
        %1055 = vmatpush1.msra.mxu0 %v376
        %1056 = vmatprep.subr.mxu0 0.0
        %1057 = vmatpush1.msra.mxu0 0.0
        %1058 = vmatprep.subr.mxu0 0.0
        %1059 = vmatpush1.msra.mxu0 0.0
        %1060 = vmatprep.subr.mxu0 0.0
        %1061 = vmatpush1.msra.mxu0 0.0
        %1062 = vmatprep.subr.mxu0 0.0
        %1063 = vmatpush1.msra.mxu0 0.0
        %1064 = vmatprep.subr.mxu0 0.0
        %1065 = vmatpush1.msra.mxu0 0.0
        %1066 = vmatprep.subr.mxu0 0.0
        %1067 = vmatpush1.msra.mxu0 0.0
        %1068 = vmatprep.subr.mxu0 0.0
        %1069 = vmatpush1.msra.mxu0 0.0
        %1070 = vmatprep.subr.mxu0 0.0
        %1071 = vmatpush1.msra.mxu0 0.0
        %1072 = vmatprep.subr.mxu0 0.0
        %1073 = vmatpush1.msra.mxu0 0.0
        %1074 = vmatprep.subr.mxu0 0.0
        %1075 = vmatpush1.msra.mxu0 0.0
        %1076 = vmatprep.subr.mxu0 0.0
        %1077 = vmatpush1.msra.mxu0 0.0
        %1078 = vmatprep.subr.mxu0 0.0
        %1079 = vmatpush1.msra.mxu0 0.0
        %1080 = vmatprep.subr.mxu0 0.0
        %1081 = vmatpush1.msra.mxu0 0.0
        %1082 = vmatprep.subr.mxu0 0.0
        %1083 = vmatpush1.msra.mxu0 0.0
        %1084 = vmatprep.subr.mxu0 0.0
        %1085 = vmatpush1.msra.mxu0 0.0
        %1086 = vmatprep.subr.mxu0 0.0
        %1087 = vmatpush1.msra.mxu0 0.0
        %1088 = vmatprep.subr.mxu0 0.0
        %1089 = vmatpush1.msra.mxu0 0.0
        %1090 = vmatprep.subr.mxu0 0.0
        %1091 = vmatpush1.msra.mxu0 0.0
        %1092 = vmatprep.subr.mxu0 0.0
        %1093 = vmatpush1.msra.mxu0 0.0
        %1094 = vmatprep.subr.mxu0 0.0
        %1095 = vmatpush1.msra.mxu0 0.0
        %1096 = vmatprep.subr.mxu0 0.0
        %1097 = vmatpush1.msra.mxu0 0.0
        %1098 = vmatprep.subr.mxu0 0.0
        %1099 = vmatpush1.msra.mxu0 0.0
        %1100 = vmatprep.subr.mxu0 0.0
        %1101 = vmatpush1.msra.mxu0 0.0
        %1102 = vmatprep.subr.mxu0 0.0
        %1103 = vmatpush1.msra.mxu0 0.0
        %1104 = vmatprep.subr.mxu0 0.0
        %1105 = vmatpush1.msra.mxu0 0.0
        %1106 = vmatprep.subr.mxu0 0.0
        %1107 = vmatpush1.msra.mxu0 0.0
        %1108 = vmatprep.subr.mxu0 0.0
        %1109 = vmatpush1.msra.mxu0 0.0
        %1110 = vmatprep.subr.mxu0 0.0
        %1111 = vmatpush1.msra.mxu0 0.0
        %1112 = vmatprep.subr.mxu0 0.0
        %1113 = vmatpush1.msra.mxu0 0.0
        %1114 = vmatprep.subr.mxu0 0.0
        %1115 = vmatpush1.msra.mxu0 0.0
        %1116 = vmatprep.mubr.f32.mxu0 0.0
        %1117 = vmatmul.mubr.f32.gmra.mrb[0].mxu0 %v1029
        %v1118 = vpop.f32.mrb[0].mxu0
        %v1119 = vadd.f32 0.0, %v1118
        %v1120 = vpop.f32.mrb[0].mxu0
        %1121 = vmatprep.mubr.f32.mxu0 0.0
        %1122 = vmatmul.mubr.f32.gmra.mrb[0].mxu0 %v1032
        %v1123 = vpop.f32.mrb[0].mxu0
        %v1124 = vadd.f32 0.0, %v1123
        %v1125 = vpop.f32.mrb[0].mxu0
        %1126 = vmatprep.mubr.f32.mxu0 0.0
        %1127 = vmatmul.mubr.f32.gmra.mrb[0].mxu0 %v1035
        %v1128 = vpop.f32.mrb[0].mxu0
        %v1129 = vadd.f32 0.0, %v1128
        %v1130 = vpop.f32.mrb[0].mxu0
        %1131 = vmatprep.mubr.f32.mxu0 0.0
        %1132 = vmatmul.mubr.f32.gmra.mrb[0].mxu0 %v1038
        %v1133 = vpop.f32.mrb[0].mxu0
        %v1134 = vadd.f32 0.0, %v1133
        %v1135 = vpop.f32.mrb[0].mxu0
        %1136 = vmatprep.mubr.f32.mxu0 0.0
        %1137 = vmatmul.mubr.f32.gmra.mrb[0].mxu0 %v1041
        %v1138 = vpop.f32.mrb[0].mxu0
        %v1139 = vadd.f32 0.0, %v1138
        %v1140 = vpop.f32.mrb[0].mxu0
        %1141 = vmatprep.mubr.f32.mxu0 0.0
        %1142 = vmatmul.mubr.f32.gmra.mrb[0].mxu0 %v1044
        %v1143 = vpop.f32.mrb[0].mxu0
        %v1144 = vadd.f32 0.0, %v1143
        %v1145 = vpop.f32.mrb[0].mxu0
        %1146 = vmatprep.mubr.f32.mxu0 0.0
        %1147 = vmatmul.mubr.f32.gmra.mrb[0].mxu0 %v1047
        %v1148 = vpop.f32.mrb[0].mxu0
        %v1149 = vadd.f32 0.0, %v1148
        %v1150 = vpop.f32.mrb[0].mxu0
        %1151 = vmatprep.mubr.f32.mxu0 0.0
        %1152 = vmatmul.mubr.f32.gmra.mrb[0].mxu0 %v1050
        %v1153 = vpop.f32.mrb[0].mxu0
        %v1154 = vadd.f32 0.0, %v1153
        %v1155 = vpop.f32.mrb[0].mxu0
        %1156 = vdwg.mxu0
        %v1158 = vsel %vm511, %v343, 0
        %v1161 = vsel %vm511, %v344, 0
        %v1164 = vsel %vm511, %v345, 0
        %v1167 = vsel %vm511, %v346, 0
        %v1170 = vsel %vm511, %v347, 0
        %v1173 = vsel %vm511, %v348, 0
        %v1176 = vsel %vm511, %v349, 0
        %v1179 = vsel %vm511, %v350, 0
        %1181 = vmatprep.subr.mxu0 0.0
        %1182 = vmatpush1.msra.mxu0 %v377
        %1183 = vmatprep.subr.mxu0 0.0
        %1184 = vmatpush1.msra.mxu0 %v378
        %1185 = vmatprep.subr.mxu0 0.0
        %1186 = vmatpush1.msra.mxu0 0.0
        %1187 = vmatprep.subr.mxu0 0.0
        %1188 = vmatpush1.msra.mxu0 0.0
        %1189 = vmatprep.subr.mxu0 0.0
        %1190 = vmatpush1.msra.mxu0 0.0
        %1191 = vmatprep.subr.mxu0 0.0
        %1192 = vmatpush1.msra.mxu0 0.0
        %1193 = vmatprep.subr.mxu0 0.0
        %1194 = vmatpush1.msra.mxu0 0.0
        %1195 = vmatprep.subr.mxu0 0.0
        %1196 = vmatpush1.msra.mxu0 0.0
        %1197 = vmatprep.subr.mxu0 0.0
        %1198 = vmatpush1.msra.mxu0 0.0
        %1199 = vmatprep.subr.mxu0 0.0
        %1200 = vmatpush1.msra.mxu0 0.0
        %1201 = vmatprep.subr.mxu0 0.0
        %1202 = vmatpush1.msra.mxu0 0.0
        %1203 = vmatprep.subr.mxu0 0.0
        %1204 = vmatpush1.msra.mxu0 0.0
        %1205 = vmatprep.subr.mxu0 0.0
        %1206 = vmatpush1.msra.mxu0 0.0
        %1207 = vmatprep.subr.mxu0 0.0
        %1208 = vmatpush1.msra.mxu0 0.0
        %1209 = vmatprep.subr.mxu0 0.0
        %1210 = vmatpush1.msra.mxu0 0.0
        %1211 = vmatprep.subr.mxu0 0.0
        %1212 = vmatpush1.msra.mxu0 0.0
        %1213 = vmatprep.subr.mxu0 0.0
        %1214 = vmatpush1.msra.mxu0 0.0
        %1215 = vmatprep.subr.mxu0 0.0
        %1216 = vmatpush1.msra.mxu0 0.0
        %1217 = vmatprep.subr.mxu0 0.0
        %1218 = vmatpush1.msra.mxu0 0.0
        %1219 = vmatprep.subr.mxu0 0.0
        %1220 = vmatpush1.msra.mxu0 0.0
        %1221 = vmatprep.subr.mxu0 0.0
        %1222 = vmatpush1.msra.mxu0 0.0
        %1223 = vmatprep.subr.mxu0 0.0
        %1224 = vmatpush1.msra.mxu0 0.0
        %1225 = vmatprep.subr.mxu0 0.0
        %1226 = vmatpush1.msra.mxu0 0.0
        %1227 = vmatprep.subr.mxu0 0.0
        %1228 = vmatpush1.msra.mxu0 0.0
        %1229 = vmatprep.subr.mxu0 0.0
        %1230 = vmatpush1.msra.mxu0 0.0
        %1231 = vmatprep.subr.mxu0 0.0
        %1232 = vmatpush1.msra.mxu0 0.0
        %1233 = vmatprep.subr.mxu0 0.0
        %1234 = vmatpush1.msra.mxu0 0.0
        %1235 = vmatprep.subr.mxu0 0.0
        %1236 = vmatpush1.msra.mxu0 0.0
        %1237 = vmatprep.subr.mxu0 0.0
        %1238 = vmatpush1.msra.mxu0 0.0
        %1239 = vmatprep.subr.mxu0 0.0
        %1240 = vmatpush1.msra.mxu0 0.0
        %1241 = vmatprep.subr.mxu0 0.0
        %1242 = vmatpush1.msra.mxu0 0.0
        %1243 = vmatprep.subr.mxu0 0.0
        %1244 = vmatpush1.msra.mxu0 0.0
        %1245 = vmatprep.mubr.f32.mxu0 0.0
        %1246 = vmatmul.mubr.f32.gmra.mrb[0].mxu0 %v1158
        %v1247 = vpop.f32.mrb[0].mxu0
        %v1248 = vadd.f32 0.0, %v1247
        %v1249 = vpop.f32.mrb[0].mxu0
        %1250 = vmatprep.mubr.f32.mxu0 0.0
        %1251 = vmatmul.mubr.f32.gmra.mrb[0].mxu0 %v1161
        %v1252 = vpop.f32.mrb[0].mxu0
        %v1253 = vadd.f32 0.0, %v1252
        %v1254 = vpop.f32.mrb[0].mxu0
        %1255 = vmatprep.mubr.f32.mxu0 0.0
        %1256 = vmatmul.mubr.f32.gmra.mrb[0].mxu0 %v1164
        %v1257 = vpop.f32.mrb[0].mxu0
        %v1258 = vadd.f32 0.0, %v1257
        %v1259 = vpop.f32.mrb[0].mxu0
        %1260 = vmatprep.mubr.f32.mxu0 0.0
        %1261 = vmatmul.mubr.f32.gmra.mrb[0].mxu0 %v1167
        %v1262 = vpop.f32.mrb[0].mxu0
        %v1263 = vadd.f32 0.0, %v1262
        %v1264 = vpop.f32.mrb[0].mxu0
        %1265 = vmatprep.mubr.f32.mxu0 0.0
        %1266 = vmatmul.mubr.f32.gmra.mrb[0].mxu0 %v1170
        %v1267 = vpop.f32.mrb[0].mxu0
        %v1268 = vadd.f32 0.0, %v1267
        %v1269 = vpop.f32.mrb[0].mxu0
        %1270 = vmatprep.mubr.f32.mxu0 0.0
        %1271 = vmatmul.mubr.f32.gmra.mrb[0].mxu0 %v1173
        %v1272 = vpop.f32.mrb[0].mxu0
        %v1273 = vadd.f32 0.0, %v1272
        %v1274 = vpop.f32.mrb[0].mxu0
        %1275 = vmatprep.mubr.f32.mxu0 0.0
        %1276 = vmatmul.mubr.f32.gmra.mrb[0].mxu0 %v1176
        %v1277 = vpop.f32.mrb[0].mxu0
        %v1278 = vadd.f32 0.0, %v1277
        %v1279 = vpop.f32.mrb[0].mxu0
        %1280 = vmatprep.mubr.f32.mxu0 0.0
        %1281 = vmatmul.mubr.f32.gmra.mrb[0].mxu0 %v1179
        %v1282 = vpop.f32.mrb[0].mxu0
        %v1283 = vadd.f32 0.0, %v1282
        %v1284 = vpop.f32.mrb[0].mxu0
        %1285 = vdwg.mxu0
        %v1287 = vsel %vm511, %v351, 0
        %v1290 = vsel %vm511, %v352, 0
        %v1293 = vsel %vm511, %v353, 0
        %v1296 = vsel %vm511, %v354, 0
        %v1299 = vsel %vm511, %v355, 0
        %v1302 = vsel %vm511, %v356, 0
        %v1305 = vsel %vm511, %v357, 0
        %v1308 = vsel %vm511, %v358, 0
        %1310 = vmatprep.subr.mxu0 0.0
        %1311 = vmatpush1.msra.mxu0 %v379
        %1312 = vmatprep.subr.mxu0 0.0
        %1313 = vmatpush1.msra.mxu0 %v380
        %1314 = vmatprep.subr.mxu0 0.0
        %1315 = vmatpush1.msra.mxu0 0.0
        %1316 = vmatprep.subr.mxu0 0.0
        %1317 = vmatpush1.msra.mxu0 0.0
        %1318 = vmatprep.subr.mxu0 0.0
        %1319 = vmatpush1.msra.mxu0 0.0
        %1320 = vmatprep.subr.mxu0 0.0
        %1321 = vmatpush1.msra.mxu0 0.0
        %1322 = vmatprep.subr.mxu0 0.0
        %1323 = vmatpush1.msra.mxu0 0.0
        %1324 = vmatprep.subr.mxu0 0.0
        %1325 = vmatpush1.msra.mxu0 0.0
        %1326 = vmatprep.subr.mxu0 0.0
        %1327 = vmatpush1.msra.mxu0 0.0
        %1328 = vmatprep.subr.mxu0 0.0
        %1329 = vmatpush1.msra.mxu0 0.0
        %1330 = vmatprep.subr.mxu0 0.0
        %1331 = vmatpush1.msra.mxu0 0.0
        %1332 = vmatprep.subr.mxu0 0.0
        %1333 = vmatpush1.msra.mxu0 0.0
        %1334 = vmatprep.subr.mxu0 0.0
        %1335 = vmatpush1.msra.mxu0 0.0
        %1336 = vmatprep.subr.mxu0 0.0
        %1337 = vmatpush1.msra.mxu0 0.0
        %1338 = vmatprep.subr.mxu0 0.0
        %1339 = vmatpush1.msra.mxu0 0.0
        %1340 = vmatprep.subr.mxu0 0.0
        %1341 = vmatpush1.msra.mxu0 0.0
        %1342 = vmatprep.subr.mxu0 0.0
        %1343 = vmatpush1.msra.mxu0 0.0
        %1344 = vmatprep.subr.mxu0 0.0
        %1345 = vmatpush1.msra.mxu0 0.0
        %1346 = vmatprep.subr.mxu0 0.0
        %1347 = vmatpush1.msra.mxu0 0.0
        %1348 = vmatprep.subr.mxu0 0.0
        %1349 = vmatpush1.msra.mxu0 0.0
        %1350 = vmatprep.subr.mxu0 0.0
        %1351 = vmatpush1.msra.mxu0 0.0
        %1352 = vmatprep.subr.mxu0 0.0
        %1353 = vmatpush1.msra.mxu0 0.0
        %1354 = vmatprep.subr.mxu0 0.0
        %1355 = vmatpush1.msra.mxu0 0.0
        %1356 = vmatprep.subr.mxu0 0.0
        %1357 = vmatpush1.msra.mxu0 0.0
        %1358 = vmatprep.subr.mxu0 0.0
        %1359 = vmatpush1.msra.mxu0 0.0
        %1360 = vmatprep.subr.mxu0 0.0
        %1361 = vmatpush1.msra.mxu0 0.0
        %1362 = vmatprep.subr.mxu0 0.0
        %1363 = vmatpush1.msra.mxu0 0.0
        %1364 = vmatprep.subr.mxu0 0.0
        %1365 = vmatpush1.msra.mxu0 0.0
        %1366 = vmatprep.subr.mxu0 0.0
        %1367 = vmatpush1.msra.mxu0 0.0
        %1368 = vmatprep.subr.mxu0 0.0
        %1369 = vmatpush1.msra.mxu0 0.0
        %1370 = vmatprep.subr.mxu0 0.0
        %1371 = vmatpush1.msra.mxu0 0.0
        %1372 = vmatprep.subr.mxu0 0.0
        %1373 = vmatpush1.msra.mxu0 0.0
        %1374 = vmatprep.mubr.f32.mxu0 0.0
        %1375 = vmatmul.mubr.f32.gmra.mrb[0].mxu0 %v1287
        %v1376 = vpop.f32.mrb[0].mxu0
        %v1377 = vadd.f32 0.0, %v1376
        %v1378 = vpop.f32.mrb[0].mxu0
        %1379 = vmatprep.mubr.f32.mxu0 0.0
        %1380 = vmatmul.mubr.f32.gmra.mrb[0].mxu0 %v1290
        %v1381 = vpop.f32.mrb[0].mxu0
        %v1382 = vadd.f32 0.0, %v1381
        %v1383 = vpop.f32.mrb[0].mxu0
        %1384 = vmatprep.mubr.f32.mxu0 0.0
        %1385 = vmatmul.mubr.f32.gmra.mrb[0].mxu0 %v1293
        %v1386 = vpop.f32.mrb[0].mxu0
        %v1387 = vadd.f32 0.0, %v1386
        %v1388 = vpop.f32.mrb[0].mxu0
        %1389 = vmatprep.mubr.f32.mxu0 0.0
        %1390 = vmatmul.mubr.f32.gmra.mrb[0].mxu0 %v1296
        %v1391 = vpop.f32.mrb[0].mxu0
        %v1392 = vadd.f32 0.0, %v1391
        %v1393 = vpop.f32.mrb[0].mxu0
        %1394 = vmatprep.mubr.f32.mxu0 0.0
        %1395 = vmatmul.mubr.f32.gmra.mrb[0].mxu0 %v1299
        %v1396 = vpop.f32.mrb[0].mxu0
        %v1397 = vadd.f32 0.0, %v1396
        %v1398 = vpop.f32.mrb[0].mxu0
        %1399 = vmatprep.mubr.f32.mxu0 0.0
        %1400 = vmatmul.mubr.f32.gmra.mrb[0].mxu0 %v1302
        %v1401 = vpop.f32.mrb[0].mxu0
        %v1402 = vadd.f32 0.0, %v1401
        %v1403 = vpop.f32.mrb[0].mxu0
        %1404 = vmatprep.mubr.f32.mxu0 0.0
        %1405 = vmatmul.mubr.f32.gmra.mrb[0].mxu0 %v1305
        %v1406 = vpop.f32.mrb[0].mxu0
        %v1407 = vadd.f32 0.0, %v1406
        %v1408 = vpop.f32.mrb[0].mxu0
        %1409 = vmatprep.mubr.f32.mxu0 0.0
        %1410 = vmatmul.mubr.f32.gmra.mrb[0].mxu0 %v1308
        %v1411 = vpop.f32.mrb[0].mxu0
        %v1412 = vadd.f32 0.0, %v1411
        %v1413 = vpop.f32.mrb[0].mxu0
        %1414 = vdwg.mxu0
        %v1416 = vsel %vm511, %v359, 0
        %v1419 = vsel %vm511, %v360, 0
        %v1422 = vsel %vm511, %v361, 0
        %v1425 = vsel %vm511, %v362, 0
        %v1428 = vsel %vm511, %v363, 0
        %v1431 = vsel %vm511, %v364, 0
        %v1434 = vsel %vm511, %v365, 0
        %v1437 = vsel %vm511, %v366, 0
        %1439 = vmatprep.subr.mxu0 0.0
        %1440 = vmatpush1.msra.mxu0 %v381
        %1441 = vmatprep.subr.mxu0 0.0
        %1442 = vmatpush1.msra.mxu0 %v382
        %1443 = vmatprep.subr.mxu0 0.0
        %1444 = vmatpush1.msra.mxu0 0.0
        %1445 = vmatprep.subr.mxu0 0.0
        %1446 = vmatpush1.msra.mxu0 0.0
        %1447 = vmatprep.subr.mxu0 0.0
        %1448 = vmatpush1.msra.mxu0 0.0
        %1449 = vmatprep.subr.mxu0 0.0
        %1450 = vmatpush1.msra.mxu0 0.0
        %1451 = vmatprep.subr.mxu0 0.0
        %1452 = vmatpush1.msra.mxu0 0.0
        %1453 = vmatprep.subr.mxu0 0.0
        %1454 = vmatpush1.msra.mxu0 0.0
        %1455 = vmatprep.subr.mxu0 0.0
        %1456 = vmatpush1.msra.mxu0 0.0
        %1457 = vmatprep.subr.mxu0 0.0
        %1458 = vmatpush1.msra.mxu0 0.0
        %1459 = vmatprep.subr.mxu0 0.0
        %1460 = vmatpush1.msra.mxu0 0.0
        %1461 = vmatprep.subr.mxu0 0.0
        %1462 = vmatpush1.msra.mxu0 0.0
        %1463 = vmatprep.subr.mxu0 0.0
        %1464 = vmatpush1.msra.mxu0 0.0
        %1465 = vmatprep.subr.mxu0 0.0
        %1466 = vmatpush1.msra.mxu0 0.0
        %1467 = vmatprep.subr.mxu0 0.0
        %1468 = vmatpush1.msra.mxu0 0.0
        %1469 = vmatprep.subr.mxu0 0.0
        %1470 = vmatpush1.msra.mxu0 0.0
        %1471 = vmatprep.subr.mxu0 0.0
        %1472 = vmatpush1.msra.mxu0 0.0
        %1473 = vmatprep.subr.mxu0 0.0
        %1474 = vmatpush1.msra.mxu0 0.0
        %1475 = vmatprep.subr.mxu0 0.0
        %1476 = vmatpush1.msra.mxu0 0.0
        %1477 = vmatprep.subr.mxu0 0.0
        %1478 = vmatpush1.msra.mxu0 0.0
        %1479 = vmatprep.subr.mxu0 0.0
        %1480 = vmatpush1.msra.mxu0 0.0
        %1481 = vmatprep.subr.mxu0 0.0
        %1482 = vmatpush1.msra.mxu0 0.0
        %1483 = vmatprep.subr.mxu0 0.0
        %1484 = vmatpush1.msra.mxu0 0.0
        %1485 = vmatprep.subr.mxu0 0.0
        %1486 = vmatpush1.msra.mxu0 0.0
        %1487 = vmatprep.subr.mxu0 0.0
        %1488 = vmatpush1.msra.mxu0 0.0
        %1489 = vmatprep.subr.mxu0 0.0
        %1490 = vmatpush1.msra.mxu0 0.0
        %1491 = vmatprep.subr.mxu0 0.0
        %1492 = vmatpush1.msra.mxu0 0.0
        %1493 = vmatprep.subr.mxu0 0.0
        %1494 = vmatpush1.msra.mxu0 0.0
        %1495 = vmatprep.subr.mxu0 0.0
        %1496 = vmatpush1.msra.mxu0 0.0
        %1497 = vmatprep.subr.mxu0 0.0
        %1498 = vmatpush1.msra.mxu0 0.0
        %1499 = vmatprep.subr.mxu0 0.0
        %1500 = vmatpush1.msra.mxu0 0.0
        %1501 = vmatprep.subr.mxu0 0.0
        %1502 = vmatpush1.msra.mxu0 0.0
        %1503 = vmatprep.mubr.f32.mxu0 0.0
        %1504 = vmatmul.mubr.f32.gmra.mrb[0].mxu0 %v1416
        %v1505 = vpop.f32.mrb[0].mxu0
        %v1506 = vadd.f32 0.0, %v1505
        %v1507 = vpop.f32.mrb[0].mxu0
        %1508 = vmatprep.mubr.f32.mxu0 0.0
        %1509 = vmatmul.mubr.f32.gmra.mrb[0].mxu0 %v1419
        %v1510 = vpop.f32.mrb[0].mxu0
        %v1511 = vadd.f32 0.0, %v1510
        %v1512 = vpop.f32.mrb[0].mxu0
        %1513 = vmatprep.mubr.f32.mxu0 0.0
        %1514 = vmatmul.mubr.f32.gmra.mrb[0].mxu0 %v1422
        %v1515 = vpop.f32.mrb[0].mxu0
        %v1516 = vadd.f32 0.0, %v1515
        %v1517 = vpop.f32.mrb[0].mxu0
        %1518 = vmatprep.mubr.f32.mxu0 0.0
        %1519 = vmatmul.mubr.f32.gmra.mrb[0].mxu0 %v1425
        %v1520 = vpop.f32.mrb[0].mxu0
        %v1521 = vadd.f32 0.0, %v1520
        %v1522 = vpop.f32.mrb[0].mxu0
        %1523 = vmatprep.mubr.f32.mxu0 0.0
        %1524 = vmatmul.mubr.f32.gmra.mrb[0].mxu0 %v1428
        %v1525 = vpop.f32.mrb[0].mxu0
        %v1526 = vadd.f32 0.0, %v1525
        %v1527 = vpop.f32.mrb[0].mxu0
        %1528 = vmatprep.mubr.f32.mxu0 0.0
        %1529 = vmatmul.mubr.f32.gmra.mrb[0].mxu0 %v1431
        %v1530 = vpop.f32.mrb[0].mxu0
        %v1531 = vadd.f32 0.0, %v1530
        %v1532 = vpop.f32.mrb[0].mxu0
        %1533 = vmatprep.mubr.f32.mxu0 0.0
        %1534 = vmatmul.mubr.f32.gmra.mrb[0].mxu0 %v1434
        %v1535 = vpop.f32.mrb[0].mxu0
        %v1536 = vadd.f32 0.0, %v1535
        %v1537 = vpop.f32.mrb[0].mxu0
        %1538 = vmatprep.mubr.f32.mxu0 0.0
        %1539 = vmatmul.mubr.f32.gmra.mrb[0].mxu0 %v1437
        %v1540 = vpop.f32.mrb[0].mxu0
        %v1541 = vadd.f32 0.0, %v1540
        %v1542 = vpop.f32.mrb[0].mxu0
        %1543 = vdwg.mxu0
        %v1544 = vmul.f32 %v603, 0.25
        %v1545 = vmul.f32 %v608, 0.25
        %v1546 = vmul.f32 %v613, 0.25
        %v1547 = vmul.f32 %v618, 0.25
        %v1548 = vmul.f32 %v623, 0.25
        %v1549 = vmul.f32 %v628, 0.25
        %v1550 = vmul.f32 %v633, 0.25
        %v1551 = vmul.f32 %v638, 0.25
        %v1552 = vmul.f32 %v732, 0.25
        %v1553 = vmul.f32 %v737, 0.25
        %v1554 = vmul.f32 %v742, 0.25
        %v1555 = vmul.f32 %v747, 0.25
        %v1556 = vmul.f32 %v752, 0.25
        %v1557 = vmul.f32 %v757, 0.25
        %v1558 = vmul.f32 %v762, 0.25
        %v1559 = vmul.f32 %v767, 0.25
        %v1560 = vmul.f32 %v861, 0.25
        %v1561 = vmul.f32 %v866, 0.25
        %v1562 = vmul.f32 %v871, 0.25
        %v1563 = vmul.f32 %v876, 0.25
        %v1564 = vmul.f32 %v881, 0.25
        %v1565 = vmul.f32 %v886, 0.25
        %v1566 = vmul.f32 %v891, 0.25
        %v1567 = vmul.f32 %v896, 0.25
        %v1568 = vmul.f32 %v990, 0.25
        %v1569 = vmul.f32 %v995, 0.25
        %v1570 = vmul.f32 %v1000, 0.25
        %v1571 = vmul.f32 %v1005, 0.25
        %v1572 = vmul.f32 %v1010, 0.25
        %v1573 = vmul.f32 %v1015, 0.25
        %v1574 = vmul.f32 %v1020, 0.25
        %v1575 = vmul.f32 %v1025, 0.25
        %v1576 = vmul.f32 %v1119, 0.25
        %v1577 = vmul.f32 %v1124, 0.25
        %v1578 = vmul.f32 %v1129, 0.25
        %v1579 = vmul.f32 %v1134, 0.25
        %v1580 = vmul.f32 %v1139, 0.25
        %v1581 = vmul.f32 %v1144, 0.25
        %v1582 = vmul.f32 %v1149, 0.25
        %v1583 = vmul.f32 %v1154, 0.25
        %v1584 = vmul.f32 %v1248, 0.25
        %v1585 = vmul.f32 %v1253, 0.25
        %v1586 = vmul.f32 %v1258, 0.25
        %v1587 = vmul.f32 %v1263, 0.25
        %v1588 = vmul.f32 %v1268, 0.25
        %v1589 = vmul.f32 %v1273, 0.25
        %v1590 = vmul.f32 %v1278, 0.25
        %v1591 = vmul.f32 %v1283, 0.25
        %v1592 = vmul.f32 %v1377, 0.25
        %v1593 = vmul.f32 %v1382, 0.25
        %v1594 = vmul.f32 %v1387, 0.25
        %v1595 = vmul.f32 %v1392, 0.25
        %v1596 = vmul.f32 %v1397, 0.25
        %v1597 = vmul.f32 %v1402, 0.25
        %v1598 = vmul.f32 %v1407, 0.25
        %v1599 = vmul.f32 %v1412, 0.25
        %v1600 = vmul.f32 %v1506, 0.25
        %v1601 = vmul.f32 %v1511, 0.25
        %v1602 = vmul.f32 %v1516, 0.25
        %v1603 = vmul.f32 %v1521, 0.25
        %v1604 = vmul.f32 %v1526, 0.25
        %v1605 = vmul.f32 %v1531, 0.25
        %v1606 = vmul.f32 %v1536, 0.25
        %v1607 = vmul.f32 %v1541, 0.25
        %v1608 = vld [vmem:[%s0] sm:$0xff]
        %v1609 = vld [vmem:[%s0 + $0x8] sm:$0xff]
        %v1610 = vld [vmem:[%s0 + $0x10] sm:$0xff]
        %v1611 = vld [vmem:[%s0 + $0x18] sm:$0xff]
        %v1612 = vld [vmem:[%s0 + $0x20] sm:$0xff]
        %v1613 = vld [vmem:[%s0 + $0x28] sm:$0xff]
        %v1614 = vld [vmem:[%s0 + $0x30] sm:$0xff]
        %v1615 = vld [vmem:[%s0 + $0x38] sm:$0xff]
        %v1616 = vadd.f32 %v1544, %v1608
        %v1617 = vadd.f32 %v1545, %v1609
        %v1618 = vadd.f32 %v1546, %v1610
        %v1619 = vadd.f32 %v1547, %v1611
        %v1620 = vadd.f32 %v1548, %v1612
        %v1621 = vadd.f32 %v1549, %v1613
        %v1622 = vadd.f32 %v1550, %v1614
        %v1623 = vadd.f32 %v1551, %v1615
        %v1624 = vadd.f32 %v1552, %v1608
        %v1625 = vadd.f32 %v1553, %v1609
        %v1626 = vadd.f32 %v1554, %v1610
        %v1627 = vadd.f32 %v1555, %v1611
        %v1628 = vadd.f32 %v1556, %v1612
        %v1629 = vadd.f32 %v1557, %v1613
        %v1630 = vadd.f32 %v1558, %v1614
        %v1631 = vadd.f32 %v1559, %v1615
        %v1632 = vadd.f32 %v1560, %v1608
        %v1633 = vadd.f32 %v1561, %v1609
        %v1634 = vadd.f32 %v1562, %v1610
        %v1635 = vadd.f32 %v1563, %v1611
        %v1636 = vadd.f32 %v1564, %v1612
        %v1637 = vadd.f32 %v1565, %v1613
        %v1638 = vadd.f32 %v1566, %v1614
        %v1639 = vadd.f32 %v1567, %v1615
        %v1640 = vadd.f32 %v1568, %v1608
        %v1641 = vadd.f32 %v1569, %v1609
        %v1642 = vadd.f32 %v1570, %v1610
        %v1643 = vadd.f32 %v1571, %v1611
        %v1644 = vadd.f32 %v1572, %v1612
        %v1645 = vadd.f32 %v1573, %v1613
        %v1646 = vadd.f32 %v1574, %v1614
        %v1647 = vadd.f32 %v1575, %v1615
        %v1648 = vadd.f32 %v1576, %v1608
        %v1649 = vadd.f32 %v1577, %v1609
        %v1650 = vadd.f32 %v1578, %v1610
        %v1651 = vadd.f32 %v1579, %v1611
        %v1652 = vadd.f32 %v1580, %v1612
        %v1653 = vadd.f32 %v1581, %v1613
        %v1654 = vadd.f32 %v1582, %v1614
        %v1655 = vadd.f32 %v1583, %v1615
        %v1656 = vadd.f32 %v1584, %v1608
        %v1657 = vadd.f32 %v1585, %v1609
        %v1658 = vadd.f32 %v1586, %v1610
        %v1659 = vadd.f32 %v1587, %v1611
        %v1660 = vadd.f32 %v1588, %v1612
        %v1661 = vadd.f32 %v1589, %v1613
        %v1662 = vadd.f32 %v1590, %v1614
        %v1663 = vadd.f32 %v1591, %v1615
        %v1664 = vadd.f32 %v1592, %v1608
        %v1665 = vadd.f32 %v1593, %v1609
        %v1666 = vadd.f32 %v1594, %v1610
        %v1667 = vadd.f32 %v1595, %v1611
        %v1668 = vadd.f32 %v1596, %v1612
        %v1669 = vadd.f32 %v1597, %v1613
        %v1670 = vadd.f32 %v1598, %v1614
        %v1671 = vadd.f32 %v1599, %v1615
        %v1672 = vadd.f32 %v1600, %v1608
        %v1673 = vadd.f32 %v1601, %v1609
        %v1674 = vadd.f32 %v1602, %v1610
        %v1675 = vadd.f32 %v1603, %v1611
        %v1676 = vadd.f32 %v1604, %v1612
        %v1677 = vadd.f32 %v1605, %v1613
        %v1678 = vadd.f32 %v1606, %v1614
        %v1679 = vadd.f32 %v1607, %v1615
        %1680 = vmax.xlane.f32.xlu0 %v1616
        %v1681 = vpop.xlane.xlu0 %1680
        %1682 = vmax.xlane.f32.xlu0 %v1617
        %v1683 = vpop.xlane.xlu0 %1682
        %1684 = vmax.xlane.f32.xlu0 %v1618
        %v1685 = vpop.xlane.xlu0 %1684
        %1686 = vmax.xlane.f32.xlu0 %v1619
        %v1687 = vpop.xlane.xlu0 %1686
        %1688 = vmax.xlane.f32.xlu0 %v1620
        %v1689 = vpop.xlane.xlu0 %1688
        %1690 = vmax.xlane.f32.xlu0 %v1621
        %v1691 = vpop.xlane.xlu0 %1690
        %1692 = vmax.xlane.f32.xlu0 %v1622
        %v1693 = vpop.xlane.xlu0 %1692
        %1694 = vmax.xlane.f32.xlu0 %v1623
        %v1695 = vpop.xlane.xlu0 %1694
        %1696 = vmax.xlane.f32.xlu0 %v1624
        %v1697 = vpop.xlane.xlu0 %1696
        %1698 = vmax.xlane.f32.xlu0 %v1625
        %v1699 = vpop.xlane.xlu0 %1698
        %1700 = vmax.xlane.f32.xlu0 %v1626
        %v1701 = vpop.xlane.xlu0 %1700
        %1702 = vmax.xlane.f32.xlu0 %v1627
        %v1703 = vpop.xlane.xlu0 %1702
        %1704 = vmax.xlane.f32.xlu0 %v1628
        %v1705 = vpop.xlane.xlu0 %1704
        %1706 = vmax.xlane.f32.xlu0 %v1629
        %v1707 = vpop.xlane.xlu0 %1706
        %1708 = vmax.xlane.f32.xlu0 %v1630
        %v1709 = vpop.xlane.xlu0 %1708
        %1710 = vmax.xlane.f32.xlu0 %v1631
        %v1711 = vpop.xlane.xlu0 %1710
        %1712 = vmax.xlane.f32.xlu0 %v1632
        %v1713 = vpop.xlane.xlu0 %1712
        %1714 = vmax.xlane.f32.xlu0 %v1633
        %v1715 = vpop.xlane.xlu0 %1714
        %1716 = vmax.xlane.f32.xlu0 %v1634
        %v1717 = vpop.xlane.xlu0 %1716
        %1718 = vmax.xlane.f32.xlu0 %v1635
        %v1719 = vpop.xlane.xlu0 %1718
        %1720 = vmax.xlane.f32.xlu0 %v1636
        %v1721 = vpop.xlane.xlu0 %1720
        %1722 = vmax.xlane.f32.xlu0 %v1637
        %v1723 = vpop.xlane.xlu0 %1722
        %1724 = vmax.xlane.f32.xlu0 %v1638
        %v1725 = vpop.xlane.xlu0 %1724
        %1726 = vmax.xlane.f32.xlu0 %v1639
        %v1727 = vpop.xlane.xlu0 %1726
        %1728 = vmax.xlane.f32.xlu0 %v1640
        %v1729 = vpop.xlane.xlu0 %1728
        %1730 = vmax.xlane.f32.xlu0 %v1641
        %v1731 = vpop.xlane.xlu0 %1730
        %1732 = vmax.xlane.f32.xlu0 %v1642
        %v1733 = vpop.xlane.xlu0 %1732
        %1734 = vmax.xlane.f32.xlu0 %v1643
        %v1735 = vpop.xlane.xlu0 %1734
        %1736 = vmax.xlane.f32.xlu0 %v1644
        %v1737 = vpop.xlane.xlu0 %1736
        %1738 = vmax.xlane.f32.xlu0 %v1645
        %v1739 = vpop.xlane.xlu0 %1738
        %1740 = vmax.xlane.f32.xlu0 %v1646
        %v1741 = vpop.xlane.xlu0 %1740
        %1742 = vmax.xlane.f32.xlu0 %v1647
        %v1743 = vpop.xlane.xlu0 %1742
        %1744 = vmax.xlane.f32.xlu0 %v1648
        %v1745 = vpop.xlane.xlu0 %1744
        %1746 = vmax.xlane.f32.xlu0 %v1649
        %v1747 = vpop.xlane.xlu0 %1746
        %1748 = vmax.xlane.f32.xlu0 %v1650
        %v1749 = vpop.xlane.xlu0 %1748
        %1750 = vmax.xlane.f32.xlu0 %v1651
        %v1751 = vpop.xlane.xlu0 %1750
        %1752 = vmax.xlane.f32.xlu0 %v1652
        %v1753 = vpop.xlane.xlu0 %1752
        %1754 = vmax.xlane.f32.xlu0 %v1653
        %v1755 = vpop.xlane.xlu0 %1754
        %1756 = vmax.xlane.f32.xlu0 %v1654
        %v1757 = vpop.xlane.xlu0 %1756
        %1758 = vmax.xlane.f32.xlu0 %v1655
        %v1759 = vpop.xlane.xlu0 %1758
        %1760 = vmax.xlane.f32.xlu0 %v1656
        %v1761 = vpop.xlane.xlu0 %1760
        %1762 = vmax.xlane.f32.xlu0 %v1657
        %v1763 = vpop.xlane.xlu0 %1762
        %1764 = vmax.xlane.f32.xlu0 %v1658
        %v1765 = vpop.xlane.xlu0 %1764
        %1766 = vmax.xlane.f32.xlu0 %v1659
        %v1767 = vpop.xlane.xlu0 %1766
        %1768 = vmax.xlane.f32.xlu0 %v1660
        %v1769 = vpop.xlane.xlu0 %1768
        %1770 = vmax.xlane.f32.xlu0 %v1661
        %v1771 = vpop.xlane.xlu0 %1770
        %1772 = vmax.xlane.f32.xlu0 %v1662
        %v1773 = vpop.xlane.xlu0 %1772
        %1774 = vmax.xlane.f32.xlu0 %v1663
        %v1775 = vpop.xlane.xlu0 %1774
        %1776 = vmax.xlane.f32.xlu0 %v1664
        %v1777 = vpop.xlane.xlu0 %1776
        %1778 = vmax.xlane.f32.xlu0 %v1665
        %v1779 = vpop.xlane.xlu0 %1778
        %1780 = vmax.xlane.f32.xlu0 %v1666
        %v1781 = vpop.xlane.xlu0 %1780
        %1782 = vmax.xlane.f32.xlu0 %v1667
        %v1783 = vpop.xlane.xlu0 %1782
        %1784 = vmax.xlane.f32.xlu0 %v1668
        %v1785 = vpop.xlane.xlu0 %1784
        %1786 = vmax.xlane.f32.xlu0 %v1669
        %v1787 = vpop.xlane.xlu0 %1786
        %1788 = vmax.xlane.f32.xlu0 %v1670
        %v1789 = vpop.xlane.xlu0 %1788
        %1790 = vmax.xlane.f32.xlu0 %v1671
        %v1791 = vpop.xlane.xlu0 %1790
        %1792 = vmax.xlane.f32.xlu0 %v1672
        %v1793 = vpop.xlane.xlu0 %1792
        %1794 = vmax.xlane.f32.xlu0 %v1673
        %v1795 = vpop.xlane.xlu0 %1794
        %1796 = vmax.xlane.f32.xlu0 %v1674
        %v1797 = vpop.xlane.xlu0 %1796
        %1798 = vmax.xlane.f32.xlu0 %v1675
        %v1799 = vpop.xlane.xlu0 %1798
        %1800 = vmax.xlane.f32.xlu0 %v1676
        %v1801 = vpop.xlane.xlu0 %1800
        %1802 = vmax.xlane.f32.xlu0 %v1677
        %v1803 = vpop.xlane.xlu0 %1802
        %1804 = vmax.xlane.f32.xlu0 %v1678
        %v1805 = vpop.xlane.xlu0 %1804
        %1806 = vmax.xlane.f32.xlu0 %v1679
        %v1807 = vpop.xlane.xlu0 %1806
        %v1808 = vsub.f32 %v1616, %v1681
        %v1809 = vsub.f32 %v1617, %v1683
        %v1810 = vsub.f32 %v1618, %v1685
        %v1811 = vsub.f32 %v1619, %v1687
        %v1812 = vsub.f32 %v1620, %v1689
        %v1813 = vsub.f32 %v1621, %v1691
        %v1814 = vsub.f32 %v1622, %v1693
        %v1815 = vsub.f32 %v1623, %v1695
        %v1816 = vsub.f32 %v1624, %v1697
        %v1817 = vsub.f32 %v1625, %v1699
        %v1818 = vsub.f32 %v1626, %v1701
        %v1819 = vsub.f32 %v1627, %v1703
        %v1820 = vsub.f32 %v1628, %v1705
        %v1821 = vsub.f32 %v1629, %v1707
        %v1822 = vsub.f32 %v1630, %v1709
        %v1823 = vsub.f32 %v1631, %v1711
        %v1824 = vsub.f32 %v1632, %v1713
        %v1825 = vsub.f32 %v1633, %v1715
        %v1826 = vsub.f32 %v1634, %v1717
        %v1827 = vsub.f32 %v1635, %v1719
        %v1828 = vsub.f32 %v1636, %v1721
        %v1829 = vsub.f32 %v1637, %v1723
        %v1830 = vsub.f32 %v1638, %v1725
        %v1831 = vsub.f32 %v1639, %v1727
        %v1832 = vsub.f32 %v1640, %v1729
        %v1833 = vsub.f32 %v1641, %v1731
        %v1834 = vsub.f32 %v1642, %v1733
        %v1835 = vsub.f32 %v1643, %v1735
        %v1836 = vsub.f32 %v1644, %v1737
        %v1837 = vsub.f32 %v1645, %v1739
        %v1838 = vsub.f32 %v1646, %v1741
        %v1839 = vsub.f32 %v1647, %v1743
        %v1840 = vsub.f32 %v1648, %v1745
        %v1841 = vsub.f32 %v1649, %v1747
        %v1842 = vsub.f32 %v1650, %v1749
        %v1843 = vsub.f32 %v1651, %v1751
        %v1844 = vsub.f32 %v1652, %v1753
        %v1845 = vsub.f32 %v1653, %v1755
        %v1846 = vsub.f32 %v1654, %v1757
        %v1847 = vsub.f32 %v1655, %v1759
        %v1848 = vsub.f32 %v1656, %v1761
        %v1849 = vsub.f32 %v1657, %v1763
        %v1850 = vsub.f32 %v1658, %v1765
        %v1851 = vsub.f32 %v1659, %v1767
        %v1852 = vsub.f32 %v1660, %v1769
        %v1853 = vsub.f32 %v1661, %v1771
        %v1854 = vsub.f32 %v1662, %v1773
        %v1855 = vsub.f32 %v1663, %v1775
        %v1856 = vsub.f32 %v1664, %v1777
        %v1857 = vsub.f32 %v1665, %v1779
        %v1858 = vsub.f32 %v1666, %v1781
        %v1859 = vsub.f32 %v1667, %v1783
        %v1860 = vsub.f32 %v1668, %v1785
        %v1861 = vsub.f32 %v1669, %v1787
        %v1862 = vsub.f32 %v1670, %v1789
        %v1863 = vsub.f32 %v1671, %v1791
        %v1864 = vsub.f32 %v1672, %v1793
        %v1865 = vsub.f32 %v1673, %v1795
        %v1866 = vsub.f32 %v1674, %v1797
        %v1867 = vsub.f32 %v1675, %v1799
        %v1868 = vsub.f32 %v1676, %v1801
        %v1869 = vsub.f32 %v1677, %v1803
        %v1870 = vsub.f32 %v1678, %v1805
        %v1871 = vsub.f32 %v1679, %v1807
        %v1872 = vmul.f32 %v1808, 1.442695
        %v1873 = vpow.pop %v1872
        %v1874 = vmul.f32 %v1809, 1.442695
        %v1875 = vpow.pop %v1874
        %v1876 = vmul.f32 %v1810, 1.442695
        %v1877 = vpow.pop %v1876
        %v1878 = vmul.f32 %v1811, 1.442695
        %v1879 = vpow.pop %v1878
        %v1880 = vmul.f32 %v1812, 1.442695
        %v1881 = vpow.pop %v1880
        %v1882 = vmul.f32 %v1813, 1.442695
        %v1883 = vpow.pop %v1882
        %v1884 = vmul.f32 %v1814, 1.442695
        %v1885 = vpow.pop %v1884
        %v1886 = vmul.f32 %v1815, 1.442695
        %v1887 = vpow.pop %v1886
        %v1888 = vmul.f32 %v1816, 1.442695
        %v1889 = vpow.pop %v1888
        %v1890 = vmul.f32 %v1817, 1.442695
        %v1891 = vpow.pop %v1890
        %v1892 = vmul.f32 %v1818, 1.442695
        %v1893 = vpow.pop %v1892
        %v1894 = vmul.f32 %v1819, 1.442695
        %v1895 = vpow.pop %v1894
        %v1896 = vmul.f32 %v1820, 1.442695
        %v1897 = vpow.pop %v1896
        %v1898 = vmul.f32 %v1821, 1.442695
        %v1899 = vpow.pop %v1898
        %v1900 = vmul.f32 %v1822, 1.442695
        %v1901 = vpow.pop %v1900
        %v1902 = vmul.f32 %v1823, 1.442695
        %v1903 = vpow.pop %v1902
        %v1904 = vmul.f32 %v1824, 1.442695
        %v1905 = vpow.pop %v1904
        %v1906 = vmul.f32 %v1825, 1.442695
        %v1907 = vpow.pop %v1906
        %v1908 = vmul.f32 %v1826, 1.442695
        %v1909 = vpow.pop %v1908
        %v1910 = vmul.f32 %v1827, 1.442695
        %v1911 = vpow.pop %v1910
        %v1912 = vmul.f32 %v1828, 1.442695
        %v1913 = vpow.pop %v1912
        %v1914 = vmul.f32 %v1829, 1.442695
        %v1915 = vpow.pop %v1914
        %v1916 = vmul.f32 %v1830, 1.442695
        %v1917 = vpow.pop %v1916
        %v1918 = vmul.f32 %v1831, 1.442695
        %v1919 = vpow.pop %v1918
        %v1920 = vmul.f32 %v1832, 1.442695
        %v1921 = vpow.pop %v1920
        %v1922 = vmul.f32 %v1833, 1.442695
        %v1923 = vpow.pop %v1922
        %v1924 = vmul.f32 %v1834, 1.442695
        %v1925 = vpow.pop %v1924
        %v1926 = vmul.f32 %v1835, 1.442695
        %v1927 = vpow.pop %v1926
        %v1928 = vmul.f32 %v1836, 1.442695
        %v1929 = vpow.pop %v1928
        %v1930 = vmul.f32 %v1837, 1.442695
        %v1931 = vpow.pop %v1930
        %v1932 = vmul.f32 %v1838, 1.442695
        %v1933 = vpow.pop %v1932
        %v1934 = vmul.f32 %v1839, 1.442695
        %v1935 = vpow.pop %v1934
        %v1936 = vmul.f32 %v1840, 1.442695
        %v1937 = vpow.pop %v1936
        %v1938 = vmul.f32 %v1841, 1.442695
        %v1939 = vpow.pop %v1938
        %v1940 = vmul.f32 %v1842, 1.442695
        %v1941 = vpow.pop %v1940
        %v1942 = vmul.f32 %v1843, 1.442695
        %v1943 = vpow.pop %v1942
        %v1944 = vmul.f32 %v1844, 1.442695
        %v1945 = vpow.pop %v1944
        %v1946 = vmul.f32 %v1845, 1.442695
        %v1947 = vpow.pop %v1946
        %v1948 = vmul.f32 %v1846, 1.442695
        %v1949 = vpow.pop %v1948
        %v1950 = vmul.f32 %v1847, 1.442695
        %v1951 = vpow.pop %v1950
        %v1952 = vmul.f32 %v1848, 1.442695
        %v1953 = vpow.pop %v1952
        %v1954 = vmul.f32 %v1849, 1.442695
        %v1955 = vpow.pop %v1954
        %v1956 = vmul.f32 %v1850, 1.442695
        %v1957 = vpow.pop %v1956
        %v1958 = vmul.f32 %v1851, 1.442695
        %v1959 = vpow.pop %v1958
        %v1960 = vmul.f32 %v1852, 1.442695
        %v1961 = vpow.pop %v1960
        %v1962 = vmul.f32 %v1853, 1.442695
        %v1963 = vpow.pop %v1962
        %v1964 = vmul.f32 %v1854, 1.442695
        %v1965 = vpow.pop %v1964
        %v1966 = vmul.f32 %v1855, 1.442695
        %v1967 = vpow.pop %v1966
        %v1968 = vmul.f32 %v1856, 1.442695
        %v1969 = vpow.pop %v1968
        %v1970 = vmul.f32 %v1857, 1.442695
        %v1971 = vpow.pop %v1970
        %v1972 = vmul.f32 %v1858, 1.442695
        %v1973 = vpow.pop %v1972
        %v1974 = vmul.f32 %v1859, 1.442695
        %v1975 = vpow.pop %v1974
        %v1976 = vmul.f32 %v1860, 1.442695
        %v1977 = vpow.pop %v1976
        %v1978 = vmul.f32 %v1861, 1.442695
        %v1979 = vpow.pop %v1978
        %v1980 = vmul.f32 %v1862, 1.442695
        %v1981 = vpow.pop %v1980
        %v1982 = vmul.f32 %v1863, 1.442695
        %v1983 = vpow.pop %v1982
        %v1984 = vmul.f32 %v1864, 1.442695
        %v1985 = vpow.pop %v1984
        %v1986 = vmul.f32 %v1865, 1.442695
        %v1987 = vpow.pop %v1986
        %v1988 = vmul.f32 %v1866, 1.442695
        %v1989 = vpow.pop %v1988
        %v1990 = vmul.f32 %v1867, 1.442695
        %v1991 = vpow.pop %v1990
        %v1992 = vmul.f32 %v1868, 1.442695
        %v1993 = vpow.pop %v1992
        %v1994 = vmul.f32 %v1869, 1.442695
        %v1995 = vpow.pop %v1994
        %v1996 = vmul.f32 %v1870, 1.442695
        %v1997 = vpow.pop %v1996
        %v1998 = vmul.f32 %v1871, 1.442695
        %v1999 = vpow.pop %v1998
        %2000 = vadd.xlane.f32.xlu0 %v1873
        %v2001 = vpop.xlane.xlu0 %2000
        %2002 = vadd.xlane.f32.xlu0 %v1875
        %v2003 = vpop.xlane.xlu0 %2002
        %2004 = vadd.xlane.f32.xlu0 %v1877
        %v2005 = vpop.xlane.xlu0 %2004
        %2006 = vadd.xlane.f32.xlu0 %v1879
        %v2007 = vpop.xlane.xlu0 %2006
        %2008 = vadd.xlane.f32.xlu0 %v1881
        %v2009 = vpop.xlane.xlu0 %2008
        %2010 = vadd.xlane.f32.xlu0 %v1883
        %v2011 = vpop.xlane.xlu0 %2010
        %2012 = vadd.xlane.f32.xlu0 %v1885
        %v2013 = vpop.xlane.xlu0 %2012
        %2014 = vadd.xlane.f32.xlu0 %v1887
        %v2015 = vpop.xlane.xlu0 %2014
        %2016 = vadd.xlane.f32.xlu0 %v1889
        %v2017 = vpop.xlane.xlu0 %2016
        %2018 = vadd.xlane.f32.xlu0 %v1891
        %v2019 = vpop.xlane.xlu0 %2018
        %2020 = vadd.xlane.f32.xlu0 %v1893
        %v2021 = vpop.xlane.xlu0 %2020
        %2022 = vadd.xlane.f32.xlu0 %v1895
        %v2023 = vpop.xlane.xlu0 %2022
        %2024 = vadd.xlane.f32.xlu0 %v1897
        %v2025 = vpop.xlane.xlu0 %2024
        %2026 = vadd.xlane.f32.xlu0 %v1899
        %v2027 = vpop.xlane.xlu0 %2026
        %2028 = vadd.xlane.f32.xlu0 %v1901
        %v2029 = vpop.xlane.xlu0 %2028
        %2030 = vadd.xlane.f32.xlu0 %v1903
        %v2031 = vpop.xlane.xlu0 %2030
        %2032 = vadd.xlane.f32.xlu0 %v1905
        %v2033 = vpop.xlane.xlu0 %2032
        %2034 = vadd.xlane.f32.xlu0 %v1907
        %v2035 = vpop.xlane.xlu0 %2034
        %2036 = vadd.xlane.f32.xlu0 %v1909
        %v2037 = vpop.xlane.xlu0 %2036
        %2038 = vadd.xlane.f32.xlu0 %v1911
        %v2039 = vpop.xlane.xlu0 %2038
        %2040 = vadd.xlane.f32.xlu0 %v1913
        %v2041 = vpop.xlane.xlu0 %2040
        %2042 = vadd.xlane.f32.xlu0 %v1915
        %v2043 = vpop.xlane.xlu0 %2042
        %2044 = vadd.xlane.f32.xlu0 %v1917
        %v2045 = vpop.xlane.xlu0 %2044
        %2046 = vadd.xlane.f32.xlu0 %v1919
        %v2047 = vpop.xlane.xlu0 %2046
        %2048 = vadd.xlane.f32.xlu0 %v1921
        %v2049 = vpop.xlane.xlu0 %2048
        %2050 = vadd.xlane.f32.xlu0 %v1923
        %v2051 = vpop.xlane.xlu0 %2050
        %2052 = vadd.xlane.f32.xlu0 %v1925
        %v2053 = vpop.xlane.xlu0 %2052
        %2054 = vadd.xlane.f32.xlu0 %v1927
        %v2055 = vpop.xlane.xlu0 %2054
        %2056 = vadd.xlane.f32.xlu0 %v1929
        %v2057 = vpop.xlane.xlu0 %2056
        %2058 = vadd.xlane.f32.xlu0 %v1931
        %v2059 = vpop.xlane.xlu0 %2058
        %2060 = vadd.xlane.f32.xlu0 %v1933
        %v2061 = vpop.xlane.xlu0 %2060
        %2062 = vadd.xlane.f32.xlu0 %v1935
        %v2063 = vpop.xlane.xlu0 %2062
        %2064 = vadd.xlane.f32.xlu0 %v1937
        %v2065 = vpop.xlane.xlu0 %2064
        %2066 = vadd.xlane.f32.xlu0 %v1939
        %v2067 = vpop.xlane.xlu0 %2066
        %2068 = vadd.xlane.f32.xlu0 %v1941
        %v2069 = vpop.xlane.xlu0 %2068
        %2070 = vadd.xlane.f32.xlu0 %v1943
        %v2071 = vpop.xlane.xlu0 %2070
        %2072 = vadd.xlane.f32.xlu0 %v1945
        %v2073 = vpop.xlane.xlu0 %2072
        %2074 = vadd.xlane.f32.xlu0 %v1947
        %v2075 = vpop.xlane.xlu0 %2074
        %2076 = vadd.xlane.f32.xlu0 %v1949
        %v2077 = vpop.xlane.xlu0 %2076
        %2078 = vadd.xlane.f32.xlu0 %v1951
        %v2079 = vpop.xlane.xlu0 %2078
        %2080 = vadd.xlane.f32.xlu0 %v1953
        %v2081 = vpop.xlane.xlu0 %2080
        %2082 = vadd.xlane.f32.xlu0 %v1955
        %v2083 = vpop.xlane.xlu0 %2082
        %2084 = vadd.xlane.f32.xlu0 %v1957
        %v2085 = vpop.xlane.xlu0 %2084
        %2086 = vadd.xlane.f32.xlu0 %v1959
        %v2087 = vpop.xlane.xlu0 %2086
        %2088 = vadd.xlane.f32.xlu0 %v1961
        %v2089 = vpop.xlane.xlu0 %2088
        %2090 = vadd.xlane.f32.xlu0 %v1963
        %v2091 = vpop.xlane.xlu0 %2090
        %2092 = vadd.xlane.f32.xlu0 %v1965
        %v2093 = vpop.xlane.xlu0 %2092
        %2094 = vadd.xlane.f32.xlu0 %v1967
        %v2095 = vpop.xlane.xlu0 %2094
        %2096 = vadd.xlane.f32.xlu0 %v1969
        %v2097 = vpop.xlane.xlu0 %2096
        %2098 = vadd.xlane.f32.xlu0 %v1971
        %v2099 = vpop.xlane.xlu0 %2098
        %2100 = vadd.xlane.f32.xlu0 %v1973
        %v2101 = vpop.xlane.xlu0 %2100
        %2102 = vadd.xlane.f32.xlu0 %v1975
        %v2103 = vpop.xlane.xlu0 %2102
        %2104 = vadd.xlane.f32.xlu0 %v1977
        %v2105 = vpop.xlane.xlu0 %2104
        %2106 = vadd.xlane.f32.xlu0 %v1979
        %v2107 = vpop.xlane.xlu0 %2106
        %2108 = vadd.xlane.f32.xlu0 %v1981
        %v2109 = vpop.xlane.xlu0 %2108
        %2110 = vadd.xlane.f32.xlu0 %v1983
        %v2111 = vpop.xlane.xlu0 %2110
        %2112 = vadd.xlane.f32.xlu0 %v1985
        %v2113 = vpop.xlane.xlu0 %2112
        %2114 = vadd.xlane.f32.xlu0 %v1987
        %v2115 = vpop.xlane.xlu0 %2114
        %2116 = vadd.xlane.f32.xlu0 %v1989
        %v2117 = vpop.xlane.xlu0 %2116
        %2118 = vadd.xlane.f32.xlu0 %v1991
        %v2119 = vpop.xlane.xlu0 %2118
        %2120 = vadd.xlane.f32.xlu0 %v1993
        %v2121 = vpop.xlane.xlu0 %2120
        %2122 = vadd.xlane.f32.xlu0 %v1995
        %v2123 = vpop.xlane.xlu0 %2122
        %2124 = vadd.xlane.f32.xlu0 %v1997
        %v2125 = vpop.xlane.xlu0 %2124
        %2126 = vadd.xlane.f32.xlu0 %v1999
        %v2127 = vpop.xlane.xlu0 %2126
        %v2128 = vrcp.pop %v2001
        %v2129 = vmul.f32 %v1873, %v2128
        %v2130 = vrcp.pop %v2003
        %v2131 = vmul.f32 %v1875, %v2130
        %v2132 = vrcp.pop %v2005
        %v2133 = vmul.f32 %v1877, %v2132
        %v2134 = vrcp.pop %v2007
        %v2135 = vmul.f32 %v1879, %v2134
        %v2136 = vrcp.pop %v2009
        %v2137 = vmul.f32 %v1881, %v2136
        %v2138 = vrcp.pop %v2011
        %v2139 = vmul.f32 %v1883, %v2138
        %v2140 = vrcp.pop %v2013
        %v2141 = vmul.f32 %v1885, %v2140
        %v2142 = vrcp.pop %v2015
        %v2143 = vmul.f32 %v1887, %v2142
        %v2144 = vrcp.pop %v2017
        %v2145 = vmul.f32 %v1889, %v2144
        %v2146 = vrcp.pop %v2019
        %v2147 = vmul.f32 %v1891, %v2146
        %v2148 = vrcp.pop %v2021
        %v2149 = vmul.f32 %v1893, %v2148
        %v2150 = vrcp.pop %v2023
        %v2151 = vmul.f32 %v1895, %v2150
        %v2152 = vrcp.pop %v2025
        %v2153 = vmul.f32 %v1897, %v2152
        %v2154 = vrcp.pop %v2027
        %v2155 = vmul.f32 %v1899, %v2154
        %v2156 = vrcp.pop %v2029
        %v2157 = vmul.f32 %v1901, %v2156
        %v2158 = vrcp.pop %v2031
        %v2159 = vmul.f32 %v1903, %v2158
        %v2160 = vrcp.pop %v2033
        %v2161 = vmul.f32 %v1905, %v2160
        %v2162 = vrcp.pop %v2035
        %v2163 = vmul.f32 %v1907, %v2162
        %v2164 = vrcp.pop %v2037
        %v2165 = vmul.f32 %v1909, %v2164
        %v2166 = vrcp.pop %v2039
        %v2167 = vmul.f32 %v1911, %v2166
        %v2168 = vrcp.pop %v2041
        %v2169 = vmul.f32 %v1913, %v2168
        %v2170 = vrcp.pop %v2043
        %v2171 = vmul.f32 %v1915, %v2170
        %v2172 = vrcp.pop %v2045
        %v2173 = vmul.f32 %v1917, %v2172
        %v2174 = vrcp.pop %v2047
        %v2175 = vmul.f32 %v1919, %v2174
        %v2176 = vrcp.pop %v2049
        %v2177 = vmul.f32 %v1921, %v2176
        %v2178 = vrcp.pop %v2051
        %v2179 = vmul.f32 %v1923, %v2178
        %v2180 = vrcp.pop %v2053
        %v2181 = vmul.f32 %v1925, %v2180
        %v2182 = vrcp.pop %v2055
        %v2183 = vmul.f32 %v1927, %v2182
        %v2184 = vrcp.pop %v2057
        %v2185 = vmul.f32 %v1929, %v2184
        %v2186 = vrcp.pop %v2059
        %v2187 = vmul.f32 %v1931, %v2186
        %v2188 = vrcp.pop %v2061
        %v2189 = vmul.f32 %v1933, %v2188
        %v2190 = vrcp.pop %v2063
        %v2191 = vmul.f32 %v1935, %v2190
        %v2192 = vrcp.pop %v2065
        %v2193 = vmul.f32 %v1937, %v2192
        %v2194 = vrcp.pop %v2067
        %v2195 = vmul.f32 %v1939, %v2194
        %v2196 = vrcp.pop %v2069
        %v2197 = vmul.f32 %v1941, %v2196
        %v2198 = vrcp.pop %v2071
        %v2199 = vmul.f32 %v1943, %v2198
        %v2200 = vrcp.pop %v2073
        %v2201 = vmul.f32 %v1945, %v2200
        %v2202 = vrcp.pop %v2075
        %v2203 = vmul.f32 %v1947, %v2202
        %v2204 = vrcp.pop %v2077
        %v2205 = vmul.f32 %v1949, %v2204
        %v2206 = vrcp.pop %v2079
        %v2207 = vmul.f32 %v1951, %v2206
        %v2208 = vrcp.pop %v2081
        %v2209 = vmul.f32 %v1953, %v2208
        %v2210 = vrcp.pop %v2083
        %v2211 = vmul.f32 %v1955, %v2210
        %v2212 = vrcp.pop %v2085
        %v2213 = vmul.f32 %v1957, %v2212
        %v2214 = vrcp.pop %v2087
        %v2215 = vmul.f32 %v1959, %v2214
        %v2216 = vrcp.pop %v2089
        %v2217 = vmul.f32 %v1961, %v2216
        %v2218 = vrcp.pop %v2091
        %v2219 = vmul.f32 %v1963, %v2218
        %v2220 = vrcp.pop %v2093
        %v2221 = vmul.f32 %v1965, %v2220
        %v2222 = vrcp.pop %v2095
        %v2223 = vmul.f32 %v1967, %v2222
        %v2224 = vrcp.pop %v2097
        %v2225 = vmul.f32 %v1969, %v2224
        %v2226 = vrcp.pop %v2099
        %v2227 = vmul.f32 %v1971, %v2226
        %v2228 = vrcp.pop %v2101
        %v2229 = vmul.f32 %v1973, %v2228
        %v2230 = vrcp.pop %v2103
        %v2231 = vmul.f32 %v1975, %v2230
        %v2232 = vrcp.pop %v2105
        %v2233 = vmul.f32 %v1977, %v2232
        %v2234 = vrcp.pop %v2107
        %v2235 = vmul.f32 %v1979, %v2234
        %v2236 = vrcp.pop %v2109
        %v2237 = vmul.f32 %v1981, %v2236
        %v2238 = vrcp.pop %v2111
        %v2239 = vmul.f32 %v1983, %v2238
        %v2240 = vrcp.pop %v2113
        %v2241 = vmul.f32 %v1985, %v2240
        %v2242 = vrcp.pop %v2115
        %v2243 = vmul.f32 %v1987, %v2242
        %v2244 = vrcp.pop %v2117
        %v2245 = vmul.f32 %v1989, %v2244
        %v2246 = vrcp.pop %v2119
        %v2247 = vmul.f32 %v1991, %v2246
        %v2248 = vrcp.pop %v2121
        %v2249 = vmul.f32 %v1993, %v2248
        %v2250 = vrcp.pop %v2123
        %v2251 = vmul.f32 %v1995, %v2250
        %v2252 = vrcp.pop %v2125
        %v2253 = vmul.f32 %v1997, %v2252
        %v2254 = vrcp.pop %v2127
        %v2255 = vmul.f32 %v1999, %v2254
        %v2256 = vld [vmem:[%s301] sm:$0xff]
        %v2257 = vld [vmem:[%s301 + $0x8] sm:$0xff]
        %v2258 = vld [vmem:[%s301 + $0x10] sm:$0xff]
        %v2259 = vld [vmem:[%s301 + $0x18] sm:$0xff]
        %v2260 = vld [vmem:[%s301 + $0x20] sm:$0xff]
        %v2261 = vld [vmem:[%s301 + $0x28] sm:$0xff]
        %v2262 = vld [vmem:[%s301 + $0x30] sm:$0xff]
        %v2263 = vld [vmem:[%s301 + $0x38] sm:$0xff]
        %v2264 = vld [vmem:[%s301 + $0x40] sm:$0xff]
        %v2265 = vld [vmem:[%s301 + $0x48] sm:$0xff]
        %v2266 = vld [vmem:[%s301 + $0x50] sm:$0xff]
        %v2267 = vld [vmem:[%s301 + $0x58] sm:$0xff]
        %v2268 = vld [vmem:[%s301 + $0x60] sm:$0xff]
        %v2269 = vld [vmem:[%s301 + $0x68] sm:$0xff]
        %v2270 = vld [vmem:[%s301 + $0x70] sm:$0xff]
        %v2271 = vld [vmem:[%s301 + $0x78] sm:$0xff]
        %v2272 = vld [vmem:[%s301 + $0x80] sm:$0xff]
        %v2273 = vld [vmem:[%s301 + $0x88] sm:$0xff]
        %v2274 = vld [vmem:[%s301 + $0x90] sm:$0xff]
        %v2275 = vld [vmem:[%s301 + $0x98] sm:$0xff]
        %v2276 = vld [vmem:[%s301 + $0xa0] sm:$0xff]
        %v2277 = vld [vmem:[%s301 + $0xa8] sm:$0xff]
        %v2278 = vld [vmem:[%s301 + $0xb0] sm:$0xff]
        %v2279 = vld [vmem:[%s301 + $0xb8] sm:$0xff]
        %v2280 = vld [vmem:[%s301 + $0xc0] sm:$0xff]
        %v2281 = vld [vmem:[%s301 + $0xc8] sm:$0xff]
        %v2282 = vld [vmem:[%s301 + $0xd0] sm:$0xff]
        %v2283 = vld [vmem:[%s301 + $0xd8] sm:$0xff]
        %v2284 = vld [vmem:[%s301 + $0xe0] sm:$0xff]
        %v2285 = vld [vmem:[%s301 + $0xe8] sm:$0xff]
        %v2286 = vld [vmem:[%s301 + $0xf0] sm:$0xff]
        %v2287 = vld [vmem:[%s301 + $0xf8] sm:$0xff]
        %v2288 = vld [vmem:[%s301 + $0x100] sm:$0xff]
        %v2289 = vld [vmem:[%s301 + $0x108] sm:$0xff]
        %v2290 = vld [vmem:[%s301 + $0x110] sm:$0xff]
        %v2291 = vld [vmem:[%s301 + $0x118] sm:$0xff]
        %v2292 = vld [vmem:[%s301 + $0x120] sm:$0xff]
        %v2293 = vld [vmem:[%s301 + $0x128] sm:$0xff]
        %v2294 = vld [vmem:[%s301 + $0x130] sm:$0xff]
        %v2295 = vld [vmem:[%s301 + $0x138] sm:$0xff]
        %v2296 = vld [vmem:[%s301 + $0x140] sm:$0xff]
        %v2297 = vld [vmem:[%s301 + $0x148] sm:$0xff]
        %v2298 = vld [vmem:[%s301 + $0x150] sm:$0xff]
        %v2299 = vld [vmem:[%s301 + $0x158] sm:$0xff]
        %v2300 = vld [vmem:[%s301 + $0x160] sm:$0xff]
        %v2301 = vld [vmem:[%s301 + $0x168] sm:$0xff]
        %v2302 = vld [vmem:[%s301 + $0x170] sm:$0xff]
        %v2303 = vld [vmem:[%s301 + $0x178] sm:$0xff]
        %v2304 = vld [vmem:[%s301 + $0x180] sm:$0xff]
        %v2305 = vld [vmem:[%s301 + $0x188] sm:$0xff]
        %v2306 = vld [vmem:[%s301 + $0x190] sm:$0xff]
        %v2307 = vld [vmem:[%s301 + $0x198] sm:$0xff]
        %v2308 = vld [vmem:[%s301 + $0x1a0] sm:$0xff]
        %v2309 = vld [vmem:[%s301 + $0x1a8] sm:$0xff]
        %v2310 = vld [vmem:[%s301 + $0x1b0] sm:$0xff]
        %v2311 = vld [vmem:[%s301 + $0x1b8] sm:$0xff]
        %v2312 = vld [vmem:[%s301 + $0x1c0] sm:$0xff]
        %v2313 = vld [vmem:[%s301 + $0x1c8] sm:$0xff]
        %v2314 = vld [vmem:[%s301 + $0x1d0] sm:$0xff]
        %v2315 = vld [vmem:[%s301 + $0x1d8] sm:$0xff]
        %v2316 = vld [vmem:[%s301 + $0x1e0] sm:$0xff]
        %v2317 = vld [vmem:[%s301 + $0x1e8] sm:$0xff]
        %v2318 = vld [vmem:[%s301 + $0x1f0] sm:$0xff]
        %v2319 = vld [vmem:[%s301 + $0x1f8] sm:$0xff]
        %v2320 = vmul.f32 %v2129, %v2256
        %v2321 = vmul.f32 %v2131, %v2257
        %v2322 = vmul.f32 %v2133, %v2258
        %v2323 = vmul.f32 %v2135, %v2259
        %v2324 = vmul.f32 %v2137, %v2260
        %v2325 = vmul.f32 %v2139, %v2261
        %v2326 = vmul.f32 %v2141, %v2262
        %v2327 = vmul.f32 %v2143, %v2263
        %v2328 = vmul.f32 %v2145, %v2264
        %v2329 = vmul.f32 %v2147, %v2265
        %v2330 = vmul.f32 %v2149, %v2266
        %v2331 = vmul.f32 %v2151, %v2267
        %v2332 = vmul.f32 %v2153, %v2268
        %v2333 = vmul.f32 %v2155, %v2269
        %v2334 = vmul.f32 %v2157, %v2270
        %v2335 = vmul.f32 %v2159, %v2271
        %v2336 = vmul.f32 %v2161, %v2272
        %v2337 = vmul.f32 %v2163, %v2273
        %v2338 = vmul.f32 %v2165, %v2274
        %v2339 = vmul.f32 %v2167, %v2275
        %v2340 = vmul.f32 %v2169, %v2276
        %v2341 = vmul.f32 %v2171, %v2277
        %v2342 = vmul.f32 %v2173, %v2278
        %v2343 = vmul.f32 %v2175, %v2279
        %v2344 = vmul.f32 %v2177, %v2280
        %v2345 = vmul.f32 %v2179, %v2281
        %v2346 = vmul.f32 %v2181, %v2282
        %v2347 = vmul.f32 %v2183, %v2283
        %v2348 = vmul.f32 %v2185, %v2284
        %v2349 = vmul.f32 %v2187, %v2285
        %v2350 = vmul.f32 %v2189, %v2286
        %v2351 = vmul.f32 %v2191, %v2287
        %v2352 = vmul.f32 %v2193, %v2288
        %v2353 = vmul.f32 %v2195, %v2289
        %v2354 = vmul.f32 %v2197, %v2290
        %v2355 = vmul.f32 %v2199, %v2291
        %v2356 = vmul.f32 %v2201, %v2292
        %v2357 = vmul.f32 %v2203, %v2293
        %v2358 = vmul.f32 %v2205, %v2294
        %v2359 = vmul.f32 %v2207, %v2295
        %v2360 = vmul.f32 %v2209, %v2296
        %v2361 = vmul.f32 %v2211, %v2297
        %v2362 = vmul.f32 %v2213, %v2298
        %v2363 = vmul.f32 %v2215, %v2299
        %v2364 = vmul.f32 %v2217, %v2300
        %v2365 = vmul.f32 %v2219, %v2301
        %v2366 = vmul.f32 %v2221, %v2302
        %v2367 = vmul.f32 %v2223, %v2303
        %v2368 = vmul.f32 %v2225, %v2304
        %v2369 = vmul.f32 %v2227, %v2305
        %v2370 = vmul.f32 %v2229, %v2306
        %v2371 = vmul.f32 %v2231, %v2307
        %v2372 = vmul.f32 %v2233, %v2308
        %v2373 = vmul.f32 %v2235, %v2309
        %v2374 = vmul.f32 %v2237, %v2310
        %v2375 = vmul.f32 %v2239, %v2311
        %v2376 = vmul.f32 %v2241, %v2312
        %v2377 = vmul.f32 %v2243, %v2313
        %v2378 = vmul.f32 %v2245, %v2314
        %v2379 = vmul.f32 %v2247, %v2315
        %v2380 = vmul.f32 %v2249, %v2316
        %v2381 = vmul.f32 %v2251, %v2317
        %v2382 = vmul.f32 %v2253, %v2318
        %v2383 = vmul.f32 %v2255, %v2319
        %2384 = vmatprep.subr.mxu0 0.0
        %2385 = vmatpush1.msra.mxu0 %v383
        %2386 = vmatprep.subr.mxu0 0.0
        %2387 = vmatpush1.msra.mxu0 %v384
        %2388 = vmatprep.subr.mxu0 0.0
        %2389 = vmatpush1.msra.mxu0 %v385
        %2390 = vmatprep.subr.mxu0 0.0
        %2391 = vmatpush1.msra.mxu0 %v386
        %2392 = vmatprep.subr.mxu0 0.0
        %2393 = vmatpush1.msra.mxu0 %v387
        %2394 = vmatprep.subr.mxu0 0.0
        %2395 = vmatpush1.msra.mxu0 %v388
        %2396 = vmatprep.subr.mxu0 0.0
        %2397 = vmatpush1.msra.mxu0 %v389
        %2398 = vmatprep.subr.mxu0 0.0
        %2399 = vmatpush1.msra.mxu0 %v390
        %2400 = vmatprep.subr.mxu0 0.0
        %2401 = vmatpush1.msra.mxu0 %v391
        %2402 = vmatprep.subr.mxu0 0.0
        %2403 = vmatpush1.msra.mxu0 %v392
        %2404 = vmatprep.subr.mxu0 0.0
        %2405 = vmatpush1.msra.mxu0 %v393
        %2406 = vmatprep.subr.mxu0 0.0
        %2407 = vmatpush1.msra.mxu0 %v394
        %2408 = vmatprep.subr.mxu0 0.0
        %2409 = vmatpush1.msra.mxu0 %v395
        %2410 = vmatprep.subr.mxu0 0.0
        %2411 = vmatpush1.msra.mxu0 %v396
        %2412 = vmatprep.subr.mxu0 0.0
        %2413 = vmatpush1.msra.mxu0 %v397
        %2414 = vmatprep.subr.mxu0 0.0
        %2415 = vmatpush1.msra.mxu0 %v398
        %2416 = vmatprep.subr.mxu0 0.0
        %2417 = vmatpush1.msra.mxu0 0.0
        %2418 = vmatprep.subr.mxu0 0.0
        %2419 = vmatpush1.msra.mxu0 0.0
        %2420 = vmatprep.subr.mxu0 0.0
        %2421 = vmatpush1.msra.mxu0 0.0
        %2422 = vmatprep.subr.mxu0 0.0
        %2423 = vmatpush1.msra.mxu0 0.0
        %2424 = vmatprep.subr.mxu0 0.0
        %2425 = vmatpush1.msra.mxu0 0.0
        %2426 = vmatprep.subr.mxu0 0.0
        %2427 = vmatpush1.msra.mxu0 0.0
        %2428 = vmatprep.subr.mxu0 0.0
        %2429 = vmatpush1.msra.mxu0 0.0
        %2430 = vmatprep.subr.mxu0 0.0
        %2431 = vmatpush1.msra.mxu0 0.0
        %2432 = vmatprep.subr.mxu0 0.0
        %2433 = vmatpush1.msra.mxu0 0.0
        %2434 = vmatprep.subr.mxu0 0.0
        %2435 = vmatpush1.msra.mxu0 0.0
        %2436 = vmatprep.subr.mxu0 0.0
        %2437 = vmatpush1.msra.mxu0 0.0
        %2438 = vmatprep.subr.mxu0 0.0
        %2439 = vmatpush1.msra.mxu0 0.0
        %2440 = vmatprep.subr.mxu0 0.0
        %2441 = vmatpush1.msra.mxu0 0.0
        %2442 = vmatprep.subr.mxu0 0.0
        %2443 = vmatpush1.msra.mxu0 0.0
        %2444 = vmatprep.subr.mxu0 0.0
        %2445 = vmatpush1.msra.mxu0 0.0
        %2446 = vmatprep.subr.mxu0 0.0
        %2447 = vmatpush1.msra.mxu0 0.0
        %2448 = vmatprep.mubr.f32.mxu0 0.0
        %2449 = vmatmul.mubr.f32.gmra.mrb[0].mxu0 %v2320
        %v2450 = vpop.f32.mrb[0].mxu0
        %v2451 = vadd.f32 0.0, %v2450
        %v2452 = vpop.f32.mrb[0].mxu0
        %2453 = vmatprep.mubr.f32.mxu0 0.0
        %2454 = vmatmul.mubr.f32.gmra.mrb[0].mxu0 %v2321
        %v2455 = vpop.f32.mrb[0].mxu0
        %v2456 = vadd.f32 0.0, %v2455
        %v2457 = vpop.f32.mrb[0].mxu0
        %2458 = vmatprep.mubr.f32.mxu0 0.0
        %2459 = vmatmul.mubr.f32.gmra.mrb[0].mxu0 %v2322
        %v2460 = vpop.f32.mrb[0].mxu0
        %v2461 = vadd.f32 0.0, %v2460
        %v2462 = vpop.f32.mrb[0].mxu0
        %2463 = vmatprep.mubr.f32.mxu0 0.0
        %2464 = vmatmul.mubr.f32.gmra.mrb[0].mxu0 %v2323
        %v2465 = vpop.f32.mrb[0].mxu0
        %v2466 = vadd.f32 0.0, %v2465
        %v2467 = vpop.f32.mrb[0].mxu0
        %2468 = vmatprep.mubr.f32.mxu0 0.0
        %2469 = vmatmul.mubr.f32.gmra.mrb[0].mxu0 %v2324
        %v2470 = vpop.f32.mrb[0].mxu0
        %v2471 = vadd.f32 0.0, %v2470
        %v2472 = vpop.f32.mrb[0].mxu0
        %2473 = vmatprep.mubr.f32.mxu0 0.0
        %2474 = vmatmul.mubr.f32.gmra.mrb[0].mxu0 %v2325
        %v2475 = vpop.f32.mrb[0].mxu0
        %v2476 = vadd.f32 0.0, %v2475
        %v2477 = vpop.f32.mrb[0].mxu0
        %2478 = vmatprep.mubr.f32.mxu0 0.0
        %2479 = vmatmul.mubr.f32.gmra.mrb[0].mxu0 %v2326
        %v2480 = vpop.f32.mrb[0].mxu0
        %v2481 = vadd.f32 0.0, %v2480
        %v2482 = vpop.f32.mrb[0].mxu0
        %2483 = vmatprep.mubr.f32.mxu0 0.0
        %2484 = vmatmul.mubr.f32.gmra.mrb[0].mxu0 %v2327
        %v2485 = vpop.f32.mrb[0].mxu0
        %v2486 = vadd.f32 0.0, %v2485
        %v2487 = vpop.f32.mrb[0].mxu0
        %2488 = vdwg.mxu0
        %2489 = vmatprep.subr.mxu0 0.0
        %2490 = vmatpush1.msra.mxu0 %v399
        %2491 = vmatprep.subr.mxu0 0.0
        %2492 = vmatpush1.msra.mxu0 %v400
        %2493 = vmatprep.subr.mxu0 0.0
        %2494 = vmatpush1.msra.mxu0 %v401
        %2495 = vmatprep.subr.mxu0 0.0
        %2496 = vmatpush1.msra.mxu0 %v402
        %2497 = vmatprep.subr.mxu0 0.0
        %2498 = vmatpush1.msra.mxu0 %v403
        %2499 = vmatprep.subr.mxu0 0.0
        %2500 = vmatpush1.msra.mxu0 %v404
        %2501 = vmatprep.subr.mxu0 0.0
        %2502 = vmatpush1.msra.mxu0 %v405
        %2503 = vmatprep.subr.mxu0 0.0
        %2504 = vmatpush1.msra.mxu0 %v406
        %2505 = vmatprep.subr.mxu0 0.0
        %2506 = vmatpush1.msra.mxu0 %v407
        %2507 = vmatprep.subr.mxu0 0.0
        %2508 = vmatpush1.msra.mxu0 %v408
        %2509 = vmatprep.subr.mxu0 0.0
        %2510 = vmatpush1.msra.mxu0 %v409
        %2511 = vmatprep.subr.mxu0 0.0
        %2512 = vmatpush1.msra.mxu0 %v410
        %2513 = vmatprep.subr.mxu0 0.0
        %2514 = vmatpush1.msra.mxu0 %v411
        %2515 = vmatprep.subr.mxu0 0.0
        %2516 = vmatpush1.msra.mxu0 %v412
        %2517 = vmatprep.subr.mxu0 0.0
        %2518 = vmatpush1.msra.mxu0 %v413
        %2519 = vmatprep.subr.mxu0 0.0
        %2520 = vmatpush1.msra.mxu0 %v414
        %2521 = vmatprep.subr.mxu0 0.0
        %2522 = vmatpush1.msra.mxu0 0.0
        %2523 = vmatprep.subr.mxu0 0.0
        %2524 = vmatpush1.msra.mxu0 0.0
        %2525 = vmatprep.subr.mxu0 0.0
        %2526 = vmatpush1.msra.mxu0 0.0
        %2527 = vmatprep.subr.mxu0 0.0
        %2528 = vmatpush1.msra.mxu0 0.0
        %2529 = vmatprep.subr.mxu0 0.0
        %2530 = vmatpush1.msra.mxu0 0.0
        %2531 = vmatprep.subr.mxu0 0.0
        %2532 = vmatpush1.msra.mxu0 0.0
        %2533 = vmatprep.subr.mxu0 0.0
        %2534 = vmatpush1.msra.mxu0 0.0
        %2535 = vmatprep.subr.mxu0 0.0
        %2536 = vmatpush1.msra.mxu0 0.0
        %2537 = vmatprep.subr.mxu0 0.0
        %2538 = vmatpush1.msra.mxu0 0.0
        %2539 = vmatprep.subr.mxu0 0.0
        %2540 = vmatpush1.msra.mxu0 0.0
        %2541 = vmatprep.subr.mxu0 0.0
        %2542 = vmatpush1.msra.mxu0 0.0
        %2543 = vmatprep.subr.mxu0 0.0
        %2544 = vmatpush1.msra.mxu0 0.0
        %2545 = vmatprep.subr.mxu0 0.0
        %2546 = vmatpush1.msra.mxu0 0.0
        %2547 = vmatprep.subr.mxu0 0.0
        %2548 = vmatpush1.msra.mxu0 0.0
        %2549 = vmatprep.subr.mxu0 0.0
        %2550 = vmatpush1.msra.mxu0 0.0
        %2551 = vmatprep.subr.mxu0 0.0
        %2552 = vmatpush1.msra.mxu0 0.0
        %2553 = vmatprep.mubr.f32.mxu0 0.0
        %2554 = vmatmul.mubr.f32.gmra.mrb[0].mxu0 %v2328
        %v2555 = vpop.f32.mrb[0].mxu0
        %v2556 = vadd.f32 0.0, %v2555
        %v2557 = vpop.f32.mrb[0].mxu0
        %2558 = vmatprep.mubr.f32.mxu0 0.0
        %2559 = vmatmul.mubr.f32.gmra.mrb[0].mxu0 %v2329
        %v2560 = vpop.f32.mrb[0].mxu0
        %v2561 = vadd.f32 0.0, %v2560
        %v2562 = vpop.f32.mrb[0].mxu0
        %2563 = vmatprep.mubr.f32.mxu0 0.0
        %2564 = vmatmul.mubr.f32.gmra.mrb[0].mxu0 %v2330
        %v2565 = vpop.f32.mrb[0].mxu0
        %v2566 = vadd.f32 0.0, %v2565
        %v2567 = vpop.f32.mrb[0].mxu0
        %2568 = vmatprep.mubr.f32.mxu0 0.0
        %2569 = vmatmul.mubr.f32.gmra.mrb[0].mxu0 %v2331
        %v2570 = vpop.f32.mrb[0].mxu0
        %v2571 = vadd.f32 0.0, %v2570
        %v2572 = vpop.f32.mrb[0].mxu0
        %2573 = vmatprep.mubr.f32.mxu0 0.0
        %2574 = vmatmul.mubr.f32.gmra.mrb[0].mxu0 %v2332
        %v2575 = vpop.f32.mrb[0].mxu0
        %v2576 = vadd.f32 0.0, %v2575
        %v2577 = vpop.f32.mrb[0].mxu0
        %2578 = vmatprep.mubr.f32.mxu0 0.0
        %2579 = vmatmul.mubr.f32.gmra.mrb[0].mxu0 %v2333
        %v2580 = vpop.f32.mrb[0].mxu0
        %v2581 = vadd.f32 0.0, %v2580
        %v2582 = vpop.f32.mrb[0].mxu0
        %2583 = vmatprep.mubr.f32.mxu0 0.0
        %2584 = vmatmul.mubr.f32.gmra.mrb[0].mxu0 %v2334
        %v2585 = vpop.f32.mrb[0].mxu0
        %v2586 = vadd.f32 0.0, %v2585
        %v2587 = vpop.f32.mrb[0].mxu0
        %2588 = vmatprep.mubr.f32.mxu0 0.0
        %2589 = vmatmul.mubr.f32.gmra.mrb[0].mxu0 %v2335
        %v2590 = vpop.f32.mrb[0].mxu0
        %v2591 = vadd.f32 0.0, %v2590
        %v2592 = vpop.f32.mrb[0].mxu0
        %2593 = vdwg.mxu0
        %2594 = vmatprep.subr.mxu0 0.0
        %2595 = vmatpush1.msra.mxu0 %v415
        %2596 = vmatprep.subr.mxu0 0.0
        %2597 = vmatpush1.msra.mxu0 %v416
        %2598 = vmatprep.subr.mxu0 0.0
        %2599 = vmatpush1.msra.mxu0 %v417
        %2600 = vmatprep.subr.mxu0 0.0
        %2601 = vmatpush1.msra.mxu0 %v418
        %2602 = vmatprep.subr.mxu0 0.0
        %2603 = vmatpush1.msra.mxu0 %v419
        %2604 = vmatprep.subr.mxu0 0.0
        %2605 = vmatpush1.msra.mxu0 %v420
        %2606 = vmatprep.subr.mxu0 0.0
        %2607 = vmatpush1.msra.mxu0 %v421
        %2608 = vmatprep.subr.mxu0 0.0
        %2609 = vmatpush1.msra.mxu0 %v422
        %2610 = vmatprep.subr.mxu0 0.0
        %2611 = vmatpush1.msra.mxu0 %v423
        %2612 = vmatprep.subr.mxu0 0.0
        %2613 = vmatpush1.msra.mxu0 %v424
        %2614 = vmatprep.subr.mxu0 0.0
        %2615 = vmatpush1.msra.mxu0 %v425
        %2616 = vmatprep.subr.mxu0 0.0
        %2617 = vmatpush1.msra.mxu0 %v426
        %2618 = vmatprep.subr.mxu0 0.0
        %2619 = vmatpush1.msra.mxu0 %v427
        %2620 = vmatprep.subr.mxu0 0.0
        %2621 = vmatpush1.msra.mxu0 %v428
        %2622 = vmatprep.subr.mxu0 0.0
        %2623 = vmatpush1.msra.mxu0 %v429
        %2624 = vmatprep.subr.mxu0 0.0
        %2625 = vmatpush1.msra.mxu0 %v430
        %2626 = vmatprep.subr.mxu0 0.0
        %2627 = vmatpush1.msra.mxu0 0.0
        %2628 = vmatprep.subr.mxu0 0.0
        %2629 = vmatpush1.msra.mxu0 0.0
        %2630 = vmatprep.subr.mxu0 0.0
        %2631 = vmatpush1.msra.mxu0 0.0
        %2632 = vmatprep.subr.mxu0 0.0
        %2633 = vmatpush1.msra.mxu0 0.0
        %2634 = vmatprep.subr.mxu0 0.0
        %2635 = vmatpush1.msra.mxu0 0.0
        %2636 = vmatprep.subr.mxu0 0.0
        %2637 = vmatpush1.msra.mxu0 0.0
        %2638 = vmatprep.subr.mxu0 0.0
        %2639 = vmatpush1.msra.mxu0 0.0
        %2640 = vmatprep.subr.mxu0 0.0
        %2641 = vmatpush1.msra.mxu0 0.0
        %2642 = vmatprep.subr.mxu0 0.0
        %2643 = vmatpush1.msra.mxu0 0.0
        %2644 = vmatprep.subr.mxu0 0.0
        %2645 = vmatpush1.msra.mxu0 0.0
        %2646 = vmatprep.subr.mxu0 0.0
        %2647 = vmatpush1.msra.mxu0 0.0
        %2648 = vmatprep.subr.mxu0 0.0
        %2649 = vmatpush1.msra.mxu0 0.0
        %2650 = vmatprep.subr.mxu0 0.0
        %2651 = vmatpush1.msra.mxu0 0.0
        %2652 = vmatprep.subr.mxu0 0.0
        %2653 = vmatpush1.msra.mxu0 0.0
        %2654 = vmatprep.subr.mxu0 0.0
        %2655 = vmatpush1.msra.mxu0 0.0
        %2656 = vmatprep.subr.mxu0 0.0
        %2657 = vmatpush1.msra.mxu0 0.0
        %2658 = vmatprep.mubr.f32.mxu0 0.0
        %2659 = vmatmul.mubr.f32.gmra.mrb[0].mxu0 %v2336
        %v2660 = vpop.f32.mrb[0].mxu0
        %v2661 = vadd.f32 0.0, %v2660
        %v2662 = vpop.f32.mrb[0].mxu0
        %2663 = vmatprep.mubr.f32.mxu0 0.0
        %2664 = vmatmul.mubr.f32.gmra.mrb[0].mxu0 %v2337
        %v2665 = vpop.f32.mrb[0].mxu0
        %v2666 = vadd.f32 0.0, %v2665
        %v2667 = vpop.f32.mrb[0].mxu0
        %2668 = vmatprep.mubr.f32.mxu0 0.0
        %2669 = vmatmul.mubr.f32.gmra.mrb[0].mxu0 %v2338
        %v2670 = vpop.f32.mrb[0].mxu0
        %v2671 = vadd.f32 0.0, %v2670
        %v2672 = vpop.f32.mrb[0].mxu0
        %2673 = vmatprep.mubr.f32.mxu0 0.0
        %2674 = vmatmul.mubr.f32.gmra.mrb[0].mxu0 %v2339
        %v2675 = vpop.f32.mrb[0].mxu0
        %v2676 = vadd.f32 0.0, %v2675
        %v2677 = vpop.f32.mrb[0].mxu0
        %2678 = vmatprep.mubr.f32.mxu0 0.0
        %2679 = vmatmul.mubr.f32.gmra.mrb[0].mxu0 %v2340
        %v2680 = vpop.f32.mrb[0].mxu0
        %v2681 = vadd.f32 0.0, %v2680
        %v2682 = vpop.f32.mrb[0].mxu0
        %2683 = vmatprep.mubr.f32.mxu0 0.0
        %2684 = vmatmul.mubr.f32.gmra.mrb[0].mxu0 %v2341
        %v2685 = vpop.f32.mrb[0].mxu0
        %v2686 = vadd.f32 0.0, %v2685
        %v2687 = vpop.f32.mrb[0].mxu0
        %2688 = vmatprep.mubr.f32.mxu0 0.0
        %2689 = vmatmul.mubr.f32.gmra.mrb[0].mxu0 %v2342
        %v2690 = vpop.f32.mrb[0].mxu0
        %v2691 = vadd.f32 0.0, %v2690
        %v2692 = vpop.f32.mrb[0].mxu0
        %2693 = vmatprep.mubr.f32.mxu0 0.0
        %2694 = vmatmul.mubr.f32.gmra.mrb[0].mxu0 %v2343
        %v2695 = vpop.f32.mrb[0].mxu0
        %v2696 = vadd.f32 0.0, %v2695
        %v2697 = vpop.f32.mrb[0].mxu0
        %2698 = vdwg.mxu0
        %2699 = vmatprep.subr.mxu0 0.0
        %2700 = vmatpush1.msra.mxu0 %v431
        %2701 = vmatprep.subr.mxu0 0.0
        %2702 = vmatpush1.msra.mxu0 %v432
        %2703 = vmatprep.subr.mxu0 0.0
        %2704 = vmatpush1.msra.mxu0 %v433
        %2705 = vmatprep.subr.mxu0 0.0
        %2706 = vmatpush1.msra.mxu0 %v434
        %2707 = vmatprep.subr.mxu0 0.0
        %2708 = vmatpush1.msra.mxu0 %v435
        %2709 = vmatprep.subr.mxu0 0.0
        %2710 = vmatpush1.msra.mxu0 %v436
        %2711 = vmatprep.subr.mxu0 0.0
        %2712 = vmatpush1.msra.mxu0 %v437
        %2713 = vmatprep.subr.mxu0 0.0
        %2714 = vmatpush1.msra.mxu0 %v438
        %2715 = vmatprep.subr.mxu0 0.0
        %2716 = vmatpush1.msra.mxu0 %v439
        %2717 = vmatprep.subr.mxu0 0.0
        %2718 = vmatpush1.msra.mxu0 %v440
        %2719 = vmatprep.subr.mxu0 0.0
        %2720 = vmatpush1.msra.mxu0 %v441
        %2721 = vmatprep.subr.mxu0 0.0
        %2722 = vmatpush1.msra.mxu0 %v442
        %2723 = vmatprep.subr.mxu0 0.0
        %2724 = vmatpush1.msra.mxu0 %v443
        %2725 = vmatprep.subr.mxu0 0.0
        %2726 = vmatpush1.msra.mxu0 %v444
        %2727 = vmatprep.subr.mxu0 0.0
        %2728 = vmatpush1.msra.mxu0 %v445
        %2729 = vmatprep.subr.mxu0 0.0
        %2730 = vmatpush1.msra.mxu0 %v446
        %2731 = vmatprep.subr.mxu0 0.0
        %2732 = vmatpush1.msra.mxu0 0.0
        %2733 = vmatprep.subr.mxu0 0.0
        %2734 = vmatpush1.msra.mxu0 0.0
        %2735 = vmatprep.subr.mxu0 0.0
        %2736 = vmatpush1.msra.mxu0 0.0
        %2737 = vmatprep.subr.mxu0 0.0
        %2738 = vmatpush1.msra.mxu0 0.0
        %2739 = vmatprep.subr.mxu0 0.0
        %2740 = vmatpush1.msra.mxu0 0.0
        %2741 = vmatprep.subr.mxu0 0.0
        %2742 = vmatpush1.msra.mxu0 0.0
        %2743 = vmatprep.subr.mxu0 0.0
        %2744 = vmatpush1.msra.mxu0 0.0
        %2745 = vmatprep.subr.mxu0 0.0
        %2746 = vmatpush1.msra.mxu0 0.0
        %2747 = vmatprep.subr.mxu0 0.0
        %2748 = vmatpush1.msra.mxu0 0.0
        %2749 = vmatprep.subr.mxu0 0.0
        %2750 = vmatpush1.msra.mxu0 0.0
        %2751 = vmatprep.subr.mxu0 0.0
        %2752 = vmatpush1.msra.mxu0 0.0
        %2753 = vmatprep.subr.mxu0 0.0
        %2754 = vmatpush1.msra.mxu0 0.0
        %2755 = vmatprep.subr.mxu0 0.0
        %2756 = vmatpush1.msra.mxu0 0.0
        %2757 = vmatprep.subr.mxu0 0.0
        %2758 = vmatpush1.msra.mxu0 0.0
        %2759 = vmatprep.subr.mxu0 0.0
        %2760 = vmatpush1.msra.mxu0 0.0
        %2761 = vmatprep.subr.mxu0 0.0
        %2762 = vmatpush1.msra.mxu0 0.0
        %2763 = vmatprep.mubr.f32.mxu0 0.0
        %2764 = vmatmul.mubr.f32.gmra.mrb[0].mxu0 %v2344
        %v2765 = vpop.f32.mrb[0].mxu0
        %v2766 = vadd.f32 0.0, %v2765
        %v2767 = vpop.f32.mrb[0].mxu0
        %2768 = vmatprep.mubr.f32.mxu0 0.0
        %2769 = vmatmul.mubr.f32.gmra.mrb[0].mxu0 %v2345
        %v2770 = vpop.f32.mrb[0].mxu0
        %v2771 = vadd.f32 0.0, %v2770
        %v2772 = vpop.f32.mrb[0].mxu0
        %2773 = vmatprep.mubr.f32.mxu0 0.0
        %2774 = vmatmul.mubr.f32.gmra.mrb[0].mxu0 %v2346
        %v2775 = vpop.f32.mrb[0].mxu0
        %v2776 = vadd.f32 0.0, %v2775
        %v2777 = vpop.f32.mrb[0].mxu0
        %2778 = vmatprep.mubr.f32.mxu0 0.0
        %2779 = vmatmul.mubr.f32.gmra.mrb[0].mxu0 %v2347
        %v2780 = vpop.f32.mrb[0].mxu0
        %v2781 = vadd.f32 0.0, %v2780
        %v2782 = vpop.f32.mrb[0].mxu0
        %2783 = vmatprep.mubr.f32.mxu0 0.0
        %2784 = vmatmul.mubr.f32.gmra.mrb[0].mxu0 %v2348
        %v2785 = vpop.f32.mrb[0].mxu0
        %v2786 = vadd.f32 0.0, %v2785
        %v2787 = vpop.f32.mrb[0].mxu0
        %2788 = vmatprep.mubr.f32.mxu0 0.0
        %2789 = vmatmul.mubr.f32.gmra.mrb[0].mxu0 %v2349
        %v2790 = vpop.f32.mrb[0].mxu0
        %v2791 = vadd.f32 0.0, %v2790
        %v2792 = vpop.f32.mrb[0].mxu0
        %2793 = vmatprep.mubr.f32.mxu0 0.0
        %2794 = vmatmul.mubr.f32.gmra.mrb[0].mxu0 %v2350
        %v2795 = vpop.f32.mrb[0].mxu0
        %v2796 = vadd.f32 0.0, %v2795
        %v2797 = vpop.f32.mrb[0].mxu0
        %2798 = vmatprep.mubr.f32.mxu0 0.0
        %2799 = vmatmul.mubr.f32.gmra.mrb[0].mxu0 %v2351
        %v2800 = vpop.f32.mrb[0].mxu0
        %v2801 = vadd.f32 0.0, %v2800
        %v2802 = vpop.f32.mrb[0].mxu0
        %2803 = vdwg.mxu0
        %2804 = vmatprep.subr.mxu0 0.0
        %2805 = vmatpush1.msra.mxu0 %v447
        %2806 = vmatprep.subr.mxu0 0.0
        %2807 = vmatpush1.msra.mxu0 %v448
        %2808 = vmatprep.subr.mxu0 0.0
        %2809 = vmatpush1.msra.mxu0 %v449
        %2810 = vmatprep.subr.mxu0 0.0
        %2811 = vmatpush1.msra.mxu0 %v450
        %2812 = vmatprep.subr.mxu0 0.0
        %2813 = vmatpush1.msra.mxu0 %v451
        %2814 = vmatprep.subr.mxu0 0.0
        %2815 = vmatpush1.msra.mxu0 %v452
        %2816 = vmatprep.subr.mxu0 0.0
        %2817 = vmatpush1.msra.mxu0 %v453
        %2818 = vmatprep.subr.mxu0 0.0
        %2819 = vmatpush1.msra.mxu0 %v454
        %2820 = vmatprep.subr.mxu0 0.0
        %2821 = vmatpush1.msra.mxu0 %v455
        %2822 = vmatprep.subr.mxu0 0.0
        %2823 = vmatpush1.msra.mxu0 %v456
        %2824 = vmatprep.subr.mxu0 0.0
        %2825 = vmatpush1.msra.mxu0 %v457
        %2826 = vmatprep.subr.mxu0 0.0
        %2827 = vmatpush1.msra.mxu0 %v458
        %2828 = vmatprep.subr.mxu0 0.0
        %2829 = vmatpush1.msra.mxu0 %v459
        %2830 = vmatprep.subr.mxu0 0.0
        %2831 = vmatpush1.msra.mxu0 %v460
        %2832 = vmatprep.subr.mxu0 0.0
        %2833 = vmatpush1.msra.mxu0 %v461
        %2834 = vmatprep.subr.mxu0 0.0
        %2835 = vmatpush1.msra.mxu0 %v462
        %2836 = vmatprep.subr.mxu0 0.0
        %2837 = vmatpush1.msra.mxu0 0.0
        %2838 = vmatprep.subr.mxu0 0.0
        %2839 = vmatpush1.msra.mxu0 0.0
        %2840 = vmatprep.subr.mxu0 0.0
        %2841 = vmatpush1.msra.mxu0 0.0
        %2842 = vmatprep.subr.mxu0 0.0
        %2843 = vmatpush1.msra.mxu0 0.0
        %2844 = vmatprep.subr.mxu0 0.0
        %2845 = vmatpush1.msra.mxu0 0.0
        %2846 = vmatprep.subr.mxu0 0.0
        %2847 = vmatpush1.msra.mxu0 0.0
        %2848 = vmatprep.subr.mxu0 0.0
        %2849 = vmatpush1.msra.mxu0 0.0
        %2850 = vmatprep.subr.mxu0 0.0
        %2851 = vmatpush1.msra.mxu0 0.0
        %2852 = vmatprep.subr.mxu0 0.0
        %2853 = vmatpush1.msra.mxu0 0.0
        %2854 = vmatprep.subr.mxu0 0.0
        %2855 = vmatpush1.msra.mxu0 0.0
        %2856 = vmatprep.subr.mxu0 0.0
        %2857 = vmatpush1.msra.mxu0 0.0
        %2858 = vmatprep.subr.mxu0 0.0
        %2859 = vmatpush1.msra.mxu0 0.0
        %2860 = vmatprep.subr.mxu0 0.0
        %2861 = vmatpush1.msra.mxu0 0.0
        %2862 = vmatprep.subr.mxu0 0.0
        %2863 = vmatpush1.msra.mxu0 0.0
        %2864 = vmatprep.subr.mxu0 0.0
        %2865 = vmatpush1.msra.mxu0 0.0
        %2866 = vmatprep.subr.mxu0 0.0
        %2867 = vmatpush1.msra.mxu0 0.0
        %2868 = vmatprep.mubr.f32.mxu0 0.0
        %2869 = vmatmul.mubr.f32.gmra.mrb[0].mxu0 %v2352
        %v2870 = vpop.f32.mrb[0].mxu0
        %v2871 = vadd.f32 0.0, %v2870
        %v2872 = vpop.f32.mrb[0].mxu0
        %2873 = vmatprep.mubr.f32.mxu0 0.0
        %2874 = vmatmul.mubr.f32.gmra.mrb[0].mxu0 %v2353
        %v2875 = vpop.f32.mrb[0].mxu0
        %v2876 = vadd.f32 0.0, %v2875
        %v2877 = vpop.f32.mrb[0].mxu0
        %2878 = vmatprep.mubr.f32.mxu0 0.0
        %2879 = vmatmul.mubr.f32.gmra.mrb[0].mxu0 %v2354
        %v2880 = vpop.f32.mrb[0].mxu0
        %v2881 = vadd.f32 0.0, %v2880
        %v2882 = vpop.f32.mrb[0].mxu0
        %2883 = vmatprep.mubr.f32.mxu0 0.0
        %2884 = vmatmul.mubr.f32.gmra.mrb[0].mxu0 %v2355
        %v2885 = vpop.f32.mrb[0].mxu0
        %v2886 = vadd.f32 0.0, %v2885
        %v2887 = vpop.f32.mrb[0].mxu0
        %2888 = vmatprep.mubr.f32.mxu0 0.0
        %2889 = vmatmul.mubr.f32.gmra.mrb[0].mxu0 %v2356
        %v2890 = vpop.f32.mrb[0].mxu0
        %v2891 = vadd.f32 0.0, %v2890
        %v2892 = vpop.f32.mrb[0].mxu0
        %2893 = vmatprep.mubr.f32.mxu0 0.0
        %2894 = vmatmul.mubr.f32.gmra.mrb[0].mxu0 %v2357
        %v2895 = vpop.f32.mrb[0].mxu0
        %v2896 = vadd.f32 0.0, %v2895
        %v2897 = vpop.f32.mrb[0].mxu0
        %2898 = vmatprep.mubr.f32.mxu0 0.0
        %2899 = vmatmul.mubr.f32.gmra.mrb[0].mxu0 %v2358
        %v2900 = vpop.f32.mrb[0].mxu0
        %v2901 = vadd.f32 0.0, %v2900
        %v2902 = vpop.f32.mrb[0].mxu0
        %2903 = vmatprep.mubr.f32.mxu0 0.0
        %2904 = vmatmul.mubr.f32.gmra.mrb[0].mxu0 %v2359
        %v2905 = vpop.f32.mrb[0].mxu0
        %v2906 = vadd.f32 0.0, %v2905
        %v2907 = vpop.f32.mrb[0].mxu0
        %2908 = vdwg.mxu0
        %2909 = vmatprep.subr.mxu0 0.0
        %2910 = vmatpush1.msra.mxu0 %v463
        %2911 = vmatprep.subr.mxu0 0.0
        %2912 = vmatpush1.msra.mxu0 %v464
        %2913 = vmatprep.subr.mxu0 0.0
        %2914 = vmatpush1.msra.mxu0 %v465
        %2915 = vmatprep.subr.mxu0 0.0
        %2916 = vmatpush1.msra.mxu0 %v466
        %2917 = vmatprep.subr.mxu0 0.0
        %2918 = vmatpush1.msra.mxu0 %v467
        %2919 = vmatprep.subr.mxu0 0.0
        %2920 = vmatpush1.msra.mxu0 %v468
        %2921 = vmatprep.subr.mxu0 0.0
        %2922 = vmatpush1.msra.mxu0 %v469
        %2923 = vmatprep.subr.mxu0 0.0
        %2924 = vmatpush1.msra.mxu0 %v470
        %2925 = vmatprep.subr.mxu0 0.0
        %2926 = vmatpush1.msra.mxu0 %v471
        %2927 = vmatprep.subr.mxu0 0.0
        %2928 = vmatpush1.msra.mxu0 %v472
        %2929 = vmatprep.subr.mxu0 0.0
        %2930 = vmatpush1.msra.mxu0 %v473
        %2931 = vmatprep.subr.mxu0 0.0
        %2932 = vmatpush1.msra.mxu0 %v474
        %2933 = vmatprep.subr.mxu0 0.0
        %2934 = vmatpush1.msra.mxu0 %v475
        %2935 = vmatprep.subr.mxu0 0.0
        %2936 = vmatpush1.msra.mxu0 %v476
        %2937 = vmatprep.subr.mxu0 0.0
        %2938 = vmatpush1.msra.mxu0 %v477
        %2939 = vmatprep.subr.mxu0 0.0
        %2940 = vmatpush1.msra.mxu0 %v478
        %2941 = vmatprep.subr.mxu0 0.0
        %2942 = vmatpush1.msra.mxu0 0.0
        %2943 = vmatprep.subr.mxu0 0.0
        %2944 = vmatpush1.msra.mxu0 0.0
        %2945 = vmatprep.subr.mxu0 0.0
        %2946 = vmatpush1.msra.mxu0 0.0
        %2947 = vmatprep.subr.mxu0 0.0
        %2948 = vmatpush1.msra.mxu0 0.0
        %2949 = vmatprep.subr.mxu0 0.0
        %2950 = vmatpush1.msra.mxu0 0.0
        %2951 = vmatprep.subr.mxu0 0.0
        %2952 = vmatpush1.msra.mxu0 0.0
        %2953 = vmatprep.subr.mxu0 0.0
        %2954 = vmatpush1.msra.mxu0 0.0
        %2955 = vmatprep.subr.mxu0 0.0
        %2956 = vmatpush1.msra.mxu0 0.0
        %2957 = vmatprep.subr.mxu0 0.0
        %2958 = vmatpush1.msra.mxu0 0.0
        %2959 = vmatprep.subr.mxu0 0.0
        %2960 = vmatpush1.msra.mxu0 0.0
        %2961 = vmatprep.subr.mxu0 0.0
        %2962 = vmatpush1.msra.mxu0 0.0
        %2963 = vmatprep.subr.mxu0 0.0
        %2964 = vmatpush1.msra.mxu0 0.0
        %2965 = vmatprep.subr.mxu0 0.0
        %2966 = vmatpush1.msra.mxu0 0.0
        %2967 = vmatprep.subr.mxu0 0.0
        %2968 = vmatpush1.msra.mxu0 0.0
        %2969 = vmatprep.subr.mxu0 0.0
        %2970 = vmatpush1.msra.mxu0 0.0
        %2971 = vmatprep.subr.mxu0 0.0
        %2972 = vmatpush1.msra.mxu0 0.0
        %2973 = vmatprep.mubr.f32.mxu0 0.0
        %2974 = vmatmul.mubr.f32.gmra.mrb[0].mxu0 %v2360
        %v2975 = vpop.f32.mrb[0].mxu0
        %v2976 = vadd.f32 0.0, %v2975
        %v2977 = vpop.f32.mrb[0].mxu0
        %2978 = vmatprep.mubr.f32.mxu0 0.0
        %2979 = vmatmul.mubr.f32.gmra.mrb[0].mxu0 %v2361
        %v2980 = vpop.f32.mrb[0].mxu0
        %v2981 = vadd.f32 0.0, %v2980
        %v2982 = vpop.f32.mrb[0].mxu0
        %2983 = vmatprep.mubr.f32.mxu0 0.0
        %2984 = vmatmul.mubr.f32.gmra.mrb[0].mxu0 %v2362
        %v2985 = vpop.f32.mrb[0].mxu0
        %v2986 = vadd.f32 0.0, %v2985
        %v2987 = vpop.f32.mrb[0].mxu0
        %2988 = vmatprep.mubr.f32.mxu0 0.0
        %2989 = vmatmul.mubr.f32.gmra.mrb[0].mxu0 %v2363
        %v2990 = vpop.f32.mrb[0].mxu0
        %v2991 = vadd.f32 0.0, %v2990
        %v2992 = vpop.f32.mrb[0].mxu0
        %2993 = vmatprep.mubr.f32.mxu0 0.0
        %2994 = vmatmul.mubr.f32.gmra.mrb[0].mxu0 %v2364
        %v2995 = vpop.f32.mrb[0].mxu0
        %v2996 = vadd.f32 0.0, %v2995
        %v2997 = vpop.f32.mrb[0].mxu0
        %2998 = vmatprep.mubr.f32.mxu0 0.0
        %2999 = vmatmul.mubr.f32.gmra.mrb[0].mxu0 %v2365
        %v3000 = vpop.f32.mrb[0].mxu0
        %v3001 = vadd.f32 0.0, %v3000
        %v3002 = vpop.f32.mrb[0].mxu0
        %3003 = vmatprep.mubr.f32.mxu0 0.0
        %3004 = vmatmul.mubr.f32.gmra.mrb[0].mxu0 %v2366
        %v3005 = vpop.f32.mrb[0].mxu0
        %v3006 = vadd.f32 0.0, %v3005
        %v3007 = vpop.f32.mrb[0].mxu0
        %3008 = vmatprep.mubr.f32.mxu0 0.0
        %3009 = vmatmul.mubr.f32.gmra.mrb[0].mxu0 %v2367
        %v3010 = vpop.f32.mrb[0].mxu0
        %v3011 = vadd.f32 0.0, %v3010
        %v3012 = vpop.f32.mrb[0].mxu0
        %3013 = vdwg.mxu0
        %3014 = vmatprep.subr.mxu0 0.0
        %3015 = vmatpush1.msra.mxu0 %v479
        %3016 = vmatprep.subr.mxu0 0.0
        %3017 = vmatpush1.msra.mxu0 %v480
        %3018 = vmatprep.subr.mxu0 0.0
        %3019 = vmatpush1.msra.mxu0 %v481
        %3020 = vmatprep.subr.mxu0 0.0
        %3021 = vmatpush1.msra.mxu0 %v482
        %3022 = vmatprep.subr.mxu0 0.0
        %3023 = vmatpush1.msra.mxu0 %v483
        %3024 = vmatprep.subr.mxu0 0.0
        %3025 = vmatpush1.msra.mxu0 %v484
        %3026 = vmatprep.subr.mxu0 0.0
        %3027 = vmatpush1.msra.mxu0 %v485
        %3028 = vmatprep.subr.mxu0 0.0
        %3029 = vmatpush1.msra.mxu0 %v486
        %3030 = vmatprep.subr.mxu0 0.0
        %3031 = vmatpush1.msra.mxu0 %v487
        %3032 = vmatprep.subr.mxu0 0.0
        %3033 = vmatpush1.msra.mxu0 %v488
        %3034 = vmatprep.subr.mxu0 0.0
        %3035 = vmatpush1.msra.mxu0 %v489
        %3036 = vmatprep.subr.mxu0 0.0
        %3037 = vmatpush1.msra.mxu0 %v490
        %3038 = vmatprep.subr.mxu0 0.0
        %3039 = vmatpush1.msra.mxu0 %v491
        %3040 = vmatprep.subr.mxu0 0.0
        %3041 = vmatpush1.msra.mxu0 %v492
        %3042 = vmatprep.subr.mxu0 0.0
        %3043 = vmatpush1.msra.mxu0 %v493
        %3044 = vmatprep.subr.mxu0 0.0
        %3045 = vmatpush1.msra.mxu0 %v494
        %3046 = vmatprep.subr.mxu0 0.0
        %3047 = vmatpush1.msra.mxu0 0.0
        %3048 = vmatprep.subr.mxu0 0.0
        %3049 = vmatpush1.msra.mxu0 0.0
        %3050 = vmatprep.subr.mxu0 0.0
        %3051 = vmatpush1.msra.mxu0 0.0
        %3052 = vmatprep.subr.mxu0 0.0
        %3053 = vmatpush1.msra.mxu0 0.0
        %3054 = vmatprep.subr.mxu0 0.0
        %3055 = vmatpush1.msra.mxu0 0.0
        %3056 = vmatprep.subr.mxu0 0.0
        %3057 = vmatpush1.msra.mxu0 0.0
        %3058 = vmatprep.subr.mxu0 0.0
        %3059 = vmatpush1.msra.mxu0 0.0
        %3060 = vmatprep.subr.mxu0 0.0
        %3061 = vmatpush1.msra.mxu0 0.0
        %3062 = vmatprep.subr.mxu0 0.0
        %3063 = vmatpush1.msra.mxu0 0.0
        %3064 = vmatprep.subr.mxu0 0.0
        %3065 = vmatpush1.msra.mxu0 0.0
        %3066 = vmatprep.subr.mxu0 0.0
        %3067 = vmatpush1.msra.mxu0 0.0
        %3068 = vmatprep.subr.mxu0 0.0
        %3069 = vmatpush1.msra.mxu0 0.0
        %3070 = vmatprep.subr.mxu0 0.0
        %3071 = vmatpush1.msra.mxu0 0.0
        %3072 = vmatprep.subr.mxu0 0.0
        %3073 = vmatpush1.msra.mxu0 0.0
        %3074 = vmatprep.subr.mxu0 0.0
        %3075 = vmatpush1.msra.mxu0 0.0
        %3076 = vmatprep.subr.mxu0 0.0
        %3077 = vmatpush1.msra.mxu0 0.0
        %3078 = vmatprep.mubr.f32.mxu0 0.0
        %3079 = vmatmul.mubr.f32.gmra.mrb[0].mxu0 %v2368
        %v3080 = vpop.f32.mrb[0].mxu0
        %v3081 = vadd.f32 0.0, %v3080
        %v3082 = vpop.f32.mrb[0].mxu0
        %3083 = vmatprep.mubr.f32.mxu0 0.0
        %3084 = vmatmul.mubr.f32.gmra.mrb[0].mxu0 %v2369
        %v3085 = vpop.f32.mrb[0].mxu0
        %v3086 = vadd.f32 0.0, %v3085
        %v3087 = vpop.f32.mrb[0].mxu0
        %3088 = vmatprep.mubr.f32.mxu0 0.0
        %3089 = vmatmul.mubr.f32.gmra.mrb[0].mxu0 %v2370
        %v3090 = vpop.f32.mrb[0].mxu0
        %v3091 = vadd.f32 0.0, %v3090
        %v3092 = vpop.f32.mrb[0].mxu0
        %3093 = vmatprep.mubr.f32.mxu0 0.0
        %3094 = vmatmul.mubr.f32.gmra.mrb[0].mxu0 %v2371
        %v3095 = vpop.f32.mrb[0].mxu0
        %v3096 = vadd.f32 0.0, %v3095
        %v3097 = vpop.f32.mrb[0].mxu0
        %3098 = vmatprep.mubr.f32.mxu0 0.0
        %3099 = vmatmul.mubr.f32.gmra.mrb[0].mxu0 %v2372
        %v3100 = vpop.f32.mrb[0].mxu0
        %v3101 = vadd.f32 0.0, %v3100
        %v3102 = vpop.f32.mrb[0].mxu0
        %3103 = vmatprep.mubr.f32.mxu0 0.0
        %3104 = vmatmul.mubr.f32.gmra.mrb[0].mxu0 %v2373
        %v3105 = vpop.f32.mrb[0].mxu0
        %v3106 = vadd.f32 0.0, %v3105
        %v3107 = vpop.f32.mrb[0].mxu0
        %3108 = vmatprep.mubr.f32.mxu0 0.0
        %3109 = vmatmul.mubr.f32.gmra.mrb[0].mxu0 %v2374
        %v3110 = vpop.f32.mrb[0].mxu0
        %v3111 = vadd.f32 0.0, %v3110
        %v3112 = vpop.f32.mrb[0].mxu0
        %3113 = vmatprep.mubr.f32.mxu0 0.0
        %3114 = vmatmul.mubr.f32.gmra.mrb[0].mxu0 %v2375
        %v3115 = vpop.f32.mrb[0].mxu0
        %v3116 = vadd.f32 0.0, %v3115
        %v3117 = vpop.f32.mrb[0].mxu0
        %3118 = vdwg.mxu0
        %3119 = vmatprep.subr.mxu0 0.0
        %3120 = vmatpush1.msra.mxu0 %v495
        %3121 = vmatprep.subr.mxu0 0.0
        %3122 = vmatpush1.msra.mxu0 %v496
        %3123 = vmatprep.subr.mxu0 0.0
        %3124 = vmatpush1.msra.mxu0 %v497
        %3125 = vmatprep.subr.mxu0 0.0
        %3126 = vmatpush1.msra.mxu0 %v498
        %3127 = vmatprep.subr.mxu0 0.0
        %3128 = vmatpush1.msra.mxu0 %v499
        %3129 = vmatprep.subr.mxu0 0.0
        %3130 = vmatpush1.msra.mxu0 %v500
        %3131 = vmatprep.subr.mxu0 0.0
        %3132 = vmatpush1.msra.mxu0 %v501
        %3133 = vmatprep.subr.mxu0 0.0
        %3134 = vmatpush1.msra.mxu0 %v502
        %3135 = vmatprep.subr.mxu0 0.0
        %3136 = vmatpush1.msra.mxu0 %v503
        %3137 = vmatprep.subr.mxu0 0.0
        %3138 = vmatpush1.msra.mxu0 %v504
        %3139 = vmatprep.subr.mxu0 0.0
        %3140 = vmatpush1.msra.mxu0 %v505
        %3141 = vmatprep.subr.mxu0 0.0
        %3142 = vmatpush1.msra.mxu0 %v506
        %3143 = vmatprep.subr.mxu0 0.0
        %3144 = vmatpush1.msra.mxu0 %v507
        %3145 = vmatprep.subr.mxu0 0.0
        %3146 = vmatpush1.msra.mxu0 %v508
        %3147 = vmatprep.subr.mxu0 0.0
        %3148 = vmatpush1.msra.mxu0 %v509
        %3149 = vmatprep.subr.mxu0 0.0
        %3150 = vmatpush1.msra.mxu0 %v510
        %3151 = vmatprep.subr.mxu0 0.0
        %3152 = vmatpush1.msra.mxu0 0.0
        %3153 = vmatprep.subr.mxu0 0.0
        %3154 = vmatpush1.msra.mxu0 0.0
        %3155 = vmatprep.subr.mxu0 0.0
        %3156 = vmatpush1.msra.mxu0 0.0
        %3157 = vmatprep.subr.mxu0 0.0
        %3158 = vmatpush1.msra.mxu0 0.0
        %3159 = vmatprep.subr.mxu0 0.0
        %3160 = vmatpush1.msra.mxu0 0.0
        %3161 = vmatprep.subr.mxu0 0.0
        %3162 = vmatpush1.msra.mxu0 0.0
        %3163 = vmatprep.subr.mxu0 0.0
        %3164 = vmatpush1.msra.mxu0 0.0
        %3165 = vmatprep.subr.mxu0 0.0
        %3166 = vmatpush1.msra.mxu0 0.0
        %3167 = vmatprep.subr.mxu0 0.0
        %3168 = vmatpush1.msra.mxu0 0.0
        %3169 = vmatprep.subr.mxu0 0.0
        %3170 = vmatpush1.msra.mxu0 0.0
        %3171 = vmatprep.subr.mxu0 0.0
        %3172 = vmatpush1.msra.mxu0 0.0
        %3173 = vmatprep.subr.mxu0 0.0
        %3174 = vmatpush1.msra.mxu0 0.0
        %3175 = vmatprep.subr.mxu0 0.0
        %3176 = vmatpush1.msra.mxu0 0.0
        %3177 = vmatprep.subr.mxu0 0.0
        %3178 = vmatpush1.msra.mxu0 0.0
        %3179 = vmatprep.subr.mxu0 0.0
        %3180 = vmatpush1.msra.mxu0 0.0
        %3181 = vmatprep.subr.mxu0 0.0
        %3182 = vmatpush1.msra.mxu0 0.0
        %3183 = vmatprep.mubr.f32.mxu0 0.0
        %3184 = vmatmul.mubr.f32.gmra.mrb[0].mxu0 %v2376
        %v3185 = vpop.f32.mrb[0].mxu0
        %v3186 = vadd.f32 0.0, %v3185
        %v3187 = vpop.f32.mrb[0].mxu0
        %3188 = vmatprep.mubr.f32.mxu0 0.0
        %3189 = vmatmul.mubr.f32.gmra.mrb[0].mxu0 %v2377
        %v3190 = vpop.f32.mrb[0].mxu0
        %v3191 = vadd.f32 0.0, %v3190
        %v3192 = vpop.f32.mrb[0].mxu0
        %3193 = vmatprep.mubr.f32.mxu0 0.0
        %3194 = vmatmul.mubr.f32.gmra.mrb[0].mxu0 %v2378
        %v3195 = vpop.f32.mrb[0].mxu0
        %v3196 = vadd.f32 0.0, %v3195
        %v3197 = vpop.f32.mrb[0].mxu0
        %3198 = vmatprep.mubr.f32.mxu0 0.0
        %3199 = vmatmul.mubr.f32.gmra.mrb[0].mxu0 %v2379
        %v3200 = vpop.f32.mrb[0].mxu0
        %v3201 = vadd.f32 0.0, %v3200
        %v3202 = vpop.f32.mrb[0].mxu0
        %3203 = vmatprep.mubr.f32.mxu0 0.0
        %3204 = vmatmul.mubr.f32.gmra.mrb[0].mxu0 %v2380
        %v3205 = vpop.f32.mrb[0].mxu0
        %v3206 = vadd.f32 0.0, %v3205
        %v3207 = vpop.f32.mrb[0].mxu0
        %3208 = vmatprep.mubr.f32.mxu0 0.0
        %3209 = vmatmul.mubr.f32.gmra.mrb[0].mxu0 %v2381
        %v3210 = vpop.f32.mrb[0].mxu0
        %v3211 = vadd.f32 0.0, %v3210
        %v3212 = vpop.f32.mrb[0].mxu0
        %3213 = vmatprep.mubr.f32.mxu0 0.0
        %3214 = vmatmul.mubr.f32.gmra.mrb[0].mxu0 %v2382
        %v3215 = vpop.f32.mrb[0].mxu0
        %v3216 = vadd.f32 0.0, %v3215
        %v3217 = vpop.f32.mrb[0].mxu0
        %3218 = vmatprep.mubr.f32.mxu0 0.0
        %3219 = vmatmul.mubr.f32.gmra.mrb[0].mxu0 %v2383
        %v3220 = vpop.f32.mrb[0].mxu0
        %v3221 = vadd.f32 0.0, %v3220
        %v3222 = vpop.f32.mrb[0].mxu0
        %3223 = vdwg.mxu0
        %v3224 = vcombine.low %v2451, %v2661
        %v3225 = vcombine.high %v2451, %v2661
        %v3227 = vunpack.c.l.s4 1983009808
        %v3228 = vunpack.c.0.s8 %v3227
        %v3229 = vlaneseq
        %v3230 = vshrl.u32 %v3229, 7
        %v3231 = vsub.s32 %v3228, %v3230
        %v3232 = vrot.slane %v3224, %v3231
        %v3234 = vunpack.c.l.s4 1983009808
        %v3235 = vunpack.c.0.s8 %v3234
        %v3236 = vlaneseq
        %v3237 = vshrl.u32 %v3236, 7
        %v3238 = vsub.s32 %v3235, %v3237
        %v3239 = vrot.slane %v3225, %v3238
        %v3240 = vcombine.low %v2556, %v2766
        %v3241 = vcombine.high %v2556, %v2766
        %v3243 = vunpack.c.l.s4 1983009808
        %v3244 = vunpack.c.0.s8 %v3243
        %v3245 = vlaneseq
        %v3246 = vshrl.u32 %v3245, 7
        %v3247 = vsub.s32 %v3244, %v3246
        %v3248 = vrot.slane %v3240, %v3247
        %v3250 = vunpack.c.l.s4 1983009808
        %v3251 = vunpack.c.0.s8 %v3250
        %v3252 = vlaneseq
        %v3253 = vshrl.u32 %v3252, 7
        %v3254 = vsub.s32 %v3251, %v3253
        %v3255 = vrot.slane %v3241, %v3254
        %v3256 = vcombine.low %v2871, %v3081
        %v3257 = vcombine.high %v2871, %v3081
        %v3259 = vunpack.c.l.s4 1983009808
        %v3260 = vunpack.c.0.s8 %v3259
        %v3261 = vlaneseq
        %v3262 = vshrl.u32 %v3261, 7
        %v3263 = vsub.s32 %v3260, %v3262
        %v3264 = vrot.slane %v3256, %v3263
        %v3266 = vunpack.c.l.s4 1983009808
        %v3267 = vunpack.c.0.s8 %v3266
        %v3268 = vlaneseq
        %v3269 = vshrl.u32 %v3268, 7
        %v3270 = vsub.s32 %v3267, %v3269
        %v3271 = vrot.slane %v3257, %v3270
        %v3272 = vcombine.low %v2976, %v3186
        %v3273 = vcombine.high %v2976, %v3186
        %v3275 = vunpack.c.l.s4 1983009808
        %v3276 = vunpack.c.0.s8 %v3275
        %v3277 = vlaneseq
        %v3278 = vshrl.u32 %v3277, 7
        %v3279 = vsub.s32 %v3276, %v3278
        %v3280 = vrot.slane %v3272, %v3279
        %v3282 = vunpack.c.l.s4 1983009808
        %v3283 = vunpack.c.0.s8 %v3282
        %v3284 = vlaneseq
        %v3285 = vshrl.u32 %v3284, 7
        %v3286 = vsub.s32 %v3283, %v3285
        %v3287 = vrot.slane %v3273, %v3286
        %v3288 = vcombine.low %v3232, %v3248
        %v3289 = vcombine.high %v3232, %v3248
        %v3291 = vunpack.c.l.s4 1934713408
        %v3292 = vunpack.c.0.s8 %v3291
        %v3293 = vlaneseq
        %v3294 = vshrl.u32 %v3293, 7
        %v3295 = vsub.s32 %v3292, %v3294
        %v3296 = vrot.slane %v3288, %v3295
        %v3298 = vunpack.c.l.s4 1934713408
        %v3299 = vunpack.c.0.s8 %v3298
        %v3300 = vlaneseq
        %v3301 = vshrl.u32 %v3300, 7
        %v3302 = vsub.s32 %v3299, %v3301
        %v3303 = vrot.slane %v3289, %v3302
        %v3304 = vcombine.low %v3239, %v3255
        %v3305 = vcombine.high %v3239, %v3255
        %v3307 = vunpack.c.l.s4 1934713408
        %v3308 = vunpack.c.0.s8 %v3307
        %v3309 = vlaneseq
        %v3310 = vshrl.u32 %v3309, 7
        %v3311 = vsub.s32 %v3308, %v3310
        %v3312 = vrot.slane %v3304, %v3311
        %v3314 = vunpack.c.l.s4 1934713408
        %v3315 = vunpack.c.0.s8 %v3314
        %v3316 = vlaneseq
        %v3317 = vshrl.u32 %v3316, 7
        %v3318 = vsub.s32 %v3315, %v3317
        %v3319 = vrot.slane %v3305, %v3318
        %v3320 = vcombine.low %v3264, %v3280
        %v3321 = vcombine.high %v3264, %v3280
        %v3323 = vunpack.c.l.s4 1934713408
        %v3324 = vunpack.c.0.s8 %v3323
        %v3325 = vlaneseq
        %v3326 = vshrl.u32 %v3325, 7
        %v3327 = vsub.s32 %v3324, %v3326
        %v3328 = vrot.slane %v3320, %v3327
        %v3330 = vunpack.c.l.s4 1934713408
        %v3331 = vunpack.c.0.s8 %v3330
        %v3332 = vlaneseq
        %v3333 = vshrl.u32 %v3332, 7
        %v3334 = vsub.s32 %v3331, %v3333
        %v3335 = vrot.slane %v3321, %v3334
        %v3336 = vcombine.low %v3271, %v3287
        %v3337 = vcombine.high %v3271, %v3287
        %v3339 = vunpack.c.l.s4 1934713408
        %v3340 = vunpack.c.0.s8 %v3339
        %v3341 = vlaneseq
        %v3342 = vshrl.u32 %v3341, 7
        %v3343 = vsub.s32 %v3340, %v3342
        %v3344 = vrot.slane %v3336, %v3343
        %v3346 = vunpack.c.l.s4 1934713408
        %v3347 = vunpack.c.0.s8 %v3346
        %v3348 = vlaneseq
        %v3349 = vshrl.u32 %v3348, 7
        %v3350 = vsub.s32 %v3347, %v3349
        %v3351 = vrot.slane %v3337, %v3350
        %v3352 = vcombine.low %v3296, %v3328
        %v3353 = vcombine.high %v3296, %v3328
        %v3354 = vcombine.low %v3303, %v3335
        %v3355 = vcombine.high %v3303, %v3335
        %v3356 = vcombine.low %v3312, %v3344
        %v3357 = vcombine.high %v3312, %v3344
        %v3358 = vcombine.low %v3319, %v3351
        %v3359 = vcombine.high %v3319, %v3351
        %v3360 = vcombine.low %v2456, %v2666
        %v3361 = vcombine.high %v2456, %v2666
        %v3363 = vunpack.c.l.s4 1983009808
        %v3364 = vunpack.c.0.s8 %v3363
        %v3365 = vlaneseq
        %v3366 = vshrl.u32 %v3365, 7
        %v3367 = vsub.s32 %v3364, %v3366
        %v3368 = vrot.slane %v3360, %v3367
        %v3370 = vunpack.c.l.s4 1983009808
        %v3371 = vunpack.c.0.s8 %v3370
        %v3372 = vlaneseq
        %v3373 = vshrl.u32 %v3372, 7
        %v3374 = vsub.s32 %v3371, %v3373
        %v3375 = vrot.slane %v3361, %v3374
        %v3376 = vcombine.low %v2561, %v2771
        %v3377 = vcombine.high %v2561, %v2771
        %v3379 = vunpack.c.l.s4 1983009808
        %v3380 = vunpack.c.0.s8 %v3379
        %v3381 = vlaneseq
        %v3382 = vshrl.u32 %v3381, 7
        %v3383 = vsub.s32 %v3380, %v3382
        %v3384 = vrot.slane %v3376, %v3383
        %v3386 = vunpack.c.l.s4 1983009808
        %v3387 = vunpack.c.0.s8 %v3386
        %v3388 = vlaneseq
        %v3389 = vshrl.u32 %v3388, 7
        %v3390 = vsub.s32 %v3387, %v3389
        %v3391 = vrot.slane %v3377, %v3390
        %v3392 = vcombine.low %v2876, %v3086
        %v3393 = vcombine.high %v2876, %v3086
        %v3395 = vunpack.c.l.s4 1983009808
        %v3396 = vunpack.c.0.s8 %v3395
        %v3397 = vlaneseq
        %v3398 = vshrl.u32 %v3397, 7
        %v3399 = vsub.s32 %v3396, %v3398
        %v3400 = vrot.slane %v3392, %v3399
        %v3402 = vunpack.c.l.s4 1983009808
        %v3403 = vunpack.c.0.s8 %v3402
        %v3404 = vlaneseq
        %v3405 = vshrl.u32 %v3404, 7
        %v3406 = vsub.s32 %v3403, %v3405
        %v3407 = vrot.slane %v3393, %v3406
        %v3408 = vcombine.low %v2981, %v3191
        %v3409 = vcombine.high %v2981, %v3191
        %v3411 = vunpack.c.l.s4 1983009808
        %v3412 = vunpack.c.0.s8 %v3411
        %v3413 = vlaneseq
        %v3414 = vshrl.u32 %v3413, 7
        %v3415 = vsub.s32 %v3412, %v3414
        %v3416 = vrot.slane %v3408, %v3415
        %v3418 = vunpack.c.l.s4 1983009808
        %v3419 = vunpack.c.0.s8 %v3418
        %v3420 = vlaneseq
        %v3421 = vshrl.u32 %v3420, 7
        %v3422 = vsub.s32 %v3419, %v3421
        %v3423 = vrot.slane %v3409, %v3422
        %v3424 = vcombine.low %v3368, %v3384
        %v3425 = vcombine.high %v3368, %v3384
        %v3427 = vunpack.c.l.s4 1934713408
        %v3428 = vunpack.c.0.s8 %v3427
        %v3429 = vlaneseq
        %v3430 = vshrl.u32 %v3429, 7
        %v3431 = vsub.s32 %v3428, %v3430
        %v3432 = vrot.slane %v3424, %v3431
        %v3434 = vunpack.c.l.s4 1934713408
        %v3435 = vunpack.c.0.s8 %v3434
        %v3436 = vlaneseq
        %v3437 = vshrl.u32 %v3436, 7
        %v3438 = vsub.s32 %v3435, %v3437
        %v3439 = vrot.slane %v3425, %v3438
        %v3440 = vcombine.low %v3375, %v3391
        %v3441 = vcombine.high %v3375, %v3391
        %v3443 = vunpack.c.l.s4 1934713408
        %v3444 = vunpack.c.0.s8 %v3443
        %v3445 = vlaneseq
        %v3446 = vshrl.u32 %v3445, 7
        %v3447 = vsub.s32 %v3444, %v3446
        %v3448 = vrot.slane %v3440, %v3447
        %v3450 = vunpack.c.l.s4 1934713408
        %v3451 = vunpack.c.0.s8 %v3450
        %v3452 = vlaneseq
        %v3453 = vshrl.u32 %v3452, 7
        %v3454 = vsub.s32 %v3451, %v3453
        %v3455 = vrot.slane %v3441, %v3454
        %v3456 = vcombine.low %v3400, %v3416
        %v3457 = vcombine.high %v3400, %v3416
        %v3459 = vunpack.c.l.s4 1934713408
        %v3460 = vunpack.c.0.s8 %v3459
        %v3461 = vlaneseq
        %v3462 = vshrl.u32 %v3461, 7
        %v3463 = vsub.s32 %v3460, %v3462
        %v3464 = vrot.slane %v3456, %v3463
        %v3466 = vunpack.c.l.s4 1934713408
        %v3467 = vunpack.c.0.s8 %v3466
        %v3468 = vlaneseq
        %v3469 = vshrl.u32 %v3468, 7
        %v3470 = vsub.s32 %v3467, %v3469
        %v3471 = vrot.slane %v3457, %v3470
        %v3472 = vcombine.low %v3407, %v3423
        %v3473 = vcombine.high %v3407, %v3423
        %v3475 = vunpack.c.l.s4 1934713408
        %v3476 = vunpack.c.0.s8 %v3475
        %v3477 = vlaneseq
        %v3478 = vshrl.u32 %v3477, 7
        %v3479 = vsub.s32 %v3476, %v3478
        %v3480 = vrot.slane %v3472, %v3479
        %v3482 = vunpack.c.l.s4 1934713408
        %v3483 = vunpack.c.0.s8 %v3482
        %v3484 = vlaneseq
        %v3485 = vshrl.u32 %v3484, 7
        %v3486 = vsub.s32 %v3483, %v3485
        %v3487 = vrot.slane %v3473, %v3486
        %v3488 = vcombine.low %v3432, %v3464
        %v3489 = vcombine.high %v3432, %v3464
        %v3490 = vcombine.low %v3439, %v3471
        %v3491 = vcombine.high %v3439, %v3471
        %v3492 = vcombine.low %v3448, %v3480
        %v3493 = vcombine.high %v3448, %v3480
        %v3494 = vcombine.low %v3455, %v3487
        %v3495 = vcombine.high %v3455, %v3487
        %v3496 = vcombine.low %v2461, %v2671
        %v3497 = vcombine.high %v2461, %v2671
        %v3499 = vunpack.c.l.s4 1983009808
        %v3500 = vunpack.c.0.s8 %v3499
        %v3501 = vlaneseq
        %v3502 = vshrl.u32 %v3501, 7
        %v3503 = vsub.s32 %v3500, %v3502
        %v3504 = vrot.slane %v3496, %v3503
        %v3506 = vunpack.c.l.s4 1983009808
        %v3507 = vunpack.c.0.s8 %v3506
        %v3508 = vlaneseq
        %v3509 = vshrl.u32 %v3508, 7
        %v3510 = vsub.s32 %v3507, %v3509
        %v3511 = vrot.slane %v3497, %v3510
        %v3512 = vcombine.low %v2566, %v2776
        %v3513 = vcombine.high %v2566, %v2776
        %v3515 = vunpack.c.l.s4 1983009808
        %v3516 = vunpack.c.0.s8 %v3515
        %v3517 = vlaneseq
        %v3518 = vshrl.u32 %v3517, 7
        %v3519 = vsub.s32 %v3516, %v3518
        %v3520 = vrot.slane %v3512, %v3519
        %v3522 = vunpack.c.l.s4 1983009808
        %v3523 = vunpack.c.0.s8 %v3522
        %v3524 = vlaneseq
        %v3525 = vshrl.u32 %v3524, 7
        %v3526 = vsub.s32 %v3523, %v3525
        %v3527 = vrot.slane %v3513, %v3526
        %v3528 = vcombine.low %v2881, %v3091
        %v3529 = vcombine.high %v2881, %v3091
        %v3531 = vunpack.c.l.s4 1983009808
        %v3532 = vunpack.c.0.s8 %v3531
        %v3533 = vlaneseq
        %v3534 = vshrl.u32 %v3533, 7
        %v3535 = vsub.s32 %v3532, %v3534
        %v3536 = vrot.slane %v3528, %v3535
        %v3538 = vunpack.c.l.s4 1983009808
        %v3539 = vunpack.c.0.s8 %v3538
        %v3540 = vlaneseq
        %v3541 = vshrl.u32 %v3540, 7
        %v3542 = vsub.s32 %v3539, %v3541
        %v3543 = vrot.slane %v3529, %v3542
        %v3544 = vcombine.low %v2986, %v3196
        %v3545 = vcombine.high %v2986, %v3196
        %v3547 = vunpack.c.l.s4 1983009808
        %v3548 = vunpack.c.0.s8 %v3547
        %v3549 = vlaneseq
        %v3550 = vshrl.u32 %v3549, 7
        %v3551 = vsub.s32 %v3548, %v3550
        %v3552 = vrot.slane %v3544, %v3551
        %v3554 = vunpack.c.l.s4 1983009808
        %v3555 = vunpack.c.0.s8 %v3554
        %v3556 = vlaneseq
        %v3557 = vshrl.u32 %v3556, 7
        %v3558 = vsub.s32 %v3555, %v3557
        %v3559 = vrot.slane %v3545, %v3558
        %v3560 = vcombine.low %v3504, %v3520
        %v3561 = vcombine.high %v3504, %v3520
        %v3563 = vunpack.c.l.s4 1934713408
        %v3564 = vunpack.c.0.s8 %v3563
        %v3565 = vlaneseq
        %v3566 = vshrl.u32 %v3565, 7
        %v3567 = vsub.s32 %v3564, %v3566
        %v3568 = vrot.slane %v3560, %v3567
        %v3570 = vunpack.c.l.s4 1934713408
        %v3571 = vunpack.c.0.s8 %v3570
        %v3572 = vlaneseq
        %v3573 = vshrl.u32 %v3572, 7
        %v3574 = vsub.s32 %v3571, %v3573
        %v3575 = vrot.slane %v3561, %v3574
        %v3576 = vcombine.low %v3511, %v3527
        %v3577 = vcombine.high %v3511, %v3527
        %v3579 = vunpack.c.l.s4 1934713408
        %v3580 = vunpack.c.0.s8 %v3579
        %v3581 = vlaneseq
        %v3582 = vshrl.u32 %v3581, 7
        %v3583 = vsub.s32 %v3580, %v3582
        %v3584 = vrot.slane %v3576, %v3583
        %v3586 = vunpack.c.l.s4 1934713408
        %v3587 = vunpack.c.0.s8 %v3586
        %v3588 = vlaneseq
        %v3589 = vshrl.u32 %v3588, 7
        %v3590 = vsub.s32 %v3587, %v3589
        %v3591 = vrot.slane %v3577, %v3590
        %v3592 = vcombine.low %v3536, %v3552
        %v3593 = vcombine.high %v3536, %v3552
        %v3595 = vunpack.c.l.s4 1934713408
        %v3596 = vunpack.c.0.s8 %v3595
        %v3597 = vlaneseq
        %v3598 = vshrl.u32 %v3597, 7
        %v3599 = vsub.s32 %v3596, %v3598
        %v3600 = vrot.slane %v3592, %v3599
        %v3602 = vunpack.c.l.s4 1934713408
        %v3603 = vunpack.c.0.s8 %v3602
        %v3604 = vlaneseq
        %v3605 = vshrl.u32 %v3604, 7
        %v3606 = vsub.s32 %v3603, %v3605
        %v3607 = vrot.slane %v3593, %v3606
        %v3608 = vcombine.low %v3543, %v3559
        %v3609 = vcombine.high %v3543, %v3559
        %v3611 = vunpack.c.l.s4 1934713408
        %v3612 = vunpack.c.0.s8 %v3611
        %v3613 = vlaneseq
        %v3614 = vshrl.u32 %v3613, 7
        %v3615 = vsub.s32 %v3612, %v3614
        %v3616 = vrot.slane %v3608, %v3615
        %v3618 = vunpack.c.l.s4 1934713408
        %v3619 = vunpack.c.0.s8 %v3618
        %v3620 = vlaneseq
        %v3621 = vshrl.u32 %v3620, 7
        %v3622 = vsub.s32 %v3619, %v3621
        %v3623 = vrot.slane %v3609, %v3622
        %v3624 = vcombine.low %v3568, %v3600
        %v3625 = vcombine.high %v3568, %v3600
        %v3626 = vcombine.low %v3575, %v3607
        %v3627 = vcombine.high %v3575, %v3607
        %v3628 = vcombine.low %v3584, %v3616
        %v3629 = vcombine.high %v3584, %v3616
        %v3630 = vcombine.low %v3591, %v3623
        %v3631 = vcombine.high %v3591, %v3623
        %v3632 = vcombine.low %v2466, %v2676
        %v3633 = vcombine.high %v2466, %v2676
        %v3635 = vunpack.c.l.s4 1983009808
        %v3636 = vunpack.c.0.s8 %v3635
        %v3637 = vlaneseq
        %v3638 = vshrl.u32 %v3637, 7
        %v3639 = vsub.s32 %v3636, %v3638
        %v3640 = vrot.slane %v3632, %v3639
        %v3642 = vunpack.c.l.s4 1983009808
        %v3643 = vunpack.c.0.s8 %v3642
        %v3644 = vlaneseq
        %v3645 = vshrl.u32 %v3644, 7
        %v3646 = vsub.s32 %v3643, %v3645
        %v3647 = vrot.slane %v3633, %v3646
        %v3648 = vcombine.low %v2571, %v2781
        %v3649 = vcombine.high %v2571, %v2781
        %v3651 = vunpack.c.l.s4 1983009808
        %v3652 = vunpack.c.0.s8 %v3651
        %v3653 = vlaneseq
        %v3654 = vshrl.u32 %v3653, 7
        %v3655 = vsub.s32 %v3652, %v3654
        %v3656 = vrot.slane %v3648, %v3655
        %v3658 = vunpack.c.l.s4 1983009808
        %v3659 = vunpack.c.0.s8 %v3658
        %v3660 = vlaneseq
        %v3661 = vshrl.u32 %v3660, 7
        %v3662 = vsub.s32 %v3659, %v3661
        %v3663 = vrot.slane %v3649, %v3662
        %v3664 = vcombine.low %v2886, %v3096
        %v3665 = vcombine.high %v2886, %v3096
        %v3667 = vunpack.c.l.s4 1983009808
        %v3668 = vunpack.c.0.s8 %v3667
        %v3669 = vlaneseq
        %v3670 = vshrl.u32 %v3669, 7
        %v3671 = vsub.s32 %v3668, %v3670
        %v3672 = vrot.slane %v3664, %v3671
        %v3674 = vunpack.c.l.s4 1983009808
        %v3675 = vunpack.c.0.s8 %v3674
        %v3676 = vlaneseq
        %v3677 = vshrl.u32 %v3676, 7
        %v3678 = vsub.s32 %v3675, %v3677
        %v3679 = vrot.slane %v3665, %v3678
        %v3680 = vcombine.low %v2991, %v3201
        %v3681 = vcombine.high %v2991, %v3201
        %v3683 = vunpack.c.l.s4 1983009808
        %v3684 = vunpack.c.0.s8 %v3683
        %v3685 = vlaneseq
        %v3686 = vshrl.u32 %v3685, 7
        %v3687 = vsub.s32 %v3684, %v3686
        %v3688 = vrot.slane %v3680, %v3687
        %v3690 = vunpack.c.l.s4 1983009808
        %v3691 = vunpack.c.0.s8 %v3690
        %v3692 = vlaneseq
        %v3693 = vshrl.u32 %v3692, 7
        %v3694 = vsub.s32 %v3691, %v3693
        %v3695 = vrot.slane %v3681, %v3694
        %v3696 = vcombine.low %v3640, %v3656
        %v3697 = vcombine.high %v3640, %v3656
        %v3699 = vunpack.c.l.s4 1934713408
        %v3700 = vunpack.c.0.s8 %v3699
        %v3701 = vlaneseq
        %v3702 = vshrl.u32 %v3701, 7
        %v3703 = vsub.s32 %v3700, %v3702
        %v3704 = vrot.slane %v3696, %v3703
        %v3706 = vunpack.c.l.s4 1934713408
        %v3707 = vunpack.c.0.s8 %v3706
        %v3708 = vlaneseq
        %v3709 = vshrl.u32 %v3708, 7
        %v3710 = vsub.s32 %v3707, %v3709
        %v3711 = vrot.slane %v3697, %v3710
        %v3712 = vcombine.low %v3647, %v3663
        %v3713 = vcombine.high %v3647, %v3663
        %v3715 = vunpack.c.l.s4 1934713408
        %v3716 = vunpack.c.0.s8 %v3715
        %v3717 = vlaneseq
        %v3718 = vshrl.u32 %v3717, 7
        %v3719 = vsub.s32 %v3716, %v3718
        %v3720 = vrot.slane %v3712, %v3719
        %v3722 = vunpack.c.l.s4 1934713408
        %v3723 = vunpack.c.0.s8 %v3722
        %v3724 = vlaneseq
        %v3725 = vshrl.u32 %v3724, 7
        %v3726 = vsub.s32 %v3723, %v3725
        %v3727 = vrot.slane %v3713, %v3726
        %v3728 = vcombine.low %v3672, %v3688
        %v3729 = vcombine.high %v3672, %v3688
        %v3731 = vunpack.c.l.s4 1934713408
        %v3732 = vunpack.c.0.s8 %v3731
        %v3733 = vlaneseq
        %v3734 = vshrl.u32 %v3733, 7
        %v3735 = vsub.s32 %v3732, %v3734
        %v3736 = vrot.slane %v3728, %v3735
        %v3738 = vunpack.c.l.s4 1934713408
        %v3739 = vunpack.c.0.s8 %v3738
        %v3740 = vlaneseq
        %v3741 = vshrl.u32 %v3740, 7
        %v3742 = vsub.s32 %v3739, %v3741
        %v3743 = vrot.slane %v3729, %v3742
        %v3744 = vcombine.low %v3679, %v3695
        %v3745 = vcombine.high %v3679, %v3695
        %v3747 = vunpack.c.l.s4 1934713408
        %v3748 = vunpack.c.0.s8 %v3747
        %v3749 = vlaneseq
        %v3750 = vshrl.u32 %v3749, 7
        %v3751 = vsub.s32 %v3748, %v3750
        %v3752 = vrot.slane %v3744, %v3751
        %v3754 = vunpack.c.l.s4 1934713408
        %v3755 = vunpack.c.0.s8 %v3754
        %v3756 = vlaneseq
        %v3757 = vshrl.u32 %v3756, 7
        %v3758 = vsub.s32 %v3755, %v3757
        %v3759 = vrot.slane %v3745, %v3758
        %v3760 = vcombine.low %v3704, %v3736
        %v3761 = vcombine.high %v3704, %v3736
        %v3762 = vcombine.low %v3711, %v3743
        %v3763 = vcombine.high %v3711, %v3743
        %v3764 = vcombine.low %v3720, %v3752
        %v3765 = vcombine.high %v3720, %v3752
        %v3766 = vcombine.low %v3727, %v3759
        %v3767 = vcombine.high %v3727, %v3759
        %v3768 = vcombine.low %v2471, %v2681
        %v3769 = vcombine.high %v2471, %v2681
        %v3771 = vunpack.c.l.s4 1983009808
        %v3772 = vunpack.c.0.s8 %v3771
        %v3773 = vlaneseq
        %v3774 = vshrl.u32 %v3773, 7
        %v3775 = vsub.s32 %v3772, %v3774
        %v3776 = vrot.slane %v3768, %v3775
        %v3778 = vunpack.c.l.s4 1983009808
        %v3779 = vunpack.c.0.s8 %v3778
        %v3780 = vlaneseq
        %v3781 = vshrl.u32 %v3780, 7
        %v3782 = vsub.s32 %v3779, %v3781
        %v3783 = vrot.slane %v3769, %v3782
        %v3784 = vcombine.low %v2576, %v2786
        %v3785 = vcombine.high %v2576, %v2786
        %v3787 = vunpack.c.l.s4 1983009808
        %v3788 = vunpack.c.0.s8 %v3787
        %v3789 = vlaneseq
        %v3790 = vshrl.u32 %v3789, 7
        %v3791 = vsub.s32 %v3788, %v3790
        %v3792 = vrot.slane %v3784, %v3791
        %v3794 = vunpack.c.l.s4 1983009808
        %v3795 = vunpack.c.0.s8 %v3794
        %v3796 = vlaneseq
        %v3797 = vshrl.u32 %v3796, 7
        %v3798 = vsub.s32 %v3795, %v3797
        %v3799 = vrot.slane %v3785, %v3798
        %v3800 = vcombine.low %v2891, %v3101
        %v3801 = vcombine.high %v2891, %v3101
        %v3803 = vunpack.c.l.s4 1983009808
        %v3804 = vunpack.c.0.s8 %v3803
        %v3805 = vlaneseq
        %v3806 = vshrl.u32 %v3805, 7
        %v3807 = vsub.s32 %v3804, %v3806
        %v3808 = vrot.slane %v3800, %v3807
        %v3810 = vunpack.c.l.s4 1983009808
        %v3811 = vunpack.c.0.s8 %v3810
        %v3812 = vlaneseq
        %v3813 = vshrl.u32 %v3812, 7
        %v3814 = vsub.s32 %v3811, %v3813
        %v3815 = vrot.slane %v3801, %v3814
        %v3816 = vcombine.low %v2996, %v3206
        %v3817 = vcombine.high %v2996, %v3206
        %v3819 = vunpack.c.l.s4 1983009808
        %v3820 = vunpack.c.0.s8 %v3819
        %v3821 = vlaneseq
        %v3822 = vshrl.u32 %v3821, 7
        %v3823 = vsub.s32 %v3820, %v3822
        %v3824 = vrot.slane %v3816, %v3823
        %v3826 = vunpack.c.l.s4 1983009808
        %v3827 = vunpack.c.0.s8 %v3826
        %v3828 = vlaneseq
        %v3829 = vshrl.u32 %v3828, 7
        %v3830 = vsub.s32 %v3827, %v3829
        %v3831 = vrot.slane %v3817, %v3830
        %v3832 = vcombine.low %v3776, %v3792
        %v3833 = vcombine.high %v3776, %v3792
        %v3835 = vunpack.c.l.s4 1934713408
        %v3836 = vunpack.c.0.s8 %v3835
        %v3837 = vlaneseq
        %v3838 = vshrl.u32 %v3837, 7
        %v3839 = vsub.s32 %v3836, %v3838
        %v3840 = vrot.slane %v3832, %v3839
        %v3842 = vunpack.c.l.s4 1934713408
        %v3843 = vunpack.c.0.s8 %v3842
        %v3844 = vlaneseq
        %v3845 = vshrl.u32 %v3844, 7
        %v3846 = vsub.s32 %v3843, %v3845
        %v3847 = vrot.slane %v3833, %v3846
        %v3848 = vcombine.low %v3783, %v3799
        %v3849 = vcombine.high %v3783, %v3799
        %v3851 = vunpack.c.l.s4 1934713408
        %v3852 = vunpack.c.0.s8 %v3851
        %v3853 = vlaneseq
        %v3854 = vshrl.u32 %v3853, 7
        %v3855 = vsub.s32 %v3852, %v3854
        %v3856 = vrot.slane %v3848, %v3855
        %v3858 = vunpack.c.l.s4 1934713408
        %v3859 = vunpack.c.0.s8 %v3858
        %v3860 = vlaneseq
        %v3861 = vshrl.u32 %v3860, 7
        %v3862 = vsub.s32 %v3859, %v3861
        %v3863 = vrot.slane %v3849, %v3862
        %v3864 = vcombine.low %v3808, %v3824
        %v3865 = vcombine.high %v3808, %v3824
        %v3867 = vunpack.c.l.s4 1934713408
        %v3868 = vunpack.c.0.s8 %v3867
        %v3869 = vlaneseq
        %v3870 = vshrl.u32 %v3869, 7
        %v3871 = vsub.s32 %v3868, %v3870
        %v3872 = vrot.slane %v3864, %v3871
        %v3874 = vunpack.c.l.s4 1934713408
        %v3875 = vunpack.c.0.s8 %v3874
        %v3876 = vlaneseq
        %v3877 = vshrl.u32 %v3876, 7
        %v3878 = vsub.s32 %v3875, %v3877
        %v3879 = vrot.slane %v3865, %v3878
        %v3880 = vcombine.low %v3815, %v3831
        %v3881 = vcombine.high %v3815, %v3831
        %v3883 = vunpack.c.l.s4 1934713408
        %v3884 = vunpack.c.0.s8 %v3883
        %v3885 = vlaneseq
        %v3886 = vshrl.u32 %v3885, 7
        %v3887 = vsub.s32 %v3884, %v3886
        %v3888 = vrot.slane %v3880, %v3887
        %v3890 = vunpack.c.l.s4 1934713408
        %v3891 = vunpack.c.0.s8 %v3890
        %v3892 = vlaneseq
        %v3893 = vshrl.u32 %v3892, 7
        %v3894 = vsub.s32 %v3891, %v3893
        %v3895 = vrot.slane %v3881, %v3894
        %v3896 = vcombine.low %v3840, %v3872
        %v3897 = vcombine.high %v3840, %v3872
        %v3898 = vcombine.low %v3847, %v3879
        %v3899 = vcombine.high %v3847, %v3879
        %v3900 = vcombine.low %v3856, %v3888
        %v3901 = vcombine.high %v3856, %v3888
        %v3902 = vcombine.low %v3863, %v3895
        %v3903 = vcombine.high %v3863, %v3895
        %v3904 = vcombine.low %v2476, %v2686
        %v3905 = vcombine.high %v2476, %v2686
        %v3907 = vunpack.c.l.s4 1983009808
        %v3908 = vunpack.c.0.s8 %v3907
        %v3909 = vlaneseq
        %v3910 = vshrl.u32 %v3909, 7
        %v3911 = vsub.s32 %v3908, %v3910
        %v3912 = vrot.slane %v3904, %v3911
        %v3914 = vunpack.c.l.s4 1983009808
        %v3915 = vunpack.c.0.s8 %v3914
        %v3916 = vlaneseq
        %v3917 = vshrl.u32 %v3916, 7
        %v3918 = vsub.s32 %v3915, %v3917
        %v3919 = vrot.slane %v3905, %v3918
        %v3920 = vcombine.low %v2581, %v2791
        %v3921 = vcombine.high %v2581, %v2791
        %v3923 = vunpack.c.l.s4 1983009808
        %v3924 = vunpack.c.0.s8 %v3923
        %v3925 = vlaneseq
        %v3926 = vshrl.u32 %v3925, 7
        %v3927 = vsub.s32 %v3924, %v3926
        %v3928 = vrot.slane %v3920, %v3927
        %v3930 = vunpack.c.l.s4 1983009808
        %v3931 = vunpack.c.0.s8 %v3930
        %v3932 = vlaneseq
        %v3933 = vshrl.u32 %v3932, 7
        %v3934 = vsub.s32 %v3931, %v3933
        %v3935 = vrot.slane %v3921, %v3934
        %v3936 = vcombine.low %v2896, %v3106
        %v3937 = vcombine.high %v2896, %v3106
        %v3939 = vunpack.c.l.s4 1983009808
        %v3940 = vunpack.c.0.s8 %v3939
        %v3941 = vlaneseq
        %v3942 = vshrl.u32 %v3941, 7
        %v3943 = vsub.s32 %v3940, %v3942
        %v3944 = vrot.slane %v3936, %v3943
        %v3946 = vunpack.c.l.s4 1983009808
        %v3947 = vunpack.c.0.s8 %v3946
        %v3948 = vlaneseq
        %v3949 = vshrl.u32 %v3948, 7
        %v3950 = vsub.s32 %v3947, %v3949
        %v3951 = vrot.slane %v3937, %v3950
        %v3952 = vcombine.low %v3001, %v3211
        %v3953 = vcombine.high %v3001, %v3211
        %v3955 = vunpack.c.l.s4 1983009808
        %v3956 = vunpack.c.0.s8 %v3955
        %v3957 = vlaneseq
        %v3958 = vshrl.u32 %v3957, 7
        %v3959 = vsub.s32 %v3956, %v3958
        %v3960 = vrot.slane %v3952, %v3959
        %v3962 = vunpack.c.l.s4 1983009808
        %v3963 = vunpack.c.0.s8 %v3962
        %v3964 = vlaneseq
        %v3965 = vshrl.u32 %v3964, 7
        %v3966 = vsub.s32 %v3963, %v3965
        %v3967 = vrot.slane %v3953, %v3966
        %v3968 = vcombine.low %v3912, %v3928
        %v3969 = vcombine.high %v3912, %v3928
        %v3971 = vunpack.c.l.s4 1934713408
        %v3972 = vunpack.c.0.s8 %v3971
        %v3973 = vlaneseq
        %v3974 = vshrl.u32 %v3973, 7
        %v3975 = vsub.s32 %v3972, %v3974
        %v3976 = vrot.slane %v3968, %v3975
        %v3978 = vunpack.c.l.s4 1934713408
        %v3979 = vunpack.c.0.s8 %v3978
        %v3980 = vlaneseq
        %v3981 = vshrl.u32 %v3980, 7
        %v3982 = vsub.s32 %v3979, %v3981
        %v3983 = vrot.slane %v3969, %v3982
        %v3984 = vcombine.low %v3919, %v3935
        %v3985 = vcombine.high %v3919, %v3935
        %v3987 = vunpack.c.l.s4 1934713408
        %v3988 = vunpack.c.0.s8 %v3987
        %v3989 = vlaneseq
        %v3990 = vshrl.u32 %v3989, 7
        %v3991 = vsub.s32 %v3988, %v3990
        %v3992 = vrot.slane %v3984, %v3991
        %v3994 = vunpack.c.l.s4 1934713408
        %v3995 = vunpack.c.0.s8 %v3994
        %v3996 = vlaneseq
        %v3997 = vshrl.u32 %v3996, 7
        %v3998 = vsub.s32 %v3995, %v3997
        %v3999 = vrot.slane %v3985, %v3998
        %v4000 = vcombine.low %v3944, %v3960
        %v4001 = vcombine.high %v3944, %v3960
        %v4003 = vunpack.c.l.s4 1934713408
        %v4004 = vunpack.c.0.s8 %v4003
        %v4005 = vlaneseq
        %v4006 = vshrl.u32 %v4005, 7
        %v4007 = vsub.s32 %v4004, %v4006
        %v4008 = vrot.slane %v4000, %v4007
        %v4010 = vunpack.c.l.s4 1934713408
        %v4011 = vunpack.c.0.s8 %v4010
        %v4012 = vlaneseq
        %v4013 = vshrl.u32 %v4012, 7
        %v4014 = vsub.s32 %v4011, %v4013
        %v4015 = vrot.slane %v4001, %v4014
        %v4016 = vcombine.low %v3951, %v3967
        %v4017 = vcombine.high %v3951, %v3967
        %v4019 = vunpack.c.l.s4 1934713408
        %v4020 = vunpack.c.0.s8 %v4019
        %v4021 = vlaneseq
        %v4022 = vshrl.u32 %v4021, 7
        %v4023 = vsub.s32 %v4020, %v4022
        %v4024 = vrot.slane %v4016, %v4023
        %v4026 = vunpack.c.l.s4 1934713408
        %v4027 = vunpack.c.0.s8 %v4026
        %v4028 = vlaneseq
        %v4029 = vshrl.u32 %v4028, 7
        %v4030 = vsub.s32 %v4027, %v4029
        %v4031 = vrot.slane %v4017, %v4030
        %v4032 = vcombine.low %v3976, %v4008
        %v4033 = vcombine.high %v3976, %v4008
        %v4034 = vcombine.low %v3983, %v4015
        %v4035 = vcombine.high %v3983, %v4015
        %v4036 = vcombine.low %v3992, %v4024
        %v4037 = vcombine.high %v3992, %v4024
        %v4038 = vcombine.low %v3999, %v4031
        %v4039 = vcombine.high %v3999, %v4031
        %v4040 = vcombine.low %v2481, %v2691
        %v4041 = vcombine.high %v2481, %v2691
        %v4043 = vunpack.c.l.s4 1983009808
        %v4044 = vunpack.c.0.s8 %v4043
        %v4045 = vlaneseq
        %v4046 = vshrl.u32 %v4045, 7
        %v4047 = vsub.s32 %v4044, %v4046
        %v4048 = vrot.slane %v4040, %v4047
        %v4050 = vunpack.c.l.s4 1983009808
        %v4051 = vunpack.c.0.s8 %v4050
        %v4052 = vlaneseq
        %v4053 = vshrl.u32 %v4052, 7
        %v4054 = vsub.s32 %v4051, %v4053
        %v4055 = vrot.slane %v4041, %v4054
        %v4056 = vcombine.low %v2586, %v2796
        %v4057 = vcombine.high %v2586, %v2796
        %v4059 = vunpack.c.l.s4 1983009808
        %v4060 = vunpack.c.0.s8 %v4059
        %v4061 = vlaneseq
        %v4062 = vshrl.u32 %v4061, 7
        %v4063 = vsub.s32 %v4060, %v4062
        %v4064 = vrot.slane %v4056, %v4063
        %v4066 = vunpack.c.l.s4 1983009808
        %v4067 = vunpack.c.0.s8 %v4066
        %v4068 = vlaneseq
        %v4069 = vshrl.u32 %v4068, 7
        %v4070 = vsub.s32 %v4067, %v4069
        %v4071 = vrot.slane %v4057, %v4070
        %v4072 = vcombine.low %v2901, %v3111
        %v4073 = vcombine.high %v2901, %v3111
        %v4075 = vunpack.c.l.s4 1983009808
        %v4076 = vunpack.c.0.s8 %v4075
        %v4077 = vlaneseq
        %v4078 = vshrl.u32 %v4077, 7
        %v4079 = vsub.s32 %v4076, %v4078
        %v4080 = vrot.slane %v4072, %v4079
        %v4082 = vunpack.c.l.s4 1983009808
        %v4083 = vunpack.c.0.s8 %v4082
        %v4084 = vlaneseq
        %v4085 = vshrl.u32 %v4084, 7
        %v4086 = vsub.s32 %v4083, %v4085
        %v4087 = vrot.slane %v4073, %v4086
        %v4088 = vcombine.low %v3006, %v3216
        %v4089 = vcombine.high %v3006, %v3216
        %v4091 = vunpack.c.l.s4 1983009808
        %v4092 = vunpack.c.0.s8 %v4091
        %v4093 = vlaneseq
        %v4094 = vshrl.u32 %v4093, 7
        %v4095 = vsub.s32 %v4092, %v4094
        %v4096 = vrot.slane %v4088, %v4095
        %v4098 = vunpack.c.l.s4 1983009808
        %v4099 = vunpack.c.0.s8 %v4098
        %v4100 = vlaneseq
        %v4101 = vshrl.u32 %v4100, 7
        %v4102 = vsub.s32 %v4099, %v4101
        %v4103 = vrot.slane %v4089, %v4102
        %v4104 = vcombine.low %v4048, %v4064
        %v4105 = vcombine.high %v4048, %v4064
        %v4107 = vunpack.c.l.s4 1934713408
        %v4108 = vunpack.c.0.s8 %v4107
        %v4109 = vlaneseq
        %v4110 = vshrl.u32 %v4109, 7
        %v4111 = vsub.s32 %v4108, %v4110
        %v4112 = vrot.slane %v4104, %v4111
        %v4114 = vunpack.c.l.s4 1934713408
        %v4115 = vunpack.c.0.s8 %v4114
        %v4116 = vlaneseq
        %v4117 = vshrl.u32 %v4116, 7
        %v4118 = vsub.s32 %v4115, %v4117
        %v4119 = vrot.slane %v4105, %v4118
        %v4120 = vcombine.low %v4055, %v4071
        %v4121 = vcombine.high %v4055, %v4071
        %v4123 = vunpack.c.l.s4 1934713408
        %v4124 = vunpack.c.0.s8 %v4123
        %v4125 = vlaneseq
        %v4126 = vshrl.u32 %v4125, 7
        %v4127 = vsub.s32 %v4124, %v4126
        %v4128 = vrot.slane %v4120, %v4127
        %v4130 = vunpack.c.l.s4 1934713408
        %v4131 = vunpack.c.0.s8 %v4130
        %v4132 = vlaneseq
        %v4133 = vshrl.u32 %v4132, 7
        %v4134 = vsub.s32 %v4131, %v4133
        %v4135 = vrot.slane %v4121, %v4134
        %v4136 = vcombine.low %v4080, %v4096
        %v4137 = vcombine.high %v4080, %v4096
        %v4139 = vunpack.c.l.s4 1934713408
        %v4140 = vunpack.c.0.s8 %v4139
        %v4141 = vlaneseq
        %v4142 = vshrl.u32 %v4141, 7
        %v4143 = vsub.s32 %v4140, %v4142
        %v4144 = vrot.slane %v4136, %v4143
        %v4146 = vunpack.c.l.s4 1934713408
        %v4147 = vunpack.c.0.s8 %v4146
        %v4148 = vlaneseq
        %v4149 = vshrl.u32 %v4148, 7
        %v4150 = vsub.s32 %v4147, %v4149
        %v4151 = vrot.slane %v4137, %v4150
        %v4152 = vcombine.low %v4087, %v4103
        %v4153 = vcombine.high %v4087, %v4103
        %v4155 = vunpack.c.l.s4 1934713408
        %v4156 = vunpack.c.0.s8 %v4155
        %v4157 = vlaneseq
        %v4158 = vshrl.u32 %v4157, 7
        %v4159 = vsub.s32 %v4156, %v4158
        %v4160 = vrot.slane %v4152, %v4159
        %v4162 = vunpack.c.l.s4 1934713408
        %v4163 = vunpack.c.0.s8 %v4162
        %v4164 = vlaneseq
        %v4165 = vshrl.u32 %v4164, 7
        %v4166 = vsub.s32 %v4163, %v4165
        %v4167 = vrot.slane %v4153, %v4166
        %v4168 = vcombine.low %v4112, %v4144
        %v4169 = vcombine.high %v4112, %v4144
        %v4170 = vcombine.low %v4119, %v4151
        %v4171 = vcombine.high %v4119, %v4151
        %v4172 = vcombine.low %v4128, %v4160
        %v4173 = vcombine.high %v4128, %v4160
        %v4174 = vcombine.low %v4135, %v4167
        %v4175 = vcombine.high %v4135, %v4167
        %v4176 = vcombine.low %v2486, %v2696
        %v4177 = vcombine.high %v2486, %v2696
        %v4179 = vunpack.c.l.s4 1983009808
        %v4180 = vunpack.c.0.s8 %v4179
        %v4181 = vlaneseq
        %v4182 = vshrl.u32 %v4181, 7
        %v4183 = vsub.s32 %v4180, %v4182
        %v4184 = vrot.slane %v4176, %v4183
        %v4186 = vunpack.c.l.s4 1983009808
        %v4187 = vunpack.c.0.s8 %v4186
        %v4188 = vlaneseq
        %v4189 = vshrl.u32 %v4188, 7
        %v4190 = vsub.s32 %v4187, %v4189
        %v4191 = vrot.slane %v4177, %v4190
        %v4192 = vcombine.low %v2591, %v2801
        %v4193 = vcombine.high %v2591, %v2801
        %v4195 = vunpack.c.l.s4 1983009808
        %v4196 = vunpack.c.0.s8 %v4195
        %v4197 = vlaneseq
        %v4198 = vshrl.u32 %v4197, 7
        %v4199 = vsub.s32 %v4196, %v4198
        %v4200 = vrot.slane %v4192, %v4199
        %v4202 = vunpack.c.l.s4 1983009808
        %v4203 = vunpack.c.0.s8 %v4202
        %v4204 = vlaneseq
        %v4205 = vshrl.u32 %v4204, 7
        %v4206 = vsub.s32 %v4203, %v4205
        %v4207 = vrot.slane %v4193, %v4206
        %v4208 = vcombine.low %v2906, %v3116
        %v4209 = vcombine.high %v2906, %v3116
        %v4211 = vunpack.c.l.s4 1983009808
        %v4212 = vunpack.c.0.s8 %v4211
        %v4213 = vlaneseq
        %v4214 = vshrl.u32 %v4213, 7
        %v4215 = vsub.s32 %v4212, %v4214
        %v4216 = vrot.slane %v4208, %v4215
        %v4218 = vunpack.c.l.s4 1983009808
        %v4219 = vunpack.c.0.s8 %v4218
        %v4220 = vlaneseq
        %v4221 = vshrl.u32 %v4220, 7
        %v4222 = vsub.s32 %v4219, %v4221
        %v4223 = vrot.slane %v4209, %v4222
        %v4224 = vcombine.low %v3011, %v3221
        %v4225 = vcombine.high %v3011, %v3221
        %v4227 = vunpack.c.l.s4 1983009808
        %v4228 = vunpack.c.0.s8 %v4227
        %v4229 = vlaneseq
        %v4230 = vshrl.u32 %v4229, 7
        %v4231 = vsub.s32 %v4228, %v4230
        %v4232 = vrot.slane %v4224, %v4231
        %v4234 = vunpack.c.l.s4 1983009808
        %v4235 = vunpack.c.0.s8 %v4234
        %v4236 = vlaneseq
        %v4237 = vshrl.u32 %v4236, 7
        %v4238 = vsub.s32 %v4235, %v4237
        %v4239 = vrot.slane %v4225, %v4238
        %v4240 = vcombine.low %v4184, %v4200
        %v4241 = vcombine.high %v4184, %v4200
        %v4243 = vunpack.c.l.s4 1934713408
        %v4244 = vunpack.c.0.s8 %v4243
        %v4245 = vlaneseq
        %v4246 = vshrl.u32 %v4245, 7
        %v4247 = vsub.s32 %v4244, %v4246
        %v4248 = vrot.slane %v4240, %v4247
        %v4250 = vunpack.c.l.s4 1934713408
        %v4251 = vunpack.c.0.s8 %v4250
        %v4252 = vlaneseq
        %v4253 = vshrl.u32 %v4252, 7
        %v4254 = vsub.s32 %v4251, %v4253
        %v4255 = vrot.slane %v4241, %v4254
        %v4256 = vcombine.low %v4191, %v4207
        %v4257 = vcombine.high %v4191, %v4207
        %v4259 = vunpack.c.l.s4 1934713408
        %v4260 = vunpack.c.0.s8 %v4259
        %v4261 = vlaneseq
        %v4262 = vshrl.u32 %v4261, 7
        %v4263 = vsub.s32 %v4260, %v4262
        %v4264 = vrot.slane %v4256, %v4263
        %v4266 = vunpack.c.l.s4 1934713408
        %v4267 = vunpack.c.0.s8 %v4266
        %v4268 = vlaneseq
        %v4269 = vshrl.u32 %v4268, 7
        %v4270 = vsub.s32 %v4267, %v4269
        %v4271 = vrot.slane %v4257, %v4270
        %v4272 = vcombine.low %v4216, %v4232
        %v4273 = vcombine.high %v4216, %v4232
        %v4275 = vunpack.c.l.s4 1934713408
        %v4276 = vunpack.c.0.s8 %v4275
        %v4277 = vlaneseq
        %v4278 = vshrl.u32 %v4277, 7
        %v4279 = vsub.s32 %v4276, %v4278
        %v4280 = vrot.slane %v4272, %v4279
        %v4282 = vunpack.c.l.s4 1934713408
        %v4283 = vunpack.c.0.s8 %v4282
        %v4284 = vlaneseq
        %v4285 = vshrl.u32 %v4284, 7
        %v4286 = vsub.s32 %v4283, %v4285
        %v4287 = vrot.slane %v4273, %v4286
        %v4288 = vcombine.low %v4223, %v4239
        %v4289 = vcombine.high %v4223, %v4239
        %v4291 = vunpack.c.l.s4 1934713408
        %v4292 = vunpack.c.0.s8 %v4291
        %v4293 = vlaneseq
        %v4294 = vshrl.u32 %v4293, 7
        %v4295 = vsub.s32 %v4292, %v4294
        %v4296 = vrot.slane %v4288, %v4295
        %v4298 = vunpack.c.l.s4 1934713408
        %v4299 = vunpack.c.0.s8 %v4298
        %v4300 = vlaneseq
        %v4301 = vshrl.u32 %v4300, 7
        %v4302 = vsub.s32 %v4299, %v4301
        %v4303 = vrot.slane %v4289, %v4302
        %v4304 = vcombine.low %v4248, %v4280
        %v4305 = vcombine.high %v4248, %v4280
        %v4306 = vcombine.low %v4255, %v4287
        %v4307 = vcombine.high %v4255, %v4287
        %v4308 = vcombine.low %v4264, %v4296
        %v4309 = vcombine.high %v4264, %v4296
        %v4310 = vcombine.low %v4271, %v4303
        %v4311 = vcombine.high %v4271, %v4303
        %4313 = vrot.lane.b32.xlu0 %v3353, 16
        %v4314 = vpop.permute.xlu0 %4313
        %4317 = vrot.lane.b32.xlu0 %v3354, 32
        %v4318 = vpop.permute.xlu0 %4317
        %4321 = vrot.lane.b32.xlu0 %v3355, 48
        %v4322 = vpop.permute.xlu0 %4321
        %4325 = vrot.lane.b32.xlu0 %v3356, 64
        %v4326 = vpop.permute.xlu0 %4325
        %4329 = vrot.lane.b32.xlu0 %v3357, 80
        %v4330 = vpop.permute.xlu0 %4329
        %4333 = vrot.lane.b32.xlu0 %v3358, 96
        %v4334 = vpop.permute.xlu0 %4333
        %4337 = vrot.lane.b32.xlu0 %v3359, 112
        %v4338 = vpop.permute.xlu0 %4337
        %4341 = vrot.lane.b32.xlu0 %v3489, 16
        %v4342 = vpop.permute.xlu0 %4341
        %4345 = vrot.lane.b32.xlu0 %v3490, 32
        %v4346 = vpop.permute.xlu0 %4345
        %4349 = vrot.lane.b32.xlu0 %v3491, 48
        %v4350 = vpop.permute.xlu0 %4349
        %4353 = vrot.lane.b32.xlu0 %v3492, 64
        %v4354 = vpop.permute.xlu0 %4353
        %4357 = vrot.lane.b32.xlu0 %v3493, 80
        %v4358 = vpop.permute.xlu0 %4357
        %4361 = vrot.lane.b32.xlu0 %v3494, 96
        %v4362 = vpop.permute.xlu0 %4361
        %4365 = vrot.lane.b32.xlu0 %v3495, 112
        %v4366 = vpop.permute.xlu0 %4365
        %4369 = vrot.lane.b32.xlu0 %v3625, 16
        %v4370 = vpop.permute.xlu0 %4369
        %4373 = vrot.lane.b32.xlu0 %v3626, 32
        %v4374 = vpop.permute.xlu0 %4373
        %4377 = vrot.lane.b32.xlu0 %v3627, 48
        %v4378 = vpop.permute.xlu0 %4377
        %4381 = vrot.lane.b32.xlu0 %v3628, 64
        %v4382 = vpop.permute.xlu0 %4381
        %4385 = vrot.lane.b32.xlu0 %v3629, 80
        %v4386 = vpop.permute.xlu0 %4385
        %4389 = vrot.lane.b32.xlu0 %v3630, 96
        %v4390 = vpop.permute.xlu0 %4389
        %4393 = vrot.lane.b32.xlu0 %v3631, 112
        %v4394 = vpop.permute.xlu0 %4393
        %4397 = vrot.lane.b32.xlu0 %v3761, 16
        %v4398 = vpop.permute.xlu0 %4397
        %4401 = vrot.lane.b32.xlu0 %v3762, 32
        %v4402 = vpop.permute.xlu0 %4401
        %4405 = vrot.lane.b32.xlu0 %v3763, 48
        %v4406 = vpop.permute.xlu0 %4405
        %4409 = vrot.lane.b32.xlu0 %v3764, 64
        %v4410 = vpop.permute.xlu0 %4409
        %4413 = vrot.lane.b32.xlu0 %v3765, 80
        %v4414 = vpop.permute.xlu0 %4413
        %4417 = vrot.lane.b32.xlu0 %v3766, 96
        %v4418 = vpop.permute.xlu0 %4417
        %4421 = vrot.lane.b32.xlu0 %v3767, 112
        %v4422 = vpop.permute.xlu0 %4421
        %4425 = vrot.lane.b32.xlu0 %v3897, 16
        %v4426 = vpop.permute.xlu0 %4425
        %4429 = vrot.lane.b32.xlu0 %v3898, 32
        %v4430 = vpop.permute.xlu0 %4429
        %4433 = vrot.lane.b32.xlu0 %v3899, 48
        %v4434 = vpop.permute.xlu0 %4433
        %4437 = vrot.lane.b32.xlu0 %v3900, 64
        %v4438 = vpop.permute.xlu0 %4437
        %4441 = vrot.lane.b32.xlu0 %v3901, 80
        %v4442 = vpop.permute.xlu0 %4441
        %4445 = vrot.lane.b32.xlu0 %v3902, 96
        %v4446 = vpop.permute.xlu0 %4445
        %4449 = vrot.lane.b32.xlu0 %v3903, 112
        %v4450 = vpop.permute.xlu0 %4449
        %4453 = vrot.lane.b32.xlu0 %v4033, 16
        %v4454 = vpop.permute.xlu0 %4453
        %4457 = vrot.lane.b32.xlu0 %v4034, 32
        %v4458 = vpop.permute.xlu0 %4457
        %4461 = vrot.lane.b32.xlu0 %v4035, 48
        %v4462 = vpop.permute.xlu0 %4461
        %4465 = vrot.lane.b32.xlu0 %v4036, 64
        %v4466 = vpop.permute.xlu0 %4465
        %4469 = vrot.lane.b32.xlu0 %v4037, 80
        %v4470 = vpop.permute.xlu0 %4469
        %4473 = vrot.lane.b32.xlu0 %v4038, 96
        %v4474 = vpop.permute.xlu0 %4473
        %4477 = vrot.lane.b32.xlu0 %v4039, 112
        %v4478 = vpop.permute.xlu0 %4477
        %4481 = vrot.lane.b32.xlu0 %v4169, 16
        %v4482 = vpop.permute.xlu0 %4481
        %4485 = vrot.lane.b32.xlu0 %v4170, 32
        %v4486 = vpop.permute.xlu0 %4485
        %4489 = vrot.lane.b32.xlu0 %v4171, 48
        %v4490 = vpop.permute.xlu0 %4489
        %4493 = vrot.lane.b32.xlu0 %v4172, 64
        %v4494 = vpop.permute.xlu0 %4493
        %4497 = vrot.lane.b32.xlu0 %v4173, 80
        %v4498 = vpop.permute.xlu0 %4497
        %4501 = vrot.lane.b32.xlu0 %v4174, 96
        %v4502 = vpop.permute.xlu0 %4501
        %4505 = vrot.lane.b32.xlu0 %v4175, 112
        %v4506 = vpop.permute.xlu0 %4505
        %4509 = vrot.lane.b32.xlu0 %v4305, 16
        %v4510 = vpop.permute.xlu0 %4509
        %4513 = vrot.lane.b32.xlu0 %v4306, 32
        %v4514 = vpop.permute.xlu0 %4513
        %4517 = vrot.lane.b32.xlu0 %v4307, 48
        %v4518 = vpop.permute.xlu0 %4517
        %4521 = vrot.lane.b32.xlu0 %v4308, 64
        %v4522 = vpop.permute.xlu0 %4521
        %4525 = vrot.lane.b32.xlu0 %v4309, 80
        %v4526 = vpop.permute.xlu0 %4525
        %4529 = vrot.lane.b32.xlu0 %v4310, 96
        %v4530 = vpop.permute.xlu0 %4529
        %4533 = vrot.lane.b32.xlu0 %v4311, 112
        %v4534 = vpop.permute.xlu0 %4533
        %v4536 = vsel %vm511, %v3352, %v4314
        %vm4537 = vcmask 261120
        %v4538 = vsel %vm4537, %v4536, %v4318
        %vm4539 = vcmask 392192
        %v4540 = vsel %vm4539, %v4538, %v4322
        %vm4541 = vcmask 523264
        %v4542 = vsel %vm4541, %v4540, %v4326
        %vm4543 = vcmask 654336
        %v4544 = vsel %vm4543, %v4542, %v4330
        %vm4545 = vcmask 785408
        %v4546 = vsel %vm4545, %v4544, %v4334
        %vm4547 = vcmask 916480
        %v4548 = vsel %vm4547, %v4546, %v4338
        %v4549 = vsel %vm511, %v3488, %v4342
        %v4550 = vsel %vm4537, %v4549, %v4346
        %v4551 = vsel %vm4539, %v4550, %v4350
        %v4552 = vsel %vm4541, %v4551, %v4354
        %v4553 = vsel %vm4543, %v4552, %v4358
        %v4554 = vsel %vm4545, %v4553, %v4362
        %v4555 = vsel %vm4547, %v4554, %v4366
        %v4556 = vsel %vm511, %v3624, %v4370
        %v4557 = vsel %vm4537, %v4556, %v4374
        %v4558 = vsel %vm4539, %v4557, %v4378
        %v4559 = vsel %vm4541, %v4558, %v4382
        %v4560 = vsel %vm4543, %v4559, %v4386
        %v4561 = vsel %vm4545, %v4560, %v4390
        %v4562 = vsel %vm4547, %v4561, %v4394
        %v4563 = vsel %vm511, %v3760, %v4398
        %v4564 = vsel %vm4537, %v4563, %v4402
        %v4565 = vsel %vm4539, %v4564, %v4406
        %v4566 = vsel %vm4541, %v4565, %v4410
        %v4567 = vsel %vm4543, %v4566, %v4414
        %v4568 = vsel %vm4545, %v4567, %v4418
        %v4569 = vsel %vm4547, %v4568, %v4422
        %v4570 = vsel %vm511, %v3896, %v4426
        %v4571 = vsel %vm4537, %v4570, %v4430
        %v4572 = vsel %vm4539, %v4571, %v4434
        %v4573 = vsel %vm4541, %v4572, %v4438
        %v4574 = vsel %vm4543, %v4573, %v4442
        %v4575 = vsel %vm4545, %v4574, %v4446
        %v4576 = vsel %vm4547, %v4575, %v4450
        %v4577 = vsel %vm511, %v4032, %v4454
        %v4578 = vsel %vm4537, %v4577, %v4458
        %v4579 = vsel %vm4539, %v4578, %v4462
        %v4580 = vsel %vm4541, %v4579, %v4466
        %v4581 = vsel %vm4543, %v4580, %v4470
        %v4582 = vsel %vm4545, %v4581, %v4474
        %v4583 = vsel %vm4547, %v4582, %v4478
        %v4584 = vsel %vm511, %v4168, %v4482
        %v4585 = vsel %vm4537, %v4584, %v4486
        %v4586 = vsel %vm4539, %v4585, %v4490
        %v4587 = vsel %vm4541, %v4586, %v4494
        %v4588 = vsel %vm4543, %v4587, %v4498
        %v4589 = vsel %vm4545, %v4588, %v4502
        %v4590 = vsel %vm4547, %v4589, %v4506
        %v4591 = vsel %vm511, %v4304, %v4510
        %v4592 = vsel %vm4537, %v4591, %v4514
        %v4593 = vsel %vm4539, %v4592, %v4518
        %v4594 = vsel %vm4541, %v4593, %v4522
        %v4595 = vsel %vm4543, %v4594, %v4526
        %v4596 = vsel %vm4545, %v4595, %v4530
        %v4597 = vsel %vm4547, %v4596, %v4534
        %4598 = vst [vmem:[%s274] sm:$0xff] %v4548
        %4599 = vst [vmem:[%s274 + $0x8] sm:$0xff] %v4555
        %4600 = vst [vmem:[%s274 + $0x10] sm:$0xff] %v4562
        %4601 = vst [vmem:[%s274 + $0x18] sm:$0xff] %v4569
        %4602 = vst [vmem:[%s274 + $0x20] sm:$0xff] %v4576
        %4603 = vst [vmem:[%s274 + $0x28] sm:$0xff] %v4583
        %4604 = vst [vmem:[%s274 + $0x30] sm:$0xff] %v4590
        %4605 = vst [vmem:[%s274 + $0x38] sm:$0xff] %v4597
        %s4606 = sand.u32 %s152, 1
        %s4607 = scalar_lea.sflag [#allocation3], %s4606
        %s4608 = sand.u32 %s152, 1
        %s4609 = smul.addr %s4608, 64
        %s4610 = scalar_lea.vmem [#allocation2], %s4609
        // Predicated region
        $region41: #{tpu_custom_call.1} parent=39 // pred_check
          %p4611 = pneg %p162
        $region42: #{tpu_custom_call.1} parent=39 // pred_check_branch
          %4613 = sbr.rel (%p4611) target = $region44
        $region43: #{tpu_custom_call.1} parent=39 // pred_region
          %s4615 = ssub.s32 1024, 1024
          %4616 = vsyncadd %s4607, %s4615
          %s4617 = smul.addr %s19, 8
          %s4618 = smul.addr %s4617, 128
          %s4619 = scalar_lea.hbm %s5, %s4618
          %s4621 = sshll.u32 %s4610, 4
          %s4622 = int_to_ptr.vmem [resolvable:$true] %s4621
          %4624 = dma.vmem_to_hbm [thread:$0]  %s4622, 1024, %s4619, %s4607
        $region44: #{tpu_custom_call.1} parent=39 // pred_fallthru
          _
      $region40: #{tpu_custom_call.1} parent=5 // pred_fallthru
        _
      %p4625 = scmp.le.s32.totalorder 2, %s14
      // Predicated region
      $region45: #{tpu_custom_call.1} parent=5 // pred_check
        %p4626 = pneg %p4625
      $region46: #{tpu_custom_call.1} parent=5 // pred_check_branch
        %4628 = sbr.rel (%p4626) target = $region48
      $region47: #{tpu_custom_call.1} parent=5 // pred_region
        %s4629 = ssub.s32 %s14, 2
        // Predicated region
        $region49: #{tpu_custom_call.1} parent=47 // pred_check
          %p4630 = pneg %p168
        $region50: #{tpu_custom_call.1} parent=47 // pred_check_branch
          %4632 = sbr.rel (%p4630) target = $region52
        $region51: #{tpu_custom_call.1} parent=47 // pred_region
          %s4633 = sand.u32 %s153, 1
          %s4634 = scalar_lea.sflag [#allocation3], %s4633
          %s4635 = sand.u32 %s153, 1
          %s4636 = smul.addr %s4635, 64
          %s4637 = scalar_lea.vmem [#allocation2], %s4636
          %4638 = dma.done %s4634, 1024
        $region52: #{tpu_custom_call.1} parent=47 // pred_fallthru
          _
      $region48: #{tpu_custom_call.1} parent=5 // pred_fallthru
        _
    $region6: #{tpu_custom_call.1} parent=1 // loop_footer
      %s18 = sadd.s32 1, %s14
    $region7: #{tpu_custom_call.1} parent=1 // loop_footer_branch
      %13 = sbr.rel target = $region3
    $region8: #{tpu_custom_call.1} parent=1 // loop_exit
      _
    %4639 = vsyncpa [#allocation3], 1
    %s4640 = scalar_lea.sflag [#allocation3], 1
    %4641 = vsyncpa %s4640, 1

</llo_original>
